<compile_context>
chip_gen: v7x
topology: tpu7x:2x2x1
jax: 0.10.0
libtpu: 0.0.40
codegen_flags: <defaults>
</compile_context>

<pallas_src>
import jax
import jax.numpy as jnp
from jax.experimental import pallas as pl
from jax.experimental.pallas import tpu as pltpu

T = 28          # sequence length (rows of the 28x28 "image")
F = 28          # input feature size per step
H = 64          # GRU hidden size
O = 10          # output classes


def _round_up(a, m):
    return (a + m - 1) // m * m


def gru_recurrence_kernel(gi_ref, w_hh_ref, b_hn_ref, w_out_ref, b_out_ref, out_ref):
    # gi_ref:    (T, TB, 3H) f32   precomputed x@W_ih^T with b_ih (+ b_hh for r/z lanes) folded in
    # w_hh_ref:  (H, 3H)     bf16  pre-transposed hidden weights [r | z | n]
    # b_hn_ref:  (1, H)      f32   b_hn (must stay inside the r*(...) term)
    # w_out_ref: (H, O)      bf16  pre-transposed Linear weight
    # b_out_ref: (1, O)      f32
    # out_ref:   (TB, O)     f32
    TB = gi_ref.shape[1]
    H2 = 2 * H

    w_hh = w_hh_ref[...]                                      # resident across the unroll
    b_hn = jnp.broadcast_to(b_hn_ref[...], (TB, H))           # hoisted: broadcast once, not 28x

    h = jnp.zeros((TB, H), jnp.float32)                       # hx = torch.zeros(batch, 64)

    # Static unroll over the 28 timesteps (small, fixed trip count).
    for s in range(T):
        gi = gi_ref[s]                                        # (TB, 3H) f32
        # h-dependent matmul: bf16 MXU operands, f32 accumulation.
        gh = jnp.dot(h.astype(jnp.bfloat16), w_hh,
                     preferred_element_type=jnp.float32)      # (TB, 3H)

        # Fused r|z gates: one 128-lane add + sigmoid (slice boundary at lane 128).
        rz = jax.nn.sigmoid(gi[:, :H2] + gh[:, :H2])
        r = rz[:, :H]
        z = rz[:, H:]

        n = jnp.tanh(gi[:, H2:] + r * (gh[:, H2:] + b_hn))
        h = n + z * (h - n)                                   # == (1 - z)*n + z*h

    out_ref[...] = (jnp.dot(h.astype(jnp.bfloat16), w_out_ref[...],
                            preferred_element_type=jnp.float32)
                    + b_out_ref[...])


def rnn_net_forward(x, params, *, block_b=128):
    """x: (B, 28, 28) float32 -> (B, 10) float32."""
    w_ih_t, w_hh_t, b_ih, b_hh, w_out_t, b_out = params
    B = x.shape[0]
    x = x.reshape(B, T, F).astype(jnp.float32)                # mirrors x.view(-1, 28, 28)

    # Batch tile size: multiple of 8 sublanes (or the full padded batch if small).
    TB = block_b if B >= block_b else _round_up(B, 8)
    Bp = _round_up(B, TB)

    # ---- Hoisted input projection (one large, well-shaped matmul off the serial path).
    # Fold b_ih everywhere and b_hh into the r/z lanes; only b_hn stays in-kernel.
    b_gi = jnp.concatenate([b_ih[:, :2 * H] + b_hh[:, :2 * H], b_ih[:, 2 * H:]], axis=1)
    gi = jnp.dot(x.reshape(B * T, F).astype(jnp.bfloat16),
                 w_ih_t.astype(jnp.bfloat16),
                 preferred_element_type=jnp.float32) + b_gi    # (B*T, 3H) f32
    gi = gi.reshape(B, T, 3 * H)
    if Bp != B:
        gi = jnp.pad(gi, ((0, Bp - B), (0, 0), (0, 0)))        # zero rows -> harmless, sliced off
    gi = jnp.transpose(gi, (1, 0, 2))                          # (T, Bp, 3H) time-major

    grid = (Bp // TB,)

    cost = pl.CostEstimate(
        flops=2 * Bp * T * H * (3 * H) + 2 * Bp * H * O,
        transcendentals=Bp * T * 3 * H,
        bytes_accessed=int(gi.size) * 4 + w_hh_t.size * 2 + w_out_t.size * 2 + Bp * O * 4,
    )

    out = pl.pallas_call(
        gru_recurrence_kernel,
        out_shape=jax.ShapeDtypeStruct((Bp, O), jnp.float32),
        grid=grid,
        in_specs=[
            pl.BlockSpec((T, TB, 3 * H), lambda i: (0, i, 0)),   # GI: batch-tiled, double-buffered
            pl.BlockSpec((H, 3 * H),     lambda i: (0, 0)),      # weights stay resident
            pl.BlockSpec((1, H),         lambda i: (0, 0)),
            pl.BlockSpec((H, O),         lambda i: (0, 0)),
            pl.BlockSpec((1, O),         lambda i: (0, 0)),
        ],
        out_specs=pl.BlockSpec((TB, O), lambda i: (i, 0)),
        compiler_params=pltpu.CompilerParams(
            dimension_semantics=("parallel",),                   # batch rows are independent
            vmem_limit_bytes=32 * 1024 * 1024,                   # safe on v5e/v6e/v7x
        ),
        cost_estimate=cost,
    )(gi,
      w_hh_t.astype(jnp.bfloat16),
      b_hh[:, 2 * H:].astype(jnp.float32),
      w_out_t.astype(jnp.bfloat16),
      b_out.astype(jnp.float32))
    return out[:B]


def init_params(key):
    """Deterministic init matching nn.GRUCell(28,64) / nn.Linear(64,10) shapes."""
    k = jax.random.split(key, 6)
    bound_g = 1.0 / jnp.sqrt(H)
    bound_l = 1.0 / jnp.sqrt(H)
    w_ih = jax.random.uniform(k[0], (3 * H, F), jnp.float32, -bound_g, bound_g)
    w_hh = jax.random.uniform(k[1], (3 * H, H), jnp.float32, -bound_g, bound_g)
    b_ih = jax.random.uniform(k[2], (3 * H,), jnp.float32, -bound_g, bound_g)
    b_hh = jax.random.uniform(k[3], (3 * H,), jnp.float32, -bound_g, bound_g)
    w_out = jax.random.uniform(k[4], (O, H), jnp.float32, -bound_l, bound_l)
    b_out = jax.random.uniform(k[5], (O,), jnp.float32, -bound_l, bound_l)
    # Pre-transpose for row-major `activations @ weights`; biases as (1, out).
    return (w_ih.T, w_hh.T, b_ih.reshape(1, -1), b_hh.reshape(1, -1),
            w_out.T, b_out.reshape(1, -1))


def rnn_net_reference(x, params, matmul_dtype=jnp.float32):
    """Pure-JAX reference of the PyTorch forward. `matmul_dtype` lets us mirror the
    kernel's bf16 MXU operands (f32 accumulation) for a tight numerical check."""
    w_ih_t, w_hh_t, b_ih, b_hh, w_out_t, b_out = params
    B = x.shape[0]
    x = x.reshape(B, T, F).astype(jnp.float32)

    def mm(a, b):
        return jnp.dot(a.astype(matmul_dtype), b.astype(matmul_dtype),
                       preferred_element_type=jnp.float32)

    h = jnp.zeros((B, H), jnp.float32)
    for s in range(T):
        xs = x[:, s, :]
        gi = mm(xs, w_ih_t) + b_ih
        gh = mm(h, w_hh_t) + b_hh
        r = jax.nn.sigmoid(gi[:, :H] + gh[:, :H])
        z = jax.nn.sigmoid(gi[:, H:2 * H] + gh[:, H:2 * H])
        n = jnp.tanh(gi[:, 2 * H:] + r * gh[:, 2 * H:])
        h = (1.0 - z) * n + z * h
    return mm(h, w_out_t) + b_out


if __name__ == "__main__":
    key = jax.random.PRNGKey(0)
    k_x, k_p = jax.random.split(key)

    B = 40  # small batch (module uses batch=1000; semantics identical).  block_b=16
            # -> TB=16, padded batch 48, grid=(3,): exercises tiling + padding paths.
    x = jax.random.normal(k_x, (B, T, F), jnp.float32)
    params = init_params(k_p)

    fwd = jax.jit(lambda xx: rnn_net_forward(xx, params, block_b=16))
    out = jax.block_until_ready(fwd(x))
    assert out.shape == (B, O)

    # Tight check against a reference that mirrors the kernel numerics (bf16 MXU operands).
    ref_bf16 = rnn_net_reference(x, params, matmul_dtype=jnp.bfloat16)
    assert jnp.allclose(out, ref_bf16, atol=1e-2, rtol=1e-2)

    # Loose check against full-f32 PyTorch math (bf16 MXU rounding only).
    ref_f32 = rnn_net_reference(x, params, matmul_dtype=jnp.float32)
    assert jnp.allclose(out, ref_f32, atol=1e-1, rtol=1e-1)

    print("KERNEL_OK")
</pallas_src>

<mosaic_0001>
module attributes {stable_mosaic.version = 11 : i64} {
  func.func @gru_recurrence_kernel(%arg0: i32, %arg1: memref<28x16x192xf32, #tpu.memory_space<vmem>>, %arg2: memref<64x192xbf16, #tpu.memory_space<vmem>>, %arg3: memref<1x64xf32, #tpu.memory_space<vmem>>, %arg4: memref<64x10xbf16, #tpu.memory_space<vmem>>, %arg5: memref<1x10xf32, #tpu.memory_space<vmem>>, %arg6: memref<16x10xf32, #tpu.memory_space<vmem>>) attributes {dimension_semantics = [#tpu.dimension_semantics<parallel>], iteration_bounds = array<i64: 3>, scalar_prefetch = 0 : i64, scratch_operands = 0 : i64, tpu.core_type = #tpu.core_type<tc>, window_params = [{transform_indices = @transform_0, window_bounds = array<i64: 28, 16, 192>}, {pipeline_mode = #tpu.pipeline_mode<synchronous>, transform_indices = @transform_1, window_bounds = array<i64: 64, 192>}, {pipeline_mode = #tpu.pipeline_mode<synchronous>, transform_indices = @transform_2, window_bounds = array<i64: 1, 64>}, {pipeline_mode = #tpu.pipeline_mode<synchronous>, transform_indices = @transform_3, window_bounds = array<i64: 64, 10>}, {pipeline_mode = #tpu.pipeline_mode<synchronous>, transform_indices = @transform_4, window_bounds = array<i64: 1, 10>}, {transform_indices = @transform_5, window_bounds = array<i64: 16, 10>}]} {
    %c0 = arith.constant 0 : index
    %c0_0 = arith.constant 0 : index
    %0 = vector.load %arg2[%c0, %c0_0] : memref<64x192xbf16, #tpu.memory_space<vmem>>, vector<64x192xbf16>
    %c0_1 = arith.constant 0 : index
    %c0_2 = arith.constant 0 : index
    %1 = vector.load %arg3[%c0_1, %c0_2] : memref<1x64xf32, #tpu.memory_space<vmem>>, vector<1x64xf32>
    %2 = vector.shape_cast %1 : vector<1x64xf32> to vector<1x64xf32>
    %3 = vector.broadcast %2 : vector<1x64xf32> to vector<16x64xf32>
    %cst = arith.constant 0.000000e+00 : f32
    %4 = vector.broadcast %cst : f32 to vector<16x64xf32>
    %c0_3 = arith.constant 0 : index
    %c0_4 = arith.constant 0 : index
    %c0_5 = arith.constant 0 : index
    %5 = vector.load %arg1[%c0_3, %c0_4, %c0_5] : memref<28x16x192xf32, #tpu.memory_space<vmem>>, vector<1x16x192xf32>
    %6 = vector.shape_cast %5 : vector<1x16x192xf32> to vector<16x192xf32>
    %7 = arith.truncf %4 : vector<16x64xf32> to vector<16x64xbf16>
    %cst_6 = arith.constant dense<0.000000e+00> : vector<16x192xf32>
    %8 = tpu.matmul %7, %0, %cst_6 {dimension_numbers = #tpu.dot_dimension_numbers<[1], [0], [0], [1], [0, 0, 1, 1], [], []>} : vector<16x64xbf16>, vector<64x192xbf16>, vector<16x192xf32> -> vector<16x192xf32>
    %9 = vector.extract_strided_slice %6 {offsets = [0, 0], sizes = [16, 128], strides = [1, 1]} : vector<16x192xf32> to vector<16x128xf32>
    %10 = vector.extract_strided_slice %8 {offsets = [0, 0], sizes = [16, 128], strides = [1, 1]} : vector<16x192xf32> to vector<16x128xf32>
    %11 = arith.addf %9, %10 : vector<16x128xf32>
    %12 = arith.negf %11 : vector<16x128xf32>
    %13 = math.exp %12 : vector<16x128xf32>
    %cst_7 = arith.constant 1.000000e+00 : f32
    %14 = vector.broadcast %cst_7 : f32 to vector<16x128xf32>
    %15 = arith.addf %14, %13 : vector<16x128xf32>
    %16 = arith.divf %14, %15 : vector<16x128xf32>
    %17 = vector.extract_strided_slice %16 {offsets = [0, 0], sizes = [16, 64], strides = [1, 1]} : vector<16x128xf32> to vector<16x64xf32>
    %18 = vector.extract_strided_slice %16 {offsets = [0, 64], sizes = [16, 64], strides = [1, 1]} : vector<16x128xf32> to vector<16x64xf32>
    %19 = vector.extract_strided_slice %6 {offsets = [0, 128], sizes = [16, 64], strides = [1, 1]} : vector<16x192xf32> to vector<16x64xf32>
    %20 = vector.extract_strided_slice %8 {offsets = [0, 128], sizes = [16, 64], strides = [1, 1]} : vector<16x192xf32> to vector<16x64xf32>
    %21 = arith.addf %20, %3 : vector<16x64xf32>
    %22 = arith.mulf %17, %21 : vector<16x64xf32>
    %23 = arith.addf %19, %22 : vector<16x64xf32>
    %24 = math.tanh %23 : vector<16x64xf32>
    %25 = arith.subf %4, %24 : vector<16x64xf32>
    %26 = arith.mulf %18, %25 : vector<16x64xf32>
    %27 = arith.addf %24, %26 : vector<16x64xf32>
    %c1 = arith.constant 1 : index
    %c0_8 = arith.constant 0 : index
    %c0_9 = arith.constant 0 : index
    %28 = vector.load %arg1[%c1, %c0_8, %c0_9] : memref<28x16x192xf32, #tpu.memory_space<vmem>>, vector<1x16x192xf32>
    %29 = vector.shape_cast %28 : vector<1x16x192xf32> to vector<16x192xf32>
    %30 = arith.truncf %27 : vector<16x64xf32> to vector<16x64xbf16>
    %cst_10 = arith.constant dense<0.000000e+00> : vector<16x192xf32>
    %31 = tpu.matmul %30, %0, %cst_10 {dimension_numbers = #tpu.dot_dimension_numbers<[1], [0], [0], [1], [0, 0, 1, 1], [], []>} : vector<16x64xbf16>, vector<64x192xbf16>, vector<16x192xf32> -> vector<16x192xf32>
    %32 = vector.extract_strided_slice %29 {offsets = [0, 0], sizes = [16, 128], strides = [1, 1]} : vector<16x192xf32> to vector<16x128xf32>
    %33 = vector.extract_strided_slice %31 {offsets = [0, 0], sizes = [16, 128], strides = [1, 1]} : vector<16x192xf32> to vector<16x128xf32>
    %34 = arith.addf %32, %33 : vector<16x128xf32>
    %35 = arith.negf %34 : vector<16x128xf32>
    %36 = math.exp %35 : vector<16x128xf32>
    %cst_11 = arith.constant 1.000000e+00 : f32
    %37 = vector.broadcast %cst_11 : f32 to vector<16x128xf32>
    %38 = arith.addf %37, %36 : vector<16x128xf32>
    %39 = arith.divf %37, %38 : vector<16x128xf32>
    %40 = vector.extract_strided_slice %39 {offsets = [0, 0], sizes = [16, 64], strides = [1, 1]} : vector<16x128xf32> to vector<16x64xf32>
    %41 = vector.extract_strided_slice %39 {offsets = [0, 64], sizes = [16, 64], strides = [1, 1]} : vector<16x128xf32> to vector<16x64xf32>
    %42 = vector.extract_strided_slice %29 {offsets = [0, 128], sizes = [16, 64], strides = [1, 1]} : vector<16x192xf32> to vector<16x64xf32>
    %43 = vector.extract_strided_slice %31 {offsets = [0, 128], sizes = [16, 64], strides = [1, 1]} : vector<16x192xf32> to vector<16x64xf32>
    %44 = arith.addf %43, %3 : vector<16x64xf32>
    %45 = arith.mulf %40, %44 : vector<16x64xf32>
    %46 = arith.addf %42, %45 : vector<16x64xf32>
    %47 = math.tanh %46 : vector<16x64xf32>
    %48 = arith.subf %27, %47 : vector<16x64xf32>
    %49 = arith.mulf %41, %48 : vector<16x64xf32>
    %50 = arith.addf %47, %49 : vector<16x64xf32>
    %c2 = arith.constant 2 : index
    %c0_12 = arith.constant 0 : index
    %c0_13 = arith.constant 0 : index
    %51 = vector.load %arg1[%c2, %c0_12, %c0_13] : memref<28x16x192xf32, #tpu.memory_space<vmem>>, vector<1x16x192xf32>
    %52 = vector.shape_cast %51 : vector<1x16x192xf32> to vector<16x192xf32>
    %53 = arith.truncf %50 : vector<16x64xf32> to vector<16x64xbf16>
    %cst_14 = arith.constant dense<0.000000e+00> : vector<16x192xf32>
    %54 = tpu.matmul %53, %0, %cst_14 {dimension_numbers = #tpu.dot_dimension_numbers<[1], [0], [0], [1], [0, 0, 1, 1], [], []>} : vector<16x64xbf16>, vector<64x192xbf16>, vector<16x192xf32> -> vector<16x192xf32>
    %55 = vector.extract_strided_slice %52 {offsets = [0, 0], sizes = [16, 128], strides = [1, 1]} : vector<16x192xf32> to vector<16x128xf32>
    %56 = vector.extract_strided_slice %54 {offsets = [0, 0], sizes = [16, 128], strides = [1, 1]} : vector<16x192xf32> to vector<16x128xf32>
    %57 = arith.addf %55, %56 : vector<16x128xf32>
    %58 = arith.negf %57 : vector<16x128xf32>
    %59 = math.exp %58 : vector<16x128xf32>
    %cst_15 = arith.constant 1.000000e+00 : f32
    %60 = vector.broadcast %cst_15 : f32 to vector<16x128xf32>
    %61 = arith.addf %60, %59 : vector<16x128xf32>
    %62 = arith.divf %60, %61 : vector<16x128xf32>
    %63 = vector.extract_strided_slice %62 {offsets = [0, 0], sizes = [16, 64], strides = [1, 1]} : vector<16x128xf32> to vector<16x64xf32>
    %64 = vector.extract_strided_slice %62 {offsets = [0, 64], sizes = [16, 64], strides = [1, 1]} : vector<16x128xf32> to vector<16x64xf32>
    %65 = vector.extract_strided_slice %52 {offsets = [0, 128], sizes = [16, 64], strides = [1, 1]} : vector<16x192xf32> to vector<16x64xf32>
    %66 = vector.extract_strided_slice %54 {offsets = [0, 128], sizes = [16, 64], strides = [1, 1]} : vector<16x192xf32> to vector<16x64xf32>
    %67 = arith.addf %66, %3 : vector<16x64xf32>
    %68 = arith.mulf %63, %67 : vector<16x64xf32>
    %69 = arith.addf %65, %68 : vector<16x64xf32>
    %70 = math.tanh %69 : vector<16x64xf32>
    %71 = arith.subf %50, %70 : vector<16x64xf32>
    %72 = arith.mulf %64, %71 : vector<16x64xf32>
    %73 = arith.addf %70, %72 : vector<16x64xf32>
    %c3 = arith.constant 3 : index
    %c0_16 = arith.constant 0 : index
    %c0_17 = arith.constant 0 : index
    %74 = vector.load %arg1[%c3, %c0_16, %c0_17] : memref<28x16x192xf32, #tpu.memory_space<vmem>>, vector<1x16x192xf32>
    %75 = vector.shape_cast %74 : vector<1x16x192xf32> to vector<16x192xf32>
    %76 = arith.truncf %73 : vector<16x64xf32> to vector<16x64xbf16>
    %cst_18 = arith.constant dense<0.000000e+00> : vector<16x192xf32>
    %77 = tpu.matmul %76, %0, %cst_18 {dimension_numbers = #tpu.dot_dimension_numbers<[1], [0], [0], [1], [0, 0, 1, 1], [], []>} : vector<16x64xbf16>, vector<64x192xbf16>, vector<16x192xf32> -> vector<16x192xf32>
    %78 = vector.extract_strided_slice %75 {offsets = [0, 0], sizes = [16, 128], strides = [1, 1]} : vector<16x192xf32> to vector<16x128xf32>
    %79 = vector.extract_strided_slice %77 {offsets = [0, 0], sizes = [16, 128], strides = [1, 1]} : vector<16x192xf32> to vector<16x128xf32>
    %80 = arith.addf %78, %79 : vector<16x128xf32>
    %81 = arith.negf %80 : vector<16x128xf32>
    %82 = math.exp %81 : vector<16x128xf32>
    %cst_19 = arith.constant 1.000000e+00 : f32
    %83 = vector.broadcast %cst_19 : f32 to vector<16x128xf32>
    %84 = arith.addf %83, %82 : vector<16x128xf32>
    %85 = arith.divf %83, %84 : vector<16x128xf32>
    %86 = vector.extract_strided_slice %85 {offsets = [0, 0], sizes = [16, 64], strides = [1, 1]} : vector<16x128xf32> to vector<16x64xf32>
    %87 = vector.extract_strided_slice %85 {offsets = [0, 64], sizes = [16, 64], strides = [1, 1]} : vector<16x128xf32> to vector<16x64xf32>
    %88 = vector.extract_strided_slice %75 {offsets = [0, 128], sizes = [16, 64], strides = [1, 1]} : vector<16x192xf32> to vector<16x64xf32>
    %89 = vector.extract_strided_slice %77 {offsets = [0, 128], sizes = [16, 64], strides = [1, 1]} : vector<16x192xf32> to vector<16x64xf32>
    %90 = arith.addf %89, %3 : vector<16x64xf32>
    %91 = arith.mulf %86, %90 : vector<16x64xf32>
    %92 = arith.addf %88, %91 : vector<16x64xf32>
    %93 = math.tanh %92 : vector<16x64xf32>
    %94 = arith.subf %73, %93 : vector<16x64xf32>
    %95 = arith.mulf %87, %94 : vector<16x64xf32>
    %96 = arith.addf %93, %95 : vector<16x64xf32>
    %c4 = arith.constant 4 : index
    %c0_20 = arith.constant 0 : index
    %c0_21 = arith.constant 0 : index
    %97 = vector.load %arg1[%c4, %c0_20, %c0_21] : memref<28x16x192xf32, #tpu.memory_space<vmem>>, vector<1x16x192xf32>
    %98 = vector.shape_cast %97 : vector<1x16x192xf32> to vector<16x192xf32>
    %99 = arith.truncf %96 : vector<16x64xf32> to vector<16x64xbf16>
    %cst_22 = arith.constant dense<0.000000e+00> : vector<16x192xf32>
    %100 = tpu.matmul %99, %0, %cst_22 {dimension_numbers = #tpu.dot_dimension_numbers<[1], [0], [0], [1], [0, 0, 1, 1], [], []>} : vector<16x64xbf16>, vector<64x192xbf16>, vector<16x192xf32> -> vector<16x192xf32>
    %101 = vector.extract_strided_slice %98 {offsets = [0, 0], sizes = [16, 128], strides = [1, 1]} : vector<16x192xf32> to vector<16x128xf32>
    %102 = vector.extract_strided_slice %100 {offsets = [0, 0], sizes = [16, 128], strides = [1, 1]} : vector<16x192xf32> to vector<16x128xf32>
    %103 = arith.addf %101, %102 : vector<16x128xf32>
    %104 = arith.negf %103 : vector<16x128xf32>
    %105 = math.exp %104 : vector<16x128xf32>
    %cst_23 = arith.constant 1.000000e+00 : f32
    %106 = vector.broadcast %cst_23 : f32 to vector<16x128xf32>
    %107 = arith.addf %106, %105 : vector<16x128xf32>
    %108 = arith.divf %106, %107 : vector<16x128xf32>
    %109 = vector.extract_strided_slice %108 {offsets = [0, 0], sizes = [16, 64], strides = [1, 1]} : vector<16x128xf32> to vector<16x64xf32>
    %110 = vector.extract_strided_slice %108 {offsets = [0, 64], sizes = [16, 64], strides = [1, 1]} : vector<16x128xf32> to vector<16x64xf32>
    %111 = vector.extract_strided_slice %98 {offsets = [0, 128], sizes = [16, 64], strides = [1, 1]} : vector<16x192xf32> to vector<16x64xf32>
    %112 = vector.extract_strided_slice %100 {offsets = [0, 128], sizes = [16, 64], strides = [1, 1]} : vector<16x192xf32> to vector<16x64xf32>
    %113 = arith.addf %112, %3 : vector<16x64xf32>
    %114 = arith.mulf %109, %113 : vector<16x64xf32>
    %115 = arith.addf %111, %114 : vector<16x64xf32>
    %116 = math.tanh %115 : vector<16x64xf32>
    %117 = arith.subf %96, %116 : vector<16x64xf32>
    %118 = arith.mulf %110, %117 : vector<16x64xf32>
    %119 = arith.addf %116, %118 : vector<16x64xf32>
    %c5 = arith.constant 5 : index
    %c0_24 = arith.constant 0 : index
    %c0_25 = arith.constant 0 : index
    %120 = vector.load %arg1[%c5, %c0_24, %c0_25] : memref<28x16x192xf32, #tpu.memory_space<vmem>>, vector<1x16x192xf32>
    %121 = vector.shape_cast %120 : vector<1x16x192xf32> to vector<16x192xf32>
    %122 = arith.truncf %119 : vector<16x64xf32> to vector<16x64xbf16>
    %cst_26 = arith.constant dense<0.000000e+00> : vector<16x192xf32>
    %123 = tpu.matmul %122, %0, %cst_26 {dimension_numbers = #tpu.dot_dimension_numbers<[1], [0], [0], [1], [0, 0, 1, 1], [], []>} : vector<16x64xbf16>, vector<64x192xbf16>, vector<16x192xf32> -> vector<16x192xf32>
    %124 = vector.extract_strided_slice %121 {offsets = [0, 0], sizes = [16, 128], strides = [1, 1]} : vector<16x192xf32> to vector<16x128xf32>
    %125 = vector.extract_strided_slice %123 {offsets = [0, 0], sizes = [16, 128], strides = [1, 1]} : vector<16x192xf32> to vector<16x128xf32>
    %126 = arith.addf %124, %125 : vector<16x128xf32>
    %127 = arith.negf %126 : vector<16x128xf32>
    %128 = math.exp %127 : vector<16x128xf32>
    %cst_27 = arith.constant 1.000000e+00 : f32
    %129 = vector.broadcast %cst_27 : f32 to vector<16x128xf32>
    %130 = arith.addf %129, %128 : vector<16x128xf32>
    %131 = arith.divf %129, %130 : vector<16x128xf32>
    %132 = vector.extract_strided_slice %131 {offsets = [0, 0], sizes = [16, 64], strides = [1, 1]} : vector<16x128xf32> to vector<16x64xf32>
    %133 = vector.extract_strided_slice %131 {offsets = [0, 64], sizes = [16, 64], strides = [1, 1]} : vector<16x128xf32> to vector<16x64xf32>
    %134 = vector.extract_strided_slice %121 {offsets = [0, 128], sizes = [16, 64], strides = [1, 1]} : vector<16x192xf32> to vector<16x64xf32>
    %135 = vector.extract_strided_slice %123 {offsets = [0, 128], sizes = [16, 64], strides = [1, 1]} : vector<16x192xf32> to vector<16x64xf32>
    %136 = arith.addf %135, %3 : vector<16x64xf32>
    %137 = arith.mulf %132, %136 : vector<16x64xf32>
    %138 = arith.addf %134, %137 : vector<16x64xf32>
    %139 = math.tanh %138 : vector<16x64xf32>
    %140 = arith.subf %119, %139 : vector<16x64xf32>
    %141 = arith.mulf %133, %140 : vector<16x64xf32>
    %142 = arith.addf %139, %141 : vector<16x64xf32>
    %c6 = arith.constant 6 : index
    %c0_28 = arith.constant 0 : index
    %c0_29 = arith.constant 0 : index
    %143 = vector.load %arg1[%c6, %c0_28, %c0_29] : memref<28x16x192xf32, #tpu.memory_space<vmem>>, vector<1x16x192xf32>
    %144 = vector.shape_cast %143 : vector<1x16x192xf32> to vector<16x192xf32>
    %145 = arith.truncf %142 : vector<16x64xf32> to vector<16x64xbf16>
    %cst_30 = arith.constant dense<0.000000e+00> : vector<16x192xf32>
    %146 = tpu.matmul %145, %0, %cst_30 {dimension_numbers = #tpu.dot_dimension_numbers<[1], [0], [0], [1], [0, 0, 1, 1], [], []>} : vector<16x64xbf16>, vector<64x192xbf16>, vector<16x192xf32> -> vector<16x192xf32>
    %147 = vector.extract_strided_slice %144 {offsets = [0, 0], sizes = [16, 128], strides = [1, 1]} : vector<16x192xf32> to vector<16x128xf32>
    %148 = vector.extract_strided_slice %146 {offsets = [0, 0], sizes = [16, 128], strides = [1, 1]} : vector<16x192xf32> to vector<16x128xf32>
    %149 = arith.addf %147, %148 : vector<16x128xf32>
    %150 = arith.negf %149 : vector<16x128xf32>
    %151 = math.exp %150 : vector<16x128xf32>
    %cst_31 = arith.constant 1.000000e+00 : f32
    %152 = vector.broadcast %cst_31 : f32 to vector<16x128xf32>
    %153 = arith.addf %152, %151 : vector<16x128xf32>
    %154 = arith.divf %152, %153 : vector<16x128xf32>
    %155 = vector.extract_strided_slice %154 {offsets = [0, 0], sizes = [16, 64], strides = [1, 1]} : vector<16x128xf32> to vector<16x64xf32>
    %156 = vector.extract_strided_slice %154 {offsets = [0, 64], sizes = [16, 64], strides = [1, 1]} : vector<16x128xf32> to vector<16x64xf32>
    %157 = vector.extract_strided_slice %144 {offsets = [0, 128], sizes = [16, 64], strides = [1, 1]} : vector<16x192xf32> to vector<16x64xf32>
    %158 = vector.extract_strided_slice %146 {offsets = [0, 128], sizes = [16, 64], strides = [1, 1]} : vector<16x192xf32> to vector<16x64xf32>
    %159 = arith.addf %158, %3 : vector<16x64xf32>
    %160 = arith.mulf %155, %159 : vector<16x64xf32>
    %161 = arith.addf %157, %160 : vector<16x64xf32>
    %162 = math.tanh %161 : vector<16x64xf32>
    %163 = arith.subf %142, %162 : vector<16x64xf32>
    %164 = arith.mulf %156, %163 : vector<16x64xf32>
    %165 = arith.addf %162, %164 : vector<16x64xf32>
    %c7 = arith.constant 7 : index
    %c0_32 = arith.constant 0 : index
    %c0_33 = arith.constant 0 : index
    %166 = vector.load %arg1[%c7, %c0_32, %c0_33] : memref<28x16x192xf32, #tpu.memory_space<vmem>>, vector<1x16x192xf32>
    %167 = vector.shape_cast %166 : vector<1x16x192xf32> to vector<16x192xf32>
    %168 = arith.truncf %165 : vector<16x64xf32> to vector<16x64xbf16>
    %cst_34 = arith.constant dense<0.000000e+00> : vector<16x192xf32>
    %169 = tpu.matmul %168, %0, %cst_34 {dimension_numbers = #tpu.dot_dimension_numbers<[1], [0], [0], [1], [0, 0, 1, 1], [], []>} : vector<16x64xbf16>, vector<64x192xbf16>, vector<16x192xf32> -> vector<16x192xf32>
    %170 = vector.extract_strided_slice %167 {offsets = [0, 0], sizes = [16, 128], strides = [1, 1]} : vector<16x192xf32> to vector<16x128xf32>
    %171 = vector.extract_strided_slice %169 {offsets = [0, 0], sizes = [16, 128], strides = [1, 1]} : vector<16x192xf32> to vector<16x128xf32>
    %172 = arith.addf %170, %171 : vector<16x128xf32>
    %173 = arith.negf %172 : vector<16x128xf32>
    %174 = math.exp %173 : vector<16x128xf32>
    %cst_35 = arith.constant 1.000000e+00 : f32
    %175 = vector.broadcast %cst_35 : f32 to vector<16x128xf32>
    %176 = arith.addf %175, %174 : vector<16x128xf32>
    %177 = arith.divf %175, %176 : vector<16x128xf32>
    %178 = vector.extract_strided_slice %177 {offsets = [0, 0], sizes = [16, 64], strides = [1, 1]} : vector<16x128xf32> to vector<16x64xf32>
    %179 = vector.extract_strided_slice %177 {offsets = [0, 64], sizes = [16, 64], strides = [1, 1]} : vector<16x128xf32> to vector<16x64xf32>
    %180 = vector.extract_strided_slice %167 {offsets = [0, 128], sizes = [16, 64], strides = [1, 1]} : vector<16x192xf32> to vector<16x64xf32>
    %181 = vector.extract_strided_slice %169 {offsets = [0, 128], sizes = [16, 64], strides = [1, 1]} : vector<16x192xf32> to vector<16x64xf32>
    %182 = arith.addf %181, %3 : vector<16x64xf32>
    %183 = arith.mulf %178, %182 : vector<16x64xf32>
    %184 = arith.addf %180, %183 : vector<16x64xf32>
    %185 = math.tanh %184 : vector<16x64xf32>
    %186 = arith.subf %165, %185 : vector<16x64xf32>
    %187 = arith.mulf %179, %186 : vector<16x64xf32>
    %188 = arith.addf %185, %187 : vector<16x64xf32>
    %c8 = arith.constant 8 : index
    %c0_36 = arith.constant 0 : index
    %c0_37 = arith.constant 0 : index
    %189 = vector.load %arg1[%c8, %c0_36, %c0_37] : memref<28x16x192xf32, #tpu.memory_space<vmem>>, vector<1x16x192xf32>
    %190 = vector.shape_cast %189 : vector<1x16x192xf32> to vector<16x192xf32>
    %191 = arith.truncf %188 : vector<16x64xf32> to vector<16x64xbf16>
    %cst_38 = arith.constant dense<0.000000e+00> : vector<16x192xf32>
    %192 = tpu.matmul %191, %0, %cst_38 {dimension_numbers = #tpu.dot_dimension_numbers<[1], [0], [0], [1], [0, 0, 1, 1], [], []>} : vector<16x64xbf16>, vector<64x192xbf16>, vector<16x192xf32> -> vector<16x192xf32>
    %193 = vector.extract_strided_slice %190 {offsets = [0, 0], sizes = [16, 128], strides = [1, 1]} : vector<16x192xf32> to vector<16x128xf32>
    %194 = vector.extract_strided_slice %192 {offsets = [0, 0], sizes = [16, 128], strides = [1, 1]} : vector<16x192xf32> to vector<16x128xf32>
    %195 = arith.addf %193, %194 : vector<16x128xf32>
    %196 = arith.negf %195 : vector<16x128xf32>
    %197 = math.exp %196 : vector<16x128xf32>
    %cst_39 = arith.constant 1.000000e+00 : f32
    %198 = vector.broadcast %cst_39 : f32 to vector<16x128xf32>
    %199 = arith.addf %198, %197 : vector<16x128xf32>
    %200 = arith.divf %198, %199 : vector<16x128xf32>
    %201 = vector.extract_strided_slice %200 {offsets = [0, 0], sizes = [16, 64], strides = [1, 1]} : vector<16x128xf32> to vector<16x64xf32>
    %202 = vector.extract_strided_slice %200 {offsets = [0, 64], sizes = [16, 64], strides = [1, 1]} : vector<16x128xf32> to vector<16x64xf32>
    %203 = vector.extract_strided_slice %190 {offsets = [0, 128], sizes = [16, 64], strides = [1, 1]} : vector<16x192xf32> to vector<16x64xf32>
    %204 = vector.extract_strided_slice %192 {offsets = [0, 128], sizes = [16, 64], strides = [1, 1]} : vector<16x192xf32> to vector<16x64xf32>
    %205 = arith.addf %204, %3 : vector<16x64xf32>
    %206 = arith.mulf %201, %205 : vector<16x64xf32>
    %207 = arith.addf %203, %206 : vector<16x64xf32>
    %208 = math.tanh %207 : vector<16x64xf32>
    %209 = arith.subf %188, %208 : vector<16x64xf32>
    %210 = arith.mulf %202, %209 : vector<16x64xf32>
    %211 = arith.addf %208, %210 : vector<16x64xf32>
    %c9 = arith.constant 9 : index
    %c0_40 = arith.constant 0 : index
    %c0_41 = arith.constant 0 : index
    %212 = vector.load %arg1[%c9, %c0_40, %c0_41] : memref<28x16x192xf32, #tpu.memory_space<vmem>>, vector<1x16x192xf32>
    %213 = vector.shape_cast %212 : vector<1x16x192xf32> to vector<16x192xf32>
    %214 = arith.truncf %211 : vector<16x64xf32> to vector<16x64xbf16>
    %cst_42 = arith.constant dense<0.000000e+00> : vector<16x192xf32>
    %215 = tpu.matmul %214, %0, %cst_42 {dimension_numbers = #tpu.dot_dimension_numbers<[1], [0], [0], [1], [0, 0, 1, 1], [], []>} : vector<16x64xbf16>, vector<64x192xbf16>, vector<16x192xf32> -> vector<16x192xf32>
    %216 = vector.extract_strided_slice %213 {offsets = [0, 0], sizes = [16, 128], strides = [1, 1]} : vector<16x192xf32> to vector<16x128xf32>
    %217 = vector.extract_strided_slice %215 {offsets = [0, 0], sizes = [16, 128], strides = [1, 1]} : vector<16x192xf32> to vector<16x128xf32>
    %218 = arith.addf %216, %217 : vector<16x128xf32>
    %219 = arith.negf %218 : vector<16x128xf32>
    %220 = math.exp %219 : vector<16x128xf32>
    %cst_43 = arith.constant 1.000000e+00 : f32
    %221 = vector.broadcast %cst_43 : f32 to vector<16x128xf32>
    %222 = arith.addf %221, %220 : vector<16x128xf32>
    %223 = arith.divf %221, %222 : vector<16x128xf32>
    %224 = vector.extract_strided_slice %223 {offsets = [0, 0], sizes = [16, 64], strides = [1, 1]} : vector<16x128xf32> to vector<16x64xf32>
    %225 = vector.extract_strided_slice %223 {offsets = [0, 64], sizes = [16, 64], strides = [1, 1]} : vector<16x128xf32> to vector<16x64xf32>
    %226 = vector.extract_strided_slice %213 {offsets = [0, 128], sizes = [16, 64], strides = [1, 1]} : vector<16x192xf32> to vector<16x64xf32>
    %227 = vector.extract_strided_slice %215 {offsets = [0, 128], sizes = [16, 64], strides = [1, 1]} : vector<16x192xf32> to vector<16x64xf32>
    %228 = arith.addf %227, %3 : vector<16x64xf32>
    %229 = arith.mulf %224, %228 : vector<16x64xf32>
    %230 = arith.addf %226, %229 : vector<16x64xf32>
    %231 = math.tanh %230 : vector<16x64xf32>
    %232 = arith.subf %211, %231 : vector<16x64xf32>
    %233 = arith.mulf %225, %232 : vector<16x64xf32>
    %234 = arith.addf %231, %233 : vector<16x64xf32>
    %c10 = arith.constant 10 : index
    %c0_44 = arith.constant 0 : index
    %c0_45 = arith.constant 0 : index
    %235 = vector.load %arg1[%c10, %c0_44, %c0_45] : memref<28x16x192xf32, #tpu.memory_space<vmem>>, vector<1x16x192xf32>
    %236 = vector.shape_cast %235 : vector<1x16x192xf32> to vector<16x192xf32>
    %237 = arith.truncf %234 : vector<16x64xf32> to vector<16x64xbf16>
    %cst_46 = arith.constant dense<0.000000e+00> : vector<16x192xf32>
    %238 = tpu.matmul %237, %0, %cst_46 {dimension_numbers = #tpu.dot_dimension_numbers<[1], [0], [0], [1], [0, 0, 1, 1], [], []>} : vector<16x64xbf16>, vector<64x192xbf16>, vector<16x192xf32> -> vector<16x192xf32>
    %239 = vector.extract_strided_slice %236 {offsets = [0, 0], sizes = [16, 128], strides = [1, 1]} : vector<16x192xf32> to vector<16x128xf32>
    %240 = vector.extract_strided_slice %238 {offsets = [0, 0], sizes = [16, 128], strides = [1, 1]} : vector<16x192xf32> to vector<16x128xf32>
    %241 = arith.addf %239, %240 : vector<16x128xf32>
    %242 = arith.negf %241 : vector<16x128xf32>
    %243 = math.exp %242 : vector<16x128xf32>
    %cst_47 = arith.constant 1.000000e+00 : f32
    %244 = vector.broadcast %cst_47 : f32 to vector<16x128xf32>
    %245 = arith.addf %244, %243 : vector<16x128xf32>
    %246 = arith.divf %244, %245 : vector<16x128xf32>
    %247 = vector.extract_strided_slice %246 {offsets = [0, 0], sizes = [16, 64], strides = [1, 1]} : vector<16x128xf32> to vector<16x64xf32>
    %248 = vector.extract_strided_slice %246 {offsets = [0, 64], sizes = [16, 64], strides = [1, 1]} : vector<16x128xf32> to vector<16x64xf32>
    %249 = vector.extract_strided_slice %236 {offsets = [0, 128], sizes = [16, 64], strides = [1, 1]} : vector<16x192xf32> to vector<16x64xf32>
    %250 = vector.extract_strided_slice %238 {offsets = [0, 128], sizes = [16, 64], strides = [1, 1]} : vector<16x192xf32> to vector<16x64xf32>
    %251 = arith.addf %250, %3 : vector<16x64xf32>
    %252 = arith.mulf %247, %251 : vector<16x64xf32>
    %253 = arith.addf %249, %252 : vector<16x64xf32>
    %254 = math.tanh %253 : vector<16x64xf32>
    %255 = arith.subf %234, %254 : vector<16x64xf32>
    %256 = arith.mulf %248, %255 : vector<16x64xf32>
    %257 = arith.addf %254, %256 : vector<16x64xf32>
    %c11 = arith.constant 11 : index
    %c0_48 = arith.constant 0 : index
    %c0_49 = arith.constant 0 : index
    %258 = vector.load %arg1[%c11, %c0_48, %c0_49] : memref<28x16x192xf32, #tpu.memory_space<vmem>>, vector<1x16x192xf32>
    %259 = vector.shape_cast %258 : vector<1x16x192xf32> to vector<16x192xf32>
    %260 = arith.truncf %257 : vector<16x64xf32> to vector<16x64xbf16>
    %cst_50 = arith.constant dense<0.000000e+00> : vector<16x192xf32>
    %261 = tpu.matmul %260, %0, %cst_50 {dimension_numbers = #tpu.dot_dimension_numbers<[1], [0], [0], [1], [0, 0, 1, 1], [], []>} : vector<16x64xbf16>, vector<64x192xbf16>, vector<16x192xf32> -> vector<16x192xf32>
    %262 = vector.extract_strided_slice %259 {offsets = [0, 0], sizes = [16, 128], strides = [1, 1]} : vector<16x192xf32> to vector<16x128xf32>
    %263 = vector.extract_strided_slice %261 {offsets = [0, 0], sizes = [16, 128], strides = [1, 1]} : vector<16x192xf32> to vector<16x128xf32>
    %264 = arith.addf %262, %263 : vector<16x128xf32>
    %265 = arith.negf %264 : vector<16x128xf32>
    %266 = math.exp %265 : vector<16x128xf32>
    %cst_51 = arith.constant 1.000000e+00 : f32
    %267 = vector.broadcast %cst_51 : f32 to vector<16x128xf32>
    %268 = arith.addf %267, %266 : vector<16x128xf32>
    %269 = arith.divf %267, %268 : vector<16x128xf32>
    %270 = vector.extract_strided_slice %269 {offsets = [0, 0], sizes = [16, 64], strides = [1, 1]} : vector<16x128xf32> to vector<16x64xf32>
    %271 = vector.extract_strided_slice %269 {offsets = [0, 64], sizes = [16, 64], strides = [1, 1]} : vector<16x128xf32> to vector<16x64xf32>
    %272 = vector.extract_strided_slice %259 {offsets = [0, 128], sizes = [16, 64], strides = [1, 1]} : vector<16x192xf32> to vector<16x64xf32>
    %273 = vector.extract_strided_slice %261 {offsets = [0, 128], sizes = [16, 64], strides = [1, 1]} : vector<16x192xf32> to vector<16x64xf32>
    %274 = arith.addf %273, %3 : vector<16x64xf32>
    %275 = arith.mulf %270, %274 : vector<16x64xf32>
    %276 = arith.addf %272, %275 : vector<16x64xf32>
    %277 = math.tanh %276 : vector<16x64xf32>
    %278 = arith.subf %257, %277 : vector<16x64xf32>
    %279 = arith.mulf %271, %278 : vector<16x64xf32>
    %280 = arith.addf %277, %279 : vector<16x64xf32>
    %c12 = arith.constant 12 : index
    %c0_52 = arith.constant 0 : index
    %c0_53 = arith.constant 0 : index
    %281 = vector.load %arg1[%c12, %c0_52, %c0_53] : memref<28x16x192xf32, #tpu.memory_space<vmem>>, vector<1x16x192xf32>
    %282 = vector.shape_cast %281 : vector<1x16x192xf32> to vector<16x192xf32>
    %283 = arith.truncf %280 : vector<16x64xf32> to vector<16x64xbf16>
    %cst_54 = arith.constant dense<0.000000e+00> : vector<16x192xf32>
    %284 = tpu.matmul %283, %0, %cst_54 {dimension_numbers = #tpu.dot_dimension_numbers<[1], [0], [0], [1], [0, 0, 1, 1], [], []>} : vector<16x64xbf16>, vector<64x192xbf16>, vector<16x192xf32> -> vector<16x192xf32>
    %285 = vector.extract_strided_slice %282 {offsets = [0, 0], sizes = [16, 128], strides = [1, 1]} : vector<16x192xf32> to vector<16x128xf32>
    %286 = vector.extract_strided_slice %284 {offsets = [0, 0], sizes = [16, 128], strides = [1, 1]} : vector<16x192xf32> to vector<16x128xf32>
    %287 = arith.addf %285, %286 : vector<16x128xf32>
    %288 = arith.negf %287 : vector<16x128xf32>
    %289 = math.exp %288 : vector<16x128xf32>
    %cst_55 = arith.constant 1.000000e+00 : f32
    %290 = vector.broadcast %cst_55 : f32 to vector<16x128xf32>
    %291 = arith.addf %290, %289 : vector<16x128xf32>
    %292 = arith.divf %290, %291 : vector<16x128xf32>
    %293 = vector.extract_strided_slice %292 {offsets = [0, 0], sizes = [16, 64], strides = [1, 1]} : vector<16x128xf32> to vector<16x64xf32>
    %294 = vector.extract_strided_slice %292 {offsets = [0, 64], sizes = [16, 64], strides = [1, 1]} : vector<16x128xf32> to vector<16x64xf32>
    %295 = vector.extract_strided_slice %282 {offsets = [0, 128], sizes = [16, 64], strides = [1, 1]} : vector<16x192xf32> to vector<16x64xf32>
    %296 = vector.extract_strided_slice %284 {offsets = [0, 128], sizes = [16, 64], strides = [1, 1]} : vector<16x192xf32> to vector<16x64xf32>
    %297 = arith.addf %296, %3 : vector<16x64xf32>
    %298 = arith.mulf %293, %297 : vector<16x64xf32>
    %299 = arith.addf %295, %298 : vector<16x64xf32>
    %300 = math.tanh %299 : vector<16x64xf32>
    %301 = arith.subf %280, %300 : vector<16x64xf32>
    %302 = arith.mulf %294, %301 : vector<16x64xf32>
    %303 = arith.addf %300, %302 : vector<16x64xf32>
    %c13 = arith.constant 13 : index
    %c0_56 = arith.constant 0 : index
    %c0_57 = arith.constant 0 : index
    %304 = vector.load %arg1[%c13, %c0_56, %c0_57] : memref<28x16x192xf32, #tpu.memory_space<vmem>>, vector<1x16x192xf32>
    %305 = vector.shape_cast %304 : vector<1x16x192xf32> to vector<16x192xf32>
    %306 = arith.truncf %303 : vector<16x64xf32> to vector<16x64xbf16>
    %cst_58 = arith.constant dense<0.000000e+00> : vector<16x192xf32>
    %307 = tpu.matmul %306, %0, %cst_58 {dimension_numbers = #tpu.dot_dimension_numbers<[1], [0], [0], [1], [0, 0, 1, 1], [], []>} : vector<16x64xbf16>, vector<64x192xbf16>, vector<16x192xf32> -> vector<16x192xf32>
    %308 = vector.extract_strided_slice %305 {offsets = [0, 0], sizes = [16, 128], strides = [1, 1]} : vector<16x192xf32> to vector<16x128xf32>
    %309 = vector.extract_strided_slice %307 {offsets = [0, 0], sizes = [16, 128], strides = [1, 1]} : vector<16x192xf32> to vector<16x128xf32>
    %310 = arith.addf %308, %309 : vector<16x128xf32>
    %311 = arith.negf %310 : vector<16x128xf32>
    %312 = math.exp %311 : vector<16x128xf32>
    %cst_59 = arith.constant 1.000000e+00 : f32
    %313 = vector.broadcast %cst_59 : f32 to vector<16x128xf32>
    %314 = arith.addf %313, %312 : vector<16x128xf32>
    %315 = arith.divf %313, %314 : vector<16x128xf32>
    %316 = vector.extract_strided_slice %315 {offsets = [0, 0], sizes = [16, 64], strides = [1, 1]} : vector<16x128xf32> to vector<16x64xf32>
    %317 = vector.extract_strided_slice %315 {offsets = [0, 64], sizes = [16, 64], strides = [1, 1]} : vector<16x128xf32> to vector<16x64xf32>
    %318 = vector.extract_strided_slice %305 {offsets = [0, 128], sizes = [16, 64], strides = [1, 1]} : vector<16x192xf32> to vector<16x64xf32>
    %319 = vector.extract_strided_slice %307 {offsets = [0, 128], sizes = [16, 64], strides = [1, 1]} : vector<16x192xf32> to vector<16x64xf32>
    %320 = arith.addf %319, %3 : vector<16x64xf32>
    %321 = arith.mulf %316, %320 : vector<16x64xf32>
    %322 = arith.addf %318, %321 : vector<16x64xf32>
    %323 = math.tanh %322 : vector<16x64xf32>
    %324 = arith.subf %303, %323 : vector<16x64xf32>
    %325 = arith.mulf %317, %324 : vector<16x64xf32>
    %326 = arith.addf %323, %325 : vector<16x64xf32>
    %c14 = arith.constant 14 : index
    %c0_60 = arith.constant 0 : index
    %c0_61 = arith.constant 0 : index
    %327 = vector.load %arg1[%c14, %c0_60, %c0_61] : memref<28x16x192xf32, #tpu.memory_space<vmem>>, vector<1x16x192xf32>
    %328 = vector.shape_cast %327 : vector<1x16x192xf32> to vector<16x192xf32>
    %329 = arith.truncf %326 : vector<16x64xf32> to vector<16x64xbf16>
    %cst_62 = arith.constant dense<0.000000e+00> : vector<16x192xf32>
    %330 = tpu.matmul %329, %0, %cst_62 {dimension_numbers = #tpu.dot_dimension_numbers<[1], [0], [0], [1], [0, 0, 1, 1], [], []>} : vector<16x64xbf16>, vector<64x192xbf16>, vector<16x192xf32> -> vector<16x192xf32>
    %331 = vector.extract_strided_slice %328 {offsets = [0, 0], sizes = [16, 128], strides = [1, 1]} : vector<16x192xf32> to vector<16x128xf32>
    %332 = vector.extract_strided_slice %330 {offsets = [0, 0], sizes = [16, 128], strides = [1, 1]} : vector<16x192xf32> to vector<16x128xf32>
    %333 = arith.addf %331, %332 : vector<16x128xf32>
    %334 = arith.negf %333 : vector<16x128xf32>
    %335 = math.exp %334 : vector<16x128xf32>
    %cst_63 = arith.constant 1.000000e+00 : f32
    %336 = vector.broadcast %cst_63 : f32 to vector<16x128xf32>
    %337 = arith.addf %336, %335 : vector<16x128xf32>
    %338 = arith.divf %336, %337 : vector<16x128xf32>
    %339 = vector.extract_strided_slice %338 {offsets = [0, 0], sizes = [16, 64], strides = [1, 1]} : vector<16x128xf32> to vector<16x64xf32>
    %340 = vector.extract_strided_slice %338 {offsets = [0, 64], sizes = [16, 64], strides = [1, 1]} : vector<16x128xf32> to vector<16x64xf32>
    %341 = vector.extract_strided_slice %328 {offsets = [0, 128], sizes = [16, 64], strides = [1, 1]} : vector<16x192xf32> to vector<16x64xf32>
    %342 = vector.extract_strided_slice %330 {offsets = [0, 128], sizes = [16, 64], strides = [1, 1]} : vector<16x192xf32> to vector<16x64xf32>
    %343 = arith.addf %342, %3 : vector<16x64xf32>
    %344 = arith.mulf %339, %343 : vector<16x64xf32>
    %345 = arith.addf %341, %344 : vector<16x64xf32>
    %346 = math.tanh %345 : vector<16x64xf32>
    %347 = arith.subf %326, %346 : vector<16x64xf32>
    %348 = arith.mulf %340, %347 : vector<16x64xf32>
    %349 = arith.addf %346, %348 : vector<16x64xf32>
    %c15 = arith.constant 15 : index
    %c0_64 = arith.constant 0 : index
    %c0_65 = arith.constant 0 : index
    %350 = vector.load %arg1[%c15, %c0_64, %c0_65] : memref<28x16x192xf32, #tpu.memory_space<vmem>>, vector<1x16x192xf32>
    %351 = vector.shape_cast %350 : vector<1x16x192xf32> to vector<16x192xf32>
    %352 = arith.truncf %349 : vector<16x64xf32> to vector<16x64xbf16>
    %cst_66 = arith.constant dense<0.000000e+00> : vector<16x192xf32>
    %353 = tpu.matmul %352, %0, %cst_66 {dimension_numbers = #tpu.dot_dimension_numbers<[1], [0], [0], [1], [0, 0, 1, 1], [], []>} : vector<16x64xbf16>, vector<64x192xbf16>, vector<16x192xf32> -> vector<16x192xf32>
    %354 = vector.extract_strided_slice %351 {offsets = [0, 0], sizes = [16, 128], strides = [1, 1]} : vector<16x192xf32> to vector<16x128xf32>
    %355 = vector.extract_strided_slice %353 {offsets = [0, 0], sizes = [16, 128], strides = [1, 1]} : vector<16x192xf32> to vector<16x128xf32>
    %356 = arith.addf %354, %355 : vector<16x128xf32>
    %357 = arith.negf %356 : vector<16x128xf32>
    %358 = math.exp %357 : vector<16x128xf32>
    %cst_67 = arith.constant 1.000000e+00 : f32
    %359 = vector.broadcast %cst_67 : f32 to vector<16x128xf32>
    %360 = arith.addf %359, %358 : vector<16x128xf32>
    %361 = arith.divf %359, %360 : vector<16x128xf32>
    %362 = vector.extract_strided_slice %361 {offsets = [0, 0], sizes = [16, 64], strides = [1, 1]} : vector<16x128xf32> to vector<16x64xf32>
    %363 = vector.extract_strided_slice %361 {offsets = [0, 64], sizes = [16, 64], strides = [1, 1]} : vector<16x128xf32> to vector<16x64xf32>
    %364 = vector.extract_strided_slice %351 {offsets = [0, 128], sizes = [16, 64], strides = [1, 1]} : vector<16x192xf32> to vector<16x64xf32>
    %365 = vector.extract_strided_slice %353 {offsets = [0, 128], sizes = [16, 64], strides = [1, 1]} : vector<16x192xf32> to vector<16x64xf32>
    %366 = arith.addf %365, %3 : vector<16x64xf32>
    %367 = arith.mulf %362, %366 : vector<16x64xf32>
    %368 = arith.addf %364, %367 : vector<16x64xf32>
    %369 = math.tanh %368 : vector<16x64xf32>
    %370 = arith.subf %349, %369 : vector<16x64xf32>
    %371 = arith.mulf %363, %370 : vector<16x64xf32>
    %372 = arith.addf %369, %371 : vector<16x64xf32>
    %c16 = arith.constant 16 : index
    %c0_68 = arith.constant 0 : index
    %c0_69 = arith.constant 0 : index
    %373 = vector.load %arg1[%c16, %c0_68, %c0_69] : memref<28x16x192xf32, #tpu.memory_space<vmem>>, vector<1x16x192xf32>
    %374 = vector.shape_cast %373 : vector<1x16x192xf32> to vector<16x192xf32>
    %375 = arith.truncf %372 : vector<16x64xf32> to vector<16x64xbf16>
    %cst_70 = arith.constant dense<0.000000e+00> : vector<16x192xf32>
    %376 = tpu.matmul %375, %0, %cst_70 {dimension_numbers = #tpu.dot_dimension_numbers<[1], [0], [0], [1], [0, 0, 1, 1], [], []>} : vector<16x64xbf16>, vector<64x192xbf16>, vector<16x192xf32> -> vector<16x192xf32>
    %377 = vector.extract_strided_slice %374 {offsets = [0, 0], sizes = [16, 128], strides = [1, 1]} : vector<16x192xf32> to vector<16x128xf32>
    %378 = vector.extract_strided_slice %376 {offsets = [0, 0], sizes = [16, 128], strides = [1, 1]} : vector<16x192xf32> to vector<16x128xf32>
    %379 = arith.addf %377, %378 : vector<16x128xf32>
    %380 = arith.negf %379 : vector<16x128xf32>
    %381 = math.exp %380 : vector<16x128xf32>
    %cst_71 = arith.constant 1.000000e+00 : f32
    %382 = vector.broadcast %cst_71 : f32 to vector<16x128xf32>
    %383 = arith.addf %382, %381 : vector<16x128xf32>
    %384 = arith.divf %382, %383 : vector<16x128xf32>
    %385 = vector.extract_strided_slice %384 {offsets = [0, 0], sizes = [16, 64], strides = [1, 1]} : vector<16x128xf32> to vector<16x64xf32>
    %386 = vector.extract_strided_slice %384 {offsets = [0, 64], sizes = [16, 64], strides = [1, 1]} : vector<16x128xf32> to vector<16x64xf32>
    %387 = vector.extract_strided_slice %374 {offsets = [0, 128], sizes = [16, 64], strides = [1, 1]} : vector<16x192xf32> to vector<16x64xf32>
    %388 = vector.extract_strided_slice %376 {offsets = [0, 128], sizes = [16, 64], strides = [1, 1]} : vector<16x192xf32> to vector<16x64xf32>
    %389 = arith.addf %388, %3 : vector<16x64xf32>
    %390 = arith.mulf %385, %389 : vector<16x64xf32>
    %391 = arith.addf %387, %390 : vector<16x64xf32>
    %392 = math.tanh %391 : vector<16x64xf32>
    %393 = arith.subf %372, %392 : vector<16x64xf32>
    %394 = arith.mulf %386, %393 : vector<16x64xf32>
    %395 = arith.addf %392, %394 : vector<16x64xf32>
    %c17 = arith.constant 17 : index
    %c0_72 = arith.constant 0 : index
    %c0_73 = arith.constant 0 : index
    %396 = vector.load %arg1[%c17, %c0_72, %c0_73] : memref<28x16x192xf32, #tpu.memory_space<vmem>>, vector<1x16x192xf32>
    %397 = vector.shape_cast %396 : vector<1x16x192xf32> to vector<16x192xf32>
    %398 = arith.truncf %395 : vector<16x64xf32> to vector<16x64xbf16>
    %cst_74 = arith.constant dense<0.000000e+00> : vector<16x192xf32>
    %399 = tpu.matmul %398, %0, %cst_74 {dimension_numbers = #tpu.dot_dimension_numbers<[1], [0], [0], [1], [0, 0, 1, 1], [], []>} : vector<16x64xbf16>, vector<64x192xbf16>, vector<16x192xf32> -> vector<16x192xf32>
    %400 = vector.extract_strided_slice %397 {offsets = [0, 0], sizes = [16, 128], strides = [1, 1]} : vector<16x192xf32> to vector<16x128xf32>
    %401 = vector.extract_strided_slice %399 {offsets = [0, 0], sizes = [16, 128], strides = [1, 1]} : vector<16x192xf32> to vector<16x128xf32>
    %402 = arith.addf %400, %401 : vector<16x128xf32>
    %403 = arith.negf %402 : vector<16x128xf32>
    %404 = math.exp %403 : vector<16x128xf32>
    %cst_75 = arith.constant 1.000000e+00 : f32
    %405 = vector.broadcast %cst_75 : f32 to vector<16x128xf32>
    %406 = arith.addf %405, %404 : vector<16x128xf32>
    %407 = arith.divf %405, %406 : vector<16x128xf32>
    %408 = vector.extract_strided_slice %407 {offsets = [0, 0], sizes = [16, 64], strides = [1, 1]} : vector<16x128xf32> to vector<16x64xf32>
    %409 = vector.extract_strided_slice %407 {offsets = [0, 64], sizes = [16, 64], strides = [1, 1]} : vector<16x128xf32> to vector<16x64xf32>
    %410 = vector.extract_strided_slice %397 {offsets = [0, 128], sizes = [16, 64], strides = [1, 1]} : vector<16x192xf32> to vector<16x64xf32>
    %411 = vector.extract_strided_slice %399 {offsets = [0, 128], sizes = [16, 64], strides = [1, 1]} : vector<16x192xf32> to vector<16x64xf32>
    %412 = arith.addf %411, %3 : vector<16x64xf32>
    %413 = arith.mulf %408, %412 : vector<16x64xf32>
    %414 = arith.addf %410, %413 : vector<16x64xf32>
    %415 = math.tanh %414 : vector<16x64xf32>
    %416 = arith.subf %395, %415 : vector<16x64xf32>
    %417 = arith.mulf %409, %416 : vector<16x64xf32>
    %418 = arith.addf %415, %417 : vector<16x64xf32>
    %c18 = arith.constant 18 : index
    %c0_76 = arith.constant 0 : index
    %c0_77 = arith.constant 0 : index
    %419 = vector.load %arg1[%c18, %c0_76, %c0_77] : memref<28x16x192xf32, #tpu.memory_space<vmem>>, vector<1x16x192xf32>
    %420 = vector.shape_cast %419 : vector<1x16x192xf32> to vector<16x192xf32>
    %421 = arith.truncf %418 : vector<16x64xf32> to vector<16x64xbf16>
    %cst_78 = arith.constant dense<0.000000e+00> : vector<16x192xf32>
    %422 = tpu.matmul %421, %0, %cst_78 {dimension_numbers = #tpu.dot_dimension_numbers<[1], [0], [0], [1], [0, 0, 1, 1], [], []>} : vector<16x64xbf16>, vector<64x192xbf16>, vector<16x192xf32> -> vector<16x192xf32>
    %423 = vector.extract_strided_slice %420 {offsets = [0, 0], sizes = [16, 128], strides = [1, 1]} : vector<16x192xf32> to vector<16x128xf32>
    %424 = vector.extract_strided_slice %422 {offsets = [0, 0], sizes = [16, 128], strides = [1, 1]} : vector<16x192xf32> to vector<16x128xf32>
    %425 = arith.addf %423, %424 : vector<16x128xf32>
    %426 = arith.negf %425 : vector<16x128xf32>
    %427 = math.exp %426 : vector<16x128xf32>
    %cst_79 = arith.constant 1.000000e+00 : f32
    %428 = vector.broadcast %cst_79 : f32 to vector<16x128xf32>
    %429 = arith.addf %428, %427 : vector<16x128xf32>
    %430 = arith.divf %428, %429 : vector<16x128xf32>
    %431 = vector.extract_strided_slice %430 {offsets = [0, 0], sizes = [16, 64], strides = [1, 1]} : vector<16x128xf32> to vector<16x64xf32>
    %432 = vector.extract_strided_slice %430 {offsets = [0, 64], sizes = [16, 64], strides = [1, 1]} : vector<16x128xf32> to vector<16x64xf32>
    %433 = vector.extract_strided_slice %420 {offsets = [0, 128], sizes = [16, 64], strides = [1, 1]} : vector<16x192xf32> to vector<16x64xf32>
    %434 = vector.extract_strided_slice %422 {offsets = [0, 128], sizes = [16, 64], strides = [1, 1]} : vector<16x192xf32> to vector<16x64xf32>
    %435 = arith.addf %434, %3 : vector<16x64xf32>
    %436 = arith.mulf %431, %435 : vector<16x64xf32>
    %437 = arith.addf %433, %436 : vector<16x64xf32>
    %438 = math.tanh %437 : vector<16x64xf32>
    %439 = arith.subf %418, %438 : vector<16x64xf32>
    %440 = arith.mulf %432, %439 : vector<16x64xf32>
    %441 = arith.addf %438, %440 : vector<16x64xf32>
    %c19 = arith.constant 19 : index
    %c0_80 = arith.constant 0 : index
    %c0_81 = arith.constant 0 : index
    %442 = vector.load %arg1[%c19, %c0_80, %c0_81] : memref<28x16x192xf32, #tpu.memory_space<vmem>>, vector<1x16x192xf32>
    %443 = vector.shape_cast %442 : vector<1x16x192xf32> to vector<16x192xf32>
    %444 = arith.truncf %441 : vector<16x64xf32> to vector<16x64xbf16>
    %cst_82 = arith.constant dense<0.000000e+00> : vector<16x192xf32>
    %445 = tpu.matmul %444, %0, %cst_82 {dimension_numbers = #tpu.dot_dimension_numbers<[1], [0], [0], [1], [0, 0, 1, 1], [], []>} : vector<16x64xbf16>, vector<64x192xbf16>, vector<16x192xf32> -> vector<16x192xf32>
    %446 = vector.extract_strided_slice %443 {offsets = [0, 0], sizes = [16, 128], strides = [1, 1]} : vector<16x192xf32> to vector<16x128xf32>
    %447 = vector.extract_strided_slice %445 {offsets = [0, 0], sizes = [16, 128], strides = [1, 1]} : vector<16x192xf32> to vector<16x128xf32>
    %448 = arith.addf %446, %447 : vector<16x128xf32>
    %449 = arith.negf %448 : vector<16x128xf32>
    %450 = math.exp %449 : vector<16x128xf32>
    %cst_83 = arith.constant 1.000000e+00 : f32
    %451 = vector.broadcast %cst_83 : f32 to vector<16x128xf32>
    %452 = arith.addf %451, %450 : vector<16x128xf32>
    %453 = arith.divf %451, %452 : vector<16x128xf32>
    %454 = vector.extract_strided_slice %453 {offsets = [0, 0], sizes = [16, 64], strides = [1, 1]} : vector<16x128xf32> to vector<16x64xf32>
    %455 = vector.extract_strided_slice %453 {offsets = [0, 64], sizes = [16, 64], strides = [1, 1]} : vector<16x128xf32> to vector<16x64xf32>
    %456 = vector.extract_strided_slice %443 {offsets = [0, 128], sizes = [16, 64], strides = [1, 1]} : vector<16x192xf32> to vector<16x64xf32>
    %457 = vector.extract_strided_slice %445 {offsets = [0, 128], sizes = [16, 64], strides = [1, 1]} : vector<16x192xf32> to vector<16x64xf32>
    %458 = arith.addf %457, %3 : vector<16x64xf32>
    %459 = arith.mulf %454, %458 : vector<16x64xf32>
    %460 = arith.addf %456, %459 : vector<16x64xf32>
    %461 = math.tanh %460 : vector<16x64xf32>
    %462 = arith.subf %441, %461 : vector<16x64xf32>
    %463 = arith.mulf %455, %462 : vector<16x64xf32>
    %464 = arith.addf %461, %463 : vector<16x64xf32>
    %c20 = arith.constant 20 : index
    %c0_84 = arith.constant 0 : index
    %c0_85 = arith.constant 0 : index
    %465 = vector.load %arg1[%c20, %c0_84, %c0_85] : memref<28x16x192xf32, #tpu.memory_space<vmem>>, vector<1x16x192xf32>
    %466 = vector.shape_cast %465 : vector<1x16x192xf32> to vector<16x192xf32>
    %467 = arith.truncf %464 : vector<16x64xf32> to vector<16x64xbf16>
    %cst_86 = arith.constant dense<0.000000e+00> : vector<16x192xf32>
    %468 = tpu.matmul %467, %0, %cst_86 {dimension_numbers = #tpu.dot_dimension_numbers<[1], [0], [0], [1], [0, 0, 1, 1], [], []>} : vector<16x64xbf16>, vector<64x192xbf16>, vector<16x192xf32> -> vector<16x192xf32>
    %469 = vector.extract_strided_slice %466 {offsets = [0, 0], sizes = [16, 128], strides = [1, 1]} : vector<16x192xf32> to vector<16x128xf32>
    %470 = vector.extract_strided_slice %468 {offsets = [0, 0], sizes = [16, 128], strides = [1, 1]} : vector<16x192xf32> to vector<16x128xf32>
    %471 = arith.addf %469, %470 : vector<16x128xf32>
    %472 = arith.negf %471 : vector<16x128xf32>
    %473 = math.exp %472 : vector<16x128xf32>
    %cst_87 = arith.constant 1.000000e+00 : f32
    %474 = vector.broadcast %cst_87 : f32 to vector<16x128xf32>
    %475 = arith.addf %474, %473 : vector<16x128xf32>
    %476 = arith.divf %474, %475 : vector<16x128xf32>
    %477 = vector.extract_strided_slice %476 {offsets = [0, 0], sizes = [16, 64], strides = [1, 1]} : vector<16x128xf32> to vector<16x64xf32>
    %478 = vector.extract_strided_slice %476 {offsets = [0, 64], sizes = [16, 64], strides = [1, 1]} : vector<16x128xf32> to vector<16x64xf32>
    %479 = vector.extract_strided_slice %466 {offsets = [0, 128], sizes = [16, 64], strides = [1, 1]} : vector<16x192xf32> to vector<16x64xf32>
    %480 = vector.extract_strided_slice %468 {offsets = [0, 128], sizes = [16, 64], strides = [1, 1]} : vector<16x192xf32> to vector<16x64xf32>
    %481 = arith.addf %480, %3 : vector<16x64xf32>
    %482 = arith.mulf %477, %481 : vector<16x64xf32>
    %483 = arith.addf %479, %482 : vector<16x64xf32>
    %484 = math.tanh %483 : vector<16x64xf32>
    %485 = arith.subf %464, %484 : vector<16x64xf32>
    %486 = arith.mulf %478, %485 : vector<16x64xf32>
    %487 = arith.addf %484, %486 : vector<16x64xf32>
    %c21 = arith.constant 21 : index
    %c0_88 = arith.constant 0 : index
    %c0_89 = arith.constant 0 : index
    %488 = vector.load %arg1[%c21, %c0_88, %c0_89] : memref<28x16x192xf32, #tpu.memory_space<vmem>>, vector<1x16x192xf32>
    %489 = vector.shape_cast %488 : vector<1x16x192xf32> to vector<16x192xf32>
    %490 = arith.truncf %487 : vector<16x64xf32> to vector<16x64xbf16>
    %cst_90 = arith.constant dense<0.000000e+00> : vector<16x192xf32>
    %491 = tpu.matmul %490, %0, %cst_90 {dimension_numbers = #tpu.dot_dimension_numbers<[1], [0], [0], [1], [0, 0, 1, 1], [], []>} : vector<16x64xbf16>, vector<64x192xbf16>, vector<16x192xf32> -> vector<16x192xf32>
    %492 = vector.extract_strided_slice %489 {offsets = [0, 0], sizes = [16, 128], strides = [1, 1]} : vector<16x192xf32> to vector<16x128xf32>
    %493 = vector.extract_strided_slice %491 {offsets = [0, 0], sizes = [16, 128], strides = [1, 1]} : vector<16x192xf32> to vector<16x128xf32>
    %494 = arith.addf %492, %493 : vector<16x128xf32>
    %495 = arith.negf %494 : vector<16x128xf32>
    %496 = math.exp %495 : vector<16x128xf32>
    %cst_91 = arith.constant 1.000000e+00 : f32
    %497 = vector.broadcast %cst_91 : f32 to vector<16x128xf32>
    %498 = arith.addf %497, %496 : vector<16x128xf32>
    %499 = arith.divf %497, %498 : vector<16x128xf32>
    %500 = vector.extract_strided_slice %499 {offsets = [0, 0], sizes = [16, 64], strides = [1, 1]} : vector<16x128xf32> to vector<16x64xf32>
    %501 = vector.extract_strided_slice %499 {offsets = [0, 64], sizes = [16, 64], strides = [1, 1]} : vector<16x128xf32> to vector<16x64xf32>
    %502 = vector.extract_strided_slice %489 {offsets = [0, 128], sizes = [16, 64], strides = [1, 1]} : vector<16x192xf32> to vector<16x64xf32>
    %503 = vector.extract_strided_slice %491 {offsets = [0, 128], sizes = [16, 64], strides = [1, 1]} : vector<16x192xf32> to vector<16x64xf32>
    %504 = arith.addf %503, %3 : vector<16x64xf32>
    %505 = arith.mulf %500, %504 : vector<16x64xf32>
    %506 = arith.addf %502, %505 : vector<16x64xf32>
    %507 = math.tanh %506 : vector<16x64xf32>
    %508 = arith.subf %487, %507 : vector<16x64xf32>
    %509 = arith.mulf %501, %508 : vector<16x64xf32>
    %510 = arith.addf %507, %509 : vector<16x64xf32>
    %c22 = arith.constant 22 : index
    %c0_92 = arith.constant 0 : index
    %c0_93 = arith.constant 0 : index
    %511 = vector.load %arg1[%c22, %c0_92, %c0_93] : memref<28x16x192xf32, #tpu.memory_space<vmem>>, vector<1x16x192xf32>
    %512 = vector.shape_cast %511 : vector<1x16x192xf32> to vector<16x192xf32>
    %513 = arith.truncf %510 : vector<16x64xf32> to vector<16x64xbf16>
    %cst_94 = arith.constant dense<0.000000e+00> : vector<16x192xf32>
    %514 = tpu.matmul %513, %0, %cst_94 {dimension_numbers = #tpu.dot_dimension_numbers<[1], [0], [0], [1], [0, 0, 1, 1], [], []>} : vector<16x64xbf16>, vector<64x192xbf16>, vector<16x192xf32> -> vector<16x192xf32>
    %515 = vector.extract_strided_slice %512 {offsets = [0, 0], sizes = [16, 128], strides = [1, 1]} : vector<16x192xf32> to vector<16x128xf32>
    %516 = vector.extract_strided_slice %514 {offsets = [0, 0], sizes = [16, 128], strides = [1, 1]} : vector<16x192xf32> to vector<16x128xf32>
    %517 = arith.addf %515, %516 : vector<16x128xf32>
    %518 = arith.negf %517 : vector<16x128xf32>
    %519 = math.exp %518 : vector<16x128xf32>
    %cst_95 = arith.constant 1.000000e+00 : f32
    %520 = vector.broadcast %cst_95 : f32 to vector<16x128xf32>
    %521 = arith.addf %520, %519 : vector<16x128xf32>
    %522 = arith.divf %520, %521 : vector<16x128xf32>
    %523 = vector.extract_strided_slice %522 {offsets = [0, 0], sizes = [16, 64], strides = [1, 1]} : vector<16x128xf32> to vector<16x64xf32>
    %524 = vector.extract_strided_slice %522 {offsets = [0, 64], sizes = [16, 64], strides = [1, 1]} : vector<16x128xf32> to vector<16x64xf32>
    %525 = vector.extract_strided_slice %512 {offsets = [0, 128], sizes = [16, 64], strides = [1, 1]} : vector<16x192xf32> to vector<16x64xf32>
    %526 = vector.extract_strided_slice %514 {offsets = [0, 128], sizes = [16, 64], strides = [1, 1]} : vector<16x192xf32> to vector<16x64xf32>
    %527 = arith.addf %526, %3 : vector<16x64xf32>
    %528 = arith.mulf %523, %527 : vector<16x64xf32>
    %529 = arith.addf %525, %528 : vector<16x64xf32>
    %530 = math.tanh %529 : vector<16x64xf32>
    %531 = arith.subf %510, %530 : vector<16x64xf32>
    %532 = arith.mulf %524, %531 : vector<16x64xf32>
    %533 = arith.addf %530, %532 : vector<16x64xf32>
    %c23 = arith.constant 23 : index
    %c0_96 = arith.constant 0 : index
    %c0_97 = arith.constant 0 : index
    %534 = vector.load %arg1[%c23, %c0_96, %c0_97] : memref<28x16x192xf32, #tpu.memory_space<vmem>>, vector<1x16x192xf32>
    %535 = vector.shape_cast %534 : vector<1x16x192xf32> to vector<16x192xf32>
    %536 = arith.truncf %533 : vector<16x64xf32> to vector<16x64xbf16>
    %cst_98 = arith.constant dense<0.000000e+00> : vector<16x192xf32>
    %537 = tpu.matmul %536, %0, %cst_98 {dimension_numbers = #tpu.dot_dimension_numbers<[1], [0], [0], [1], [0, 0, 1, 1], [], []>} : vector<16x64xbf16>, vector<64x192xbf16>, vector<16x192xf32> -> vector<16x192xf32>
    %538 = vector.extract_strided_slice %535 {offsets = [0, 0], sizes = [16, 128], strides = [1, 1]} : vector<16x192xf32> to vector<16x128xf32>
    %539 = vector.extract_strided_slice %537 {offsets = [0, 0], sizes = [16, 128], strides = [1, 1]} : vector<16x192xf32> to vector<16x128xf32>
    %540 = arith.addf %538, %539 : vector<16x128xf32>
    %541 = arith.negf %540 : vector<16x128xf32>
    %542 = math.exp %541 : vector<16x128xf32>
    %cst_99 = arith.constant 1.000000e+00 : f32
    %543 = vector.broadcast %cst_99 : f32 to vector<16x128xf32>
    %544 = arith.addf %543, %542 : vector<16x128xf32>
    %545 = arith.divf %543, %544 : vector<16x128xf32>
    %546 = vector.extract_strided_slice %545 {offsets = [0, 0], sizes = [16, 64], strides = [1, 1]} : vector<16x128xf32> to vector<16x64xf32>
    %547 = vector.extract_strided_slice %545 {offsets = [0, 64], sizes = [16, 64], strides = [1, 1]} : vector<16x128xf32> to vector<16x64xf32>
    %548 = vector.extract_strided_slice %535 {offsets = [0, 128], sizes = [16, 64], strides = [1, 1]} : vector<16x192xf32> to vector<16x64xf32>
    %549 = vector.extract_strided_slice %537 {offsets = [0, 128], sizes = [16, 64], strides = [1, 1]} : vector<16x192xf32> to vector<16x64xf32>
    %550 = arith.addf %549, %3 : vector<16x64xf32>
    %551 = arith.mulf %546, %550 : vector<16x64xf32>
    %552 = arith.addf %548, %551 : vector<16x64xf32>
    %553 = math.tanh %552 : vector<16x64xf32>
    %554 = arith.subf %533, %553 : vector<16x64xf32>
    %555 = arith.mulf %547, %554 : vector<16x64xf32>
    %556 = arith.addf %553, %555 : vector<16x64xf32>
    %c24 = arith.constant 24 : index
    %c0_100 = arith.constant 0 : index
    %c0_101 = arith.constant 0 : index
    %557 = vector.load %arg1[%c24, %c0_100, %c0_101] : memref<28x16x192xf32, #tpu.memory_space<vmem>>, vector<1x16x192xf32>
    %558 = vector.shape_cast %557 : vector<1x16x192xf32> to vector<16x192xf32>
    %559 = arith.truncf %556 : vector<16x64xf32> to vector<16x64xbf16>
    %cst_102 = arith.constant dense<0.000000e+00> : vector<16x192xf32>
    %560 = tpu.matmul %559, %0, %cst_102 {dimension_numbers = #tpu.dot_dimension_numbers<[1], [0], [0], [1], [0, 0, 1, 1], [], []>} : vector<16x64xbf16>, vector<64x192xbf16>, vector<16x192xf32> -> vector<16x192xf32>
    %561 = vector.extract_strided_slice %558 {offsets = [0, 0], sizes = [16, 128], strides = [1, 1]} : vector<16x192xf32> to vector<16x128xf32>
    %562 = vector.extract_strided_slice %560 {offsets = [0, 0], sizes = [16, 128], strides = [1, 1]} : vector<16x192xf32> to vector<16x128xf32>
    %563 = arith.addf %561, %562 : vector<16x128xf32>
    %564 = arith.negf %563 : vector<16x128xf32>
    %565 = math.exp %564 : vector<16x128xf32>
    %cst_103 = arith.constant 1.000000e+00 : f32
    %566 = vector.broadcast %cst_103 : f32 to vector<16x128xf32>
    %567 = arith.addf %566, %565 : vector<16x128xf32>
    %568 = arith.divf %566, %567 : vector<16x128xf32>
    %569 = vector.extract_strided_slice %568 {offsets = [0, 0], sizes = [16, 64], strides = [1, 1]} : vector<16x128xf32> to vector<16x64xf32>
    %570 = vector.extract_strided_slice %568 {offsets = [0, 64], sizes = [16, 64], strides = [1, 1]} : vector<16x128xf32> to vector<16x64xf32>
    %571 = vector.extract_strided_slice %558 {offsets = [0, 128], sizes = [16, 64], strides = [1, 1]} : vector<16x192xf32> to vector<16x64xf32>
    %572 = vector.extract_strided_slice %560 {offsets = [0, 128], sizes = [16, 64], strides = [1, 1]} : vector<16x192xf32> to vector<16x64xf32>
    %573 = arith.addf %572, %3 : vector<16x64xf32>
    %574 = arith.mulf %569, %573 : vector<16x64xf32>
    %575 = arith.addf %571, %574 : vector<16x64xf32>
    %576 = math.tanh %575 : vector<16x64xf32>
    %577 = arith.subf %556, %576 : vector<16x64xf32>
    %578 = arith.mulf %570, %577 : vector<16x64xf32>
    %579 = arith.addf %576, %578 : vector<16x64xf32>
    %c25 = arith.constant 25 : index
    %c0_104 = arith.constant 0 : index
    %c0_105 = arith.constant 0 : index
    %580 = vector.load %arg1[%c25, %c0_104, %c0_105] : memref<28x16x192xf32, #tpu.memory_space<vmem>>, vector<1x16x192xf32>
    %581 = vector.shape_cast %580 : vector<1x16x192xf32> to vector<16x192xf32>
    %582 = arith.truncf %579 : vector<16x64xf32> to vector<16x64xbf16>
    %cst_106 = arith.constant dense<0.000000e+00> : vector<16x192xf32>
    %583 = tpu.matmul %582, %0, %cst_106 {dimension_numbers = #tpu.dot_dimension_numbers<[1], [0], [0], [1], [0, 0, 1, 1], [], []>} : vector<16x64xbf16>, vector<64x192xbf16>, vector<16x192xf32> -> vector<16x192xf32>
    %584 = vector.extract_strided_slice %581 {offsets = [0, 0], sizes = [16, 128], strides = [1, 1]} : vector<16x192xf32> to vector<16x128xf32>
    %585 = vector.extract_strided_slice %583 {offsets = [0, 0], sizes = [16, 128], strides = [1, 1]} : vector<16x192xf32> to vector<16x128xf32>
    %586 = arith.addf %584, %585 : vector<16x128xf32>
    %587 = arith.negf %586 : vector<16x128xf32>
    %588 = math.exp %587 : vector<16x128xf32>
    %cst_107 = arith.constant 1.000000e+00 : f32
    %589 = vector.broadcast %cst_107 : f32 to vector<16x128xf32>
    %590 = arith.addf %589, %588 : vector<16x128xf32>
    %591 = arith.divf %589, %590 : vector<16x128xf32>
    %592 = vector.extract_strided_slice %591 {offsets = [0, 0], sizes = [16, 64], strides = [1, 1]} : vector<16x128xf32> to vector<16x64xf32>
    %593 = vector.extract_strided_slice %591 {offsets = [0, 64], sizes = [16, 64], strides = [1, 1]} : vector<16x128xf32> to vector<16x64xf32>
    %594 = vector.extract_strided_slice %581 {offsets = [0, 128], sizes = [16, 64], strides = [1, 1]} : vector<16x192xf32> to vector<16x64xf32>
    %595 = vector.extract_strided_slice %583 {offsets = [0, 128], sizes = [16, 64], strides = [1, 1]} : vector<16x192xf32> to vector<16x64xf32>
    %596 = arith.addf %595, %3 : vector<16x64xf32>
    %597 = arith.mulf %592, %596 : vector<16x64xf32>
    %598 = arith.addf %594, %597 : vector<16x64xf32>
    %599 = math.tanh %598 : vector<16x64xf32>
    %600 = arith.subf %579, %599 : vector<16x64xf32>
    %601 = arith.mulf %593, %600 : vector<16x64xf32>
    %602 = arith.addf %599, %601 : vector<16x64xf32>
    %c26 = arith.constant 26 : index
    %c0_108 = arith.constant 0 : index
    %c0_109 = arith.constant 0 : index
    %603 = vector.load %arg1[%c26, %c0_108, %c0_109] : memref<28x16x192xf32, #tpu.memory_space<vmem>>, vector<1x16x192xf32>
    %604 = vector.shape_cast %603 : vector<1x16x192xf32> to vector<16x192xf32>
    %605 = arith.truncf %602 : vector<16x64xf32> to vector<16x64xbf16>
    %cst_110 = arith.constant dense<0.000000e+00> : vector<16x192xf32>
    %606 = tpu.matmul %605, %0, %cst_110 {dimension_numbers = #tpu.dot_dimension_numbers<[1], [0], [0], [1], [0, 0, 1, 1], [], []>} : vector<16x64xbf16>, vector<64x192xbf16>, vector<16x192xf32> -> vector<16x192xf32>
    %607 = vector.extract_strided_slice %604 {offsets = [0, 0], sizes = [16, 128], strides = [1, 1]} : vector<16x192xf32> to vector<16x128xf32>
    %608 = vector.extract_strided_slice %606 {offsets = [0, 0], sizes = [16, 128], strides = [1, 1]} : vector<16x192xf32> to vector<16x128xf32>
    %609 = arith.addf %607, %608 : vector<16x128xf32>
    %610 = arith.negf %609 : vector<16x128xf32>
    %611 = math.exp %610 : vector<16x128xf32>
    %cst_111 = arith.constant 1.000000e+00 : f32
    %612 = vector.broadcast %cst_111 : f32 to vector<16x128xf32>
    %613 = arith.addf %612, %611 : vector<16x128xf32>
    %614 = arith.divf %612, %613 : vector<16x128xf32>
    %615 = vector.extract_strided_slice %614 {offsets = [0, 0], sizes = [16, 64], strides = [1, 1]} : vector<16x128xf32> to vector<16x64xf32>
    %616 = vector.extract_strided_slice %614 {offsets = [0, 64], sizes = [16, 64], strides = [1, 1]} : vector<16x128xf32> to vector<16x64xf32>
    %617 = vector.extract_strided_slice %604 {offsets = [0, 128], sizes = [16, 64], strides = [1, 1]} : vector<16x192xf32> to vector<16x64xf32>
    %618 = vector.extract_strided_slice %606 {offsets = [0, 128], sizes = [16, 64], strides = [1, 1]} : vector<16x192xf32> to vector<16x64xf32>
    %619 = arith.addf %618, %3 : vector<16x64xf32>
    %620 = arith.mulf %615, %619 : vector<16x64xf32>
    %621 = arith.addf %617, %620 : vector<16x64xf32>
    %622 = math.tanh %621 : vector<16x64xf32>
    %623 = arith.subf %602, %622 : vector<16x64xf32>
    %624 = arith.mulf %616, %623 : vector<16x64xf32>
    %625 = arith.addf %622, %624 : vector<16x64xf32>
    %c27 = arith.constant 27 : index
    %c0_112 = arith.constant 0 : index
    %c0_113 = arith.constant 0 : index
    %626 = vector.load %arg1[%c27, %c0_112, %c0_113] : memref<28x16x192xf32, #tpu.memory_space<vmem>>, vector<1x16x192xf32>
    %627 = vector.shape_cast %626 : vector<1x16x192xf32> to vector<16x192xf32>
    %628 = arith.truncf %625 : vector<16x64xf32> to vector<16x64xbf16>
    %cst_114 = arith.constant dense<0.000000e+00> : vector<16x192xf32>
    %629 = tpu.matmul %628, %0, %cst_114 {dimension_numbers = #tpu.dot_dimension_numbers<[1], [0], [0], [1], [0, 0, 1, 1], [], []>} : vector<16x64xbf16>, vector<64x192xbf16>, vector<16x192xf32> -> vector<16x192xf32>
    %630 = vector.extract_strided_slice %627 {offsets = [0, 0], sizes = [16, 128], strides = [1, 1]} : vector<16x192xf32> to vector<16x128xf32>
    %631 = vector.extract_strided_slice %629 {offsets = [0, 0], sizes = [16, 128], strides = [1, 1]} : vector<16x192xf32> to vector<16x128xf32>
    %632 = arith.addf %630, %631 : vector<16x128xf32>
    %633 = arith.negf %632 : vector<16x128xf32>
    %634 = math.exp %633 : vector<16x128xf32>
    %cst_115 = arith.constant 1.000000e+00 : f32
    %635 = vector.broadcast %cst_115 : f32 to vector<16x128xf32>
    %636 = arith.addf %635, %634 : vector<16x128xf32>
    %637 = arith.divf %635, %636 : vector<16x128xf32>
    %638 = vector.extract_strided_slice %637 {offsets = [0, 0], sizes = [16, 64], strides = [1, 1]} : vector<16x128xf32> to vector<16x64xf32>
    %639 = vector.extract_strided_slice %637 {offsets = [0, 64], sizes = [16, 64], strides = [1, 1]} : vector<16x128xf32> to vector<16x64xf32>
    %640 = vector.extract_strided_slice %627 {offsets = [0, 128], sizes = [16, 64], strides = [1, 1]} : vector<16x192xf32> to vector<16x64xf32>
    %641 = vector.extract_strided_slice %629 {offsets = [0, 128], sizes = [16, 64], strides = [1, 1]} : vector<16x192xf32> to vector<16x64xf32>
    %642 = arith.addf %641, %3 : vector<16x64xf32>
    %643 = arith.mulf %638, %642 : vector<16x64xf32>
    %644 = arith.addf %640, %643 : vector<16x64xf32>
    %645 = math.tanh %644 : vector<16x64xf32>
    %646 = arith.subf %625, %645 : vector<16x64xf32>
    %647 = arith.mulf %639, %646 : vector<16x64xf32>
    %648 = arith.addf %645, %647 : vector<16x64xf32>
    %649 = arith.truncf %648 : vector<16x64xf32> to vector<16x64xbf16>
    %c0_116 = arith.constant 0 : index
    %c0_117 = arith.constant 0 : index
    %650 = vector.load %arg4[%c0_116, %c0_117] : memref<64x10xbf16, #tpu.memory_space<vmem>>, vector<64x10xbf16>
    %cst_118 = arith.constant dense<0.000000e+00> : vector<16x10xf32>
    %651 = tpu.matmul %649, %650, %cst_118 {dimension_numbers = #tpu.dot_dimension_numbers<[1], [0], [0], [1], [0, 0, 1, 1], [], []>} : vector<16x64xbf16>, vector<64x10xbf16>, vector<16x10xf32> -> vector<16x10xf32>
    %c0_119 = arith.constant 0 : index
    %c0_120 = arith.constant 0 : index
    %652 = vector.load %arg5[%c0_119, %c0_120] : memref<1x10xf32, #tpu.memory_space<vmem>>, vector<1x10xf32>
    %653 = vector.broadcast %652 : vector<1x10xf32> to vector<16x10xf32>
    %654 = arith.addf %651, %653 : vector<16x10xf32>
    %c0_121 = arith.constant 0 : index
    %c0_122 = arith.constant 0 : index
    %655 = vector.load %arg6[%c0_121, %c0_122] : memref<16x10xf32, #tpu.memory_space<vmem>>, vector<16x10xf32>
    tpu.vector_store %arg6[%c0_121, %c0_122], %654 {strides = array<i32>} : memref<16x10xf32, #tpu.memory_space<vmem>>, vector<16x10xf32>,
    return
  }
  func.func @transform_0(%arg0: i32) -> (i32, i32, i32) {
    %c0_i32 = arith.constant 0 : i32
    %c0_i32_0 = arith.constant 0 : i32
    %c0_i32_1 = arith.constant 0 : i32
    return %c0_i32, %arg0, %c0_i32_0 : i32, i32, i32
  }
  func.func @transform_1(%arg0: i32) -> (i32, i32) {
    %c0_i32 = arith.constant 0 : i32
    %c0_i32_0 = arith.constant 0 : i32
    %c0_i32_1 = arith.constant 0 : i32
    return %c0_i32, %c0_i32_0 : i32, i32
  }
  func.func @transform_2(%arg0: i32) -> (i32, i32) {
    %c0_i32 = arith.constant 0 : i32
    %c0_i32_0 = arith.constant 0 : i32
    %c0_i32_1 = arith.constant 0 : i32
    return %c0_i32, %c0_i32_0 : i32, i32
  }
  func.func @transform_3(%arg0: i32) -> (i32, i32) {
    %c0_i32 = arith.constant 0 : i32
    %c0_i32_0 = arith.constant 0 : i32
    %c0_i32_1 = arith.constant 0 : i32
    return %c0_i32, %c0_i32_0 : i32, i32
  }
  func.func @transform_4(%arg0: i32) -> (i32, i32) {
    %c0_i32 = arith.constant 0 : i32
    %c0_i32_0 = arith.constant 0 : i32
    %c0_i32_1 = arith.constant 0 : i32
    return %c0_i32, %c0_i32_0 : i32, i32
  }
  func.func @transform_5(%arg0: i32) -> (i32, i32) {
    %c0_i32 = arith.constant 0 : i32
    %c0_i32_0 = arith.constant 0 : i32
    return %arg0, %c0_i32 : i32, i32
  }
}

</mosaic_0001>

<llo_original>
// kernel: _lambda_.1
$region0: #{_lambda_.1}
  #allocation0 [shape = 'u32[]', space=smem, size = 0x4, offset = 0x4, fixed_abs, tag = 'smem constant byte address 0x4 - core index']
  #allocation1 [shape = 'u32[144,128]{1,0:T(1,128)}', space=vmem, size = 0x12000, scoped, tag = 'internal scratch']
  %s0 = inlined_call_operand.vmem [shape: f32[28,48,192], index: 0, kind: input, shape index: {}]
  %s1 = inlined_call_operand.vmem [shape: bf16[64,192], index: 1, kind: input, shape index: {}]
  %s2 = inlined_call_operand.vmem [shape: f32[1,64], index: 2, kind: input, shape index: {}]
  %s3 = inlined_call_operand.vmem [shape: bf16[64,10], index: 3, kind: input, shape index: {}]
  %s4 = inlined_call_operand.vmem [shape: f32[1,10], index: 4, kind: input, shape index: {}]
  %s5 = inlined_call_operand.vmem [shape: f32[48,10], index: 5, kind: output, shape index: {}]
  %s6 = sld [smem:[#allocation0]]
  $region76: #{_lambda_.1} parent=0
    _
  %s8 = ssub.s32 1, %s6
  %s9 = scalar_select 0, %s8, %s6
  $region1: #{_lambda_.1} parent=0
    #allocation2 [shape = 'u8[917504]{0}', space=vmem, size = 0xe0000, scoped, tag = 'input window, operand 0']
    loop: start=0, step=1, limit=5
    $region2: #{_lambda_.1} parent=1 // loop_pre_header
      _
    $region3: #{_lambda_.1} parent=1 // loop_header
      %s11 = sphi 0, %s15
      %p12 = scmp.ge.s32.totalorder %s11, 5
      %s21 = sphi 0, %s23
      %s24 = sphi 0, %s21
      %s25 = sphi 0, %s24
      %s41 = sphi 0, %s25
      %s45 = sphi 0, %s45
      %s47 = sphi 0, %s45
      %s48 = sphi 0, %s47
      %s62 = sphi 0, %s48
      %s66 = sphi 0, %s66
      %s68 = sphi 0, %s66
      %s69 = sphi 0, %s68
      %s83 = sphi 0, %s69
      %s87 = sphi 0, %s87
      %s89 = sphi 0, %s87
      %s90 = sphi 0, %s89
      %s104 = sphi 0, %s90
      %s108 = sphi 0, %s108
      %s110 = sphi 0, %s108
      %s111 = sphi 0, %s110
      %s125 = sphi 0, %s111
      %s131 = sphi 0, %s133
      %s134 = sphi 0, %s131
      %s135 = sphi 0, %s134
      %s151 = sphi 0, %s135
    $region4: #{_lambda_.1} parent=1 // loop_header_branch
      %14 = sbr.rel (%p12) target = $region8
    $region5: #{_lambda_.1} parent=1 // loop_body
      %s16 = ssub.s32 %s11, 1
      %s17 = ssub.s32 %s11, 2
      %s18 = sadd.s32 %s11, 1
      %s19 = ssub.s32 %s11, %s18
      %p20 = scmp.eq.s32.totalorder %s19, 0
      %s22 = sadd.s32 %s21, 1
      %s23 = scalar_select %p20, %s21, %s22
      %p26 = pneg %p20
      %p27 = scmp.eq.s32.totalorder %s11, 2
      %p28 = por %p26, %p27
      %p29 = scmp.ne.s32.totalorder %s21, %s24
      %p30 = scmp.eq.s32.totalorder %s11, 0
      %p31 = por %p29, %p30
      %p32 = scmp.ne.s32.totalorder %s21, %s24
      %p33 = scmp.eq.s32.totalorder %s16, 2
      %p34 = por %p32, %p33
      %p35 = scmp.ne.s32.totalorder %s24, %s25
      %p36 = scmp.eq.s32.totalorder %s16, 0
      %p37 = por %p35, %p36
      %p38 = scmp.ne.s32.totalorder %s24, %s25
      %p39 = scmp.eq.s32.totalorder %s17, 2
      %p40 = por %p38, %p39
      %p42 = scmp.ne.s32.totalorder %s25, %s41
      %p43 = scmp.eq.s32.totalorder %s17, 0
      %p44 = por %p42, %p43
      %s46 = sadd.s32 %s45, 1
      %p49 = scmp.eq.s32.totalorder %s11, 2
      %p50 = scmp.ne.s32.totalorder %s45, %s47
      %p51 = scmp.eq.s32.totalorder %s11, 0
      %p52 = por %p50, %p51
      %p53 = scmp.ne.s32.totalorder %s45, %s47
      %p54 = scmp.eq.s32.totalorder %s16, 2
      %p55 = por %p53, %p54
      %p56 = scmp.ne.s32.totalorder %s47, %s48
      %p57 = scmp.eq.s32.totalorder %s16, 0
      %p58 = por %p56, %p57
      %p59 = scmp.ne.s32.totalorder %s47, %s48
      %p60 = scmp.eq.s32.totalorder %s17, 2
      %p61 = por %p59, %p60
      %p63 = scmp.ne.s32.totalorder %s48, %s62
      %p64 = scmp.eq.s32.totalorder %s17, 0
      %p65 = por %p63, %p64
      %s67 = sadd.s32 %s66, 1
      %p70 = scmp.eq.s32.totalorder %s11, 2
      %p71 = scmp.ne.s32.totalorder %s66, %s68
      %p72 = scmp.eq.s32.totalorder %s11, 0
      %p73 = por %p71, %p72
      %p74 = scmp.ne.s32.totalorder %s66, %s68
      %p75 = scmp.eq.s32.totalorder %s16, 2
      %p76 = por %p74, %p75
      %p77 = scmp.ne.s32.totalorder %s68, %s69
      %p78 = scmp.eq.s32.totalorder %s16, 0
      %p79 = por %p77, %p78
      %p80 = scmp.ne.s32.totalorder %s68, %s69
      %p81 = scmp.eq.s32.totalorder %s17, 2
      %p82 = por %p80, %p81
      %p84 = scmp.ne.s32.totalorder %s69, %s83
      %p85 = scmp.eq.s32.totalorder %s17, 0
      %p86 = por %p84, %p85
      %s88 = sadd.s32 %s87, 1
      %p91 = scmp.eq.s32.totalorder %s11, 2
      %p92 = scmp.ne.s32.totalorder %s87, %s89
      %p93 = scmp.eq.s32.totalorder %s11, 0
      %p94 = por %p92, %p93
      %p95 = scmp.ne.s32.totalorder %s87, %s89
      %p96 = scmp.eq.s32.totalorder %s16, 2
      %p97 = por %p95, %p96
      %p98 = scmp.ne.s32.totalorder %s89, %s90
      %p99 = scmp.eq.s32.totalorder %s16, 0
      %p100 = por %p98, %p99
      %p101 = scmp.ne.s32.totalorder %s89, %s90
      %p102 = scmp.eq.s32.totalorder %s17, 2
      %p103 = por %p101, %p102
      %p105 = scmp.ne.s32.totalorder %s90, %s104
      %p106 = scmp.eq.s32.totalorder %s17, 0
      %p107 = por %p105, %p106
      %s109 = sadd.s32 %s108, 1
      %p112 = scmp.eq.s32.totalorder %s11, 2
      %p113 = scmp.ne.s32.totalorder %s108, %s110
      %p114 = scmp.eq.s32.totalorder %s11, 0
      %p115 = por %p113, %p114
      %p116 = scmp.ne.s32.totalorder %s108, %s110
      %p117 = scmp.eq.s32.totalorder %s16, 2
      %p118 = por %p116, %p117
      %p119 = scmp.ne.s32.totalorder %s110, %s111
      %p120 = scmp.eq.s32.totalorder %s16, 0
      %p121 = por %p119, %p120
      %p122 = scmp.ne.s32.totalorder %s110, %s111
      %p123 = scmp.eq.s32.totalorder %s17, 2
      %p124 = por %p122, %p123
      %p126 = scmp.ne.s32.totalorder %s111, %s125
      %p127 = scmp.eq.s32.totalorder %s17, 0
      %p128 = por %p126, %p127
      %s129 = ssub.s32 %s11, %s18
      %p130 = scmp.eq.s32.totalorder %s129, 0
      %s132 = sadd.s32 %s131, 1
      %s133 = scalar_select %p130, %s131, %s132
      %p136 = pneg %p130
      %p137 = scmp.eq.s32.totalorder %s11, 2
      %p138 = por %p136, %p137
      %p139 = scmp.ne.s32.totalorder %s131, %s134
      %p140 = scmp.eq.s32.totalorder %s11, 0
      %p141 = por %p139, %p140
      %p142 = scmp.ne.s32.totalorder %s131, %s134
      %p143 = scmp.eq.s32.totalorder %s16, 2
      %p144 = por %p142, %p143
      %p145 = scmp.ne.s32.totalorder %s134, %s135
      %p146 = scmp.eq.s32.totalorder %s16, 0
      %p147 = por %p145, %p146
      %p148 = scmp.ne.s32.totalorder %s134, %s135
      %p149 = scmp.eq.s32.totalorder %s17, 2
      %p150 = por %p148, %p149
      %p152 = scmp.ne.s32.totalorder %s135, %s151
      %p153 = scmp.eq.s32.totalorder %s17, 0
      %p154 = por %p152, %p153
      %p155 = scmp.le.s32.totalorder 1, %s11
      %p156 = scmp.lt.s32.totalorder %s11, 4
      %p157 = pnand %p155, %p156
      %p158 = pneg %p157
      // Predicated region
      $region9: #{_lambda_.1} parent=5 // pred_check
        _
      $region10: #{_lambda_.1} parent=5 // pred_check_branch
        %160 = sbr.rel (%p157) target = $region12
      $region11: #{_lambda_.1} parent=5 // pred_region
        %s161 = ssub.s32 %s11, 1
        // Predicated region
        $region13: #{_lambda_.1} parent=11 // pred_check
          %p162 = pneg %p58
        $region14: #{_lambda_.1} parent=11 // pred_check_branch
          %164 = sbr.rel (%p162) target = $region16
        $region15: #{_lambda_.1} parent=11 // pred_region
          _
        $region16: #{_lambda_.1} parent=11 // pred_fallthru
          _
        // Predicated region
        $region17: #{_lambda_.1} parent=11 // pred_check
          %p165 = pneg %p79
        $region18: #{_lambda_.1} parent=11 // pred_check_branch
          %167 = sbr.rel (%p165) target = $region20
        $region19: #{_lambda_.1} parent=11 // pred_region
          _
        $region20: #{_lambda_.1} parent=11 // pred_fallthru
          _
        // Predicated region
        $region21: #{_lambda_.1} parent=11 // pred_check
          %p168 = pneg %p100
        $region22: #{_lambda_.1} parent=11 // pred_check_branch
          %170 = sbr.rel (%p168) target = $region24
        $region23: #{_lambda_.1} parent=11 // pred_region
          _
        $region24: #{_lambda_.1} parent=11 // pred_fallthru
          _
        // Predicated region
        $region25: #{_lambda_.1} parent=11 // pred_check
          %p171 = pneg %p121
        $region26: #{_lambda_.1} parent=11 // pred_check_branch
          %173 = sbr.rel (%p171) target = $region28
        $region27: #{_lambda_.1} parent=11 // pred_region
          _
        $region28: #{_lambda_.1} parent=11 // pred_fallthru
          _
      $region12: #{_lambda_.1} parent=5 // pred_fallthru
        _
      %p174 = scmp.lt.s32.totalorder %s11, 3
      // Predicated region
      $region29: #{_lambda_.1} parent=5 // pred_check
        %p175 = pneg %p174
      $region30: #{_lambda_.1} parent=5 // pred_check_branch
        %177 = sbr.rel (%p175) target = $region32
      $region31: #{_lambda_.1} parent=5 // pred_region
        // Predicated region
        $region33: #{_lambda_.1} parent=31 // pred_check
          %p178 = pneg %p31
        $region34: #{_lambda_.1} parent=31 // pred_check_branch
          %180 = sbr.rel (%p178) target = $region36
        $region35: #{_lambda_.1} parent=31 // pred_region
          %s181 = sand.u32 %s21, 1
          %s182 = sand.u32 %s21, 1
          %s183 = smul.addr %s182, 896
          %s184 = scalar_lea.vmem [#allocation2], %s183
          %s185 = smul.u32 2, %s11
          %s186 = smul.addr %s185, 2
          %s187 = smul.addr %s186, 8
          %s188 = scalar_lea.vmem %s0, %s187
          // Predicated region
          $region37: #{_lambda_.1} parent=35 // pred_check
            _
          $region38: #{_lambda_.1} parent=35 // pred_check_branch
            %190 = sbr.rel (0) target = $region40
          $region39: #{_lambda_.1} parent=35 // pred_region
            // Predicated region
            $region41: #{_lambda_.1} parent=39 // pred_check
              _
            $region42: #{_lambda_.1} parent=39 // pred_check_branch
              %192 = sbr.rel (0) target = $region44
            $region43: #{_lambda_.1} parent=39 // pred_region
              loop: start=0, step=1, limit=1
              $region45: #{_lambda_.1} parent=43 // loop_pre_header
                _
              $region46: #{_lambda_.1} parent=43 // loop_header
                %s194 = sphi 0, %s198
                %p195 = scmp.ge.s32.totalorder %s194, 1
                %s199 = sphi %s188, %s188
                %s200 = sphi %s184, %s184
              $region47: #{_lambda_.1} parent=43 // loop_header_branch
                %197 = sbr.rel (%p195) target = $region51
              $region48: #{_lambda_.1} parent=43 // loop_body
                %v201 = vld [vmem:[%s199] sm:$0xff]
                %202 = vst [vmem:[%s200] sm:$0xff] %v201
                %v203 = vld [vmem:[%s199 + $0x8] sm:$0xff]
                %204 = vst [vmem:[%s200 + $0x8] sm:$0xff] %v203
                %v205 = vld [vmem:[%s199 + $0x10] sm:$0xff]
                %206 = vst [vmem:[%s200 + $0x10] sm:$0xff] %v205
                %v207 = vld [vmem:[%s199 + $0x18] sm:$0xff]
                %208 = vst [vmem:[%s200 + $0x18] sm:$0xff] %v207
                %v209 = vld [vmem:[%s199 + $0x60] sm:$0xff]
                %210 = vst [vmem:[%s200 + $0x20] sm:$0xff] %v209
                %v211 = vld [vmem:[%s199 + $0x68] sm:$0xff]
                %212 = vst [vmem:[%s200 + $0x28] sm:$0xff] %v211
                %v213 = vld [vmem:[%s199 + $0x70] sm:$0xff]
                %214 = vst [vmem:[%s200 + $0x30] sm:$0xff] %v213
                %v215 = vld [vmem:[%s199 + $0x78] sm:$0xff]
                %216 = vst [vmem:[%s200 + $0x38] sm:$0xff] %v215
                %v217 = vld [vmem:[%s199 + $0xc0] sm:$0xff]
                %218 = vst [vmem:[%s200 + $0x40] sm:$0xff] %v217
                %v219 = vld [vmem:[%s199 + $0xc8] sm:$0xff]
                %220 = vst [vmem:[%s200 + $0x48] sm:$0xff] %v219
                %v221 = vld [vmem:[%s199 + $0xd0] sm:$0xff]
                %222 = vst [vmem:[%s200 + $0x50] sm:$0xff] %v221
                %v223 = vld [vmem:[%s199 + $0xd8] sm:$0xff]
                %224 = vst [vmem:[%s200 + $0x58] sm:$0xff] %v223
                %v225 = vld [vmem:[%s199 + $0x120] sm:$0xff]
                %226 = vst [vmem:[%s200 + $0x60] sm:$0xff] %v225
                %v227 = vld [vmem:[%s199 + $0x128] sm:$0xff]
                %228 = vst [vmem:[%s200 + $0x68] sm:$0xff] %v227
                %v229 = vld [vmem:[%s199 + $0x130] sm:$0xff]
                %230 = vst [vmem:[%s200 + $0x70] sm:$0xff] %v229
                %v231 = vld [vmem:[%s199 + $0x138] sm:$0xff]
                %232 = vst [vmem:[%s200 + $0x78] sm:$0xff] %v231
                %v233 = vld [vmem:[%s199 + $0x180] sm:$0xff]
                %234 = vst [vmem:[%s200 + $0x80] sm:$0xff] %v233
                %v235 = vld [vmem:[%s199 + $0x188] sm:$0xff]
                %236 = vst [vmem:[%s200 + $0x88] sm:$0xff] %v235
                %v237 = vld [vmem:[%s199 + $0x190] sm:$0xff]
                %238 = vst [vmem:[%s200 + $0x90] sm:$0xff] %v237
                %v239 = vld [vmem:[%s199 + $0x198] sm:$0xff]
                %240 = vst [vmem:[%s200 + $0x98] sm:$0xff] %v239
                %v241 = vld [vmem:[%s199 + $0x1e0] sm:$0xff]
                %242 = vst [vmem:[%s200 + $0xa0] sm:$0xff] %v241
                %v243 = vld [vmem:[%s199 + $0x1e8] sm:$0xff]
                %244 = vst [vmem:[%s200 + $0xa8] sm:$0xff] %v243
                %v245 = vld [vmem:[%s199 + $0x1f0] sm:$0xff]
                %246 = vst [vmem:[%s200 + $0xb0] sm:$0xff] %v245
                %v247 = vld [vmem:[%s199 + $0x1f8] sm:$0xff]
                %248 = vst [vmem:[%s200 + $0xb8] sm:$0xff] %v247
                %v249 = vld [vmem:[%s199 + $0x240] sm:$0xff]
                %250 = vst [vmem:[%s200 + $0xc0] sm:$0xff] %v249
                %v251 = vld [vmem:[%s199 + $0x248] sm:$0xff]
                %252 = vst [vmem:[%s200 + $0xc8] sm:$0xff] %v251
                %v253 = vld [vmem:[%s199 + $0x250] sm:$0xff]
                %254 = vst [vmem:[%s200 + $0xd0] sm:$0xff] %v253
                %v255 = vld [vmem:[%s199 + $0x258] sm:$0xff]
                %256 = vst [vmem:[%s200 + $0xd8] sm:$0xff] %v255
                %v257 = vld [vmem:[%s199 + $0x2a0] sm:$0xff]
                %258 = vst [vmem:[%s200 + $0xe0] sm:$0xff] %v257
                %v259 = vld [vmem:[%s199 + $0x2a8] sm:$0xff]
                %260 = vst [vmem:[%s200 + $0xe8] sm:$0xff] %v259
                %v261 = vld [vmem:[%s199 + $0x2b0] sm:$0xff]
                %262 = vst [vmem:[%s200 + $0xf0] sm:$0xff] %v261
                %v263 = vld [vmem:[%s199 + $0x2b8] sm:$0xff]
                %264 = vst [vmem:[%s200 + $0xf8] sm:$0xff] %v263
                %v265 = vld [vmem:[%s199 + $0x300] sm:$0xff]
                %266 = vst [vmem:[%s200 + $0x100] sm:$0xff] %v265
                %v267 = vld [vmem:[%s199 + $0x308] sm:$0xff]
                %268 = vst [vmem:[%s200 + $0x108] sm:$0xff] %v267
                %v269 = vld [vmem:[%s199 + $0x310] sm:$0xff]
                %270 = vst [vmem:[%s200 + $0x110] sm:$0xff] %v269
                %v271 = vld [vmem:[%s199 + $0x318] sm:$0xff]
                %272 = vst [vmem:[%s200 + $0x118] sm:$0xff] %v271
                %v273 = vld [vmem:[%s199 + $0x360] sm:$0xff]
                %274 = vst [vmem:[%s200 + $0x120] sm:$0xff] %v273
                %v275 = vld [vmem:[%s199 + $0x368] sm:$0xff]
                %276 = vst [vmem:[%s200 + $0x128] sm:$0xff] %v275
                %v277 = vld [vmem:[%s199 + $0x370] sm:$0xff]
                %278 = vst [vmem:[%s200 + $0x130] sm:$0xff] %v277
                %v279 = vld [vmem:[%s199 + $0x378] sm:$0xff]
                %280 = vst [vmem:[%s200 + $0x138] sm:$0xff] %v279
                %v281 = vld [vmem:[%s199 + $0x3c0] sm:$0xff]
                %282 = vst [vmem:[%s200 + $0x140] sm:$0xff] %v281
                %v283 = vld [vmem:[%s199 + $0x3c8] sm:$0xff]
                %284 = vst [vmem:[%s200 + $0x148] sm:$0xff] %v283
                %v285 = vld [vmem:[%s199 + $0x3d0] sm:$0xff]
                %286 = vst [vmem:[%s200 + $0x150] sm:$0xff] %v285
                %v287 = vld [vmem:[%s199 + $0x3d8] sm:$0xff]
                %288 = vst [vmem:[%s200 + $0x158] sm:$0xff] %v287
                %v289 = vld [vmem:[%s199 + $0x420] sm:$0xff]
                %290 = vst [vmem:[%s200 + $0x160] sm:$0xff] %v289
                %v291 = vld [vmem:[%s199 + $0x428] sm:$0xff]
                %292 = vst [vmem:[%s200 + $0x168] sm:$0xff] %v291
                %v293 = vld [vmem:[%s199 + $0x430] sm:$0xff]
                %294 = vst [vmem:[%s200 + $0x170] sm:$0xff] %v293
                %v295 = vld [vmem:[%s199 + $0x438] sm:$0xff]
                %296 = vst [vmem:[%s200 + $0x178] sm:$0xff] %v295
                %v297 = vld [vmem:[%s199 + $0x480] sm:$0xff]
                %298 = vst [vmem:[%s200 + $0x180] sm:$0xff] %v297
                %v299 = vld [vmem:[%s199 + $0x488] sm:$0xff]
                %300 = vst [vmem:[%s200 + $0x188] sm:$0xff] %v299
                %v301 = vld [vmem:[%s199 + $0x490] sm:$0xff]
                %302 = vst [vmem:[%s200 + $0x190] sm:$0xff] %v301
                %v303 = vld [vmem:[%s199 + $0x498] sm:$0xff]
                %304 = vst [vmem:[%s200 + $0x198] sm:$0xff] %v303
                %v305 = vld [vmem:[%s199 + $0x4e0] sm:$0xff]
                %306 = vst [vmem:[%s200 + $0x1a0] sm:$0xff] %v305
                %v307 = vld [vmem:[%s199 + $0x4e8] sm:$0xff]
                %308 = vst [vmem:[%s200 + $0x1a8] sm:$0xff] %v307
                %v309 = vld [vmem:[%s199 + $0x4f0] sm:$0xff]
                %310 = vst [vmem:[%s200 + $0x1b0] sm:$0xff] %v309
                %v311 = vld [vmem:[%s199 + $0x4f8] sm:$0xff]
                %312 = vst [vmem:[%s200 + $0x1b8] sm:$0xff] %v311
                %v313 = vld [vmem:[%s199 + $0x540] sm:$0xff]
                %314 = vst [vmem:[%s200 + $0x1c0] sm:$0xff] %v313
                %v315 = vld [vmem:[%s199 + $0x548] sm:$0xff]
                %316 = vst [vmem:[%s200 + $0x1c8] sm:$0xff] %v315
                %v317 = vld [vmem:[%s199 + $0x550] sm:$0xff]
                %318 = vst [vmem:[%s200 + $0x1d0] sm:$0xff] %v317
                %v319 = vld [vmem:[%s199 + $0x558] sm:$0xff]
                %320 = vst [vmem:[%s200 + $0x1d8] sm:$0xff] %v319
                %v321 = vld [vmem:[%s199 + $0x5a0] sm:$0xff]
                %322 = vst [vmem:[%s200 + $0x1e0] sm:$0xff] %v321
                %v323 = vld [vmem:[%s199 + $0x5a8] sm:$0xff]
                %324 = vst [vmem:[%s200 + $0x1e8] sm:$0xff] %v323
                %v325 = vld [vmem:[%s199 + $0x5b0] sm:$0xff]
                %326 = vst [vmem:[%s200 + $0x1f0] sm:$0xff] %v325
                %v327 = vld [vmem:[%s199 + $0x5b8] sm:$0xff]
                %328 = vst [vmem:[%s200 + $0x1f8] sm:$0xff] %v327
                %v329 = vld [vmem:[%s199 + $0x600] sm:$0xff]
                %330 = vst [vmem:[%s200 + $0x200] sm:$0xff] %v329
                %v331 = vld [vmem:[%s199 + $0x608] sm:$0xff]
                %332 = vst [vmem:[%s200 + $0x208] sm:$0xff] %v331
                %v333 = vld [vmem:[%s199 + $0x610] sm:$0xff]
                %334 = vst [vmem:[%s200 + $0x210] sm:$0xff] %v333
                %v335 = vld [vmem:[%s199 + $0x618] sm:$0xff]
                %336 = vst [vmem:[%s200 + $0x218] sm:$0xff] %v335
                %v337 = vld [vmem:[%s199 + $0x660] sm:$0xff]
                %338 = vst [vmem:[%s200 + $0x220] sm:$0xff] %v337
                %v339 = vld [vmem:[%s199 + $0x668] sm:$0xff]
                %340 = vst [vmem:[%s200 + $0x228] sm:$0xff] %v339
                %v341 = vld [vmem:[%s199 + $0x670] sm:$0xff]
                %342 = vst [vmem:[%s200 + $0x230] sm:$0xff] %v341
                %v343 = vld [vmem:[%s199 + $0x678] sm:$0xff]
                %344 = vst [vmem:[%s200 + $0x238] sm:$0xff] %v343
                %v345 = vld [vmem:[%s199 + $0x6c0] sm:$0xff]
                %346 = vst [vmem:[%s200 + $0x240] sm:$0xff] %v345
                %v347 = vld [vmem:[%s199 + $0x6c8] sm:$0xff]
                %348 = vst [vmem:[%s200 + $0x248] sm:$0xff] %v347
                %v349 = vld [vmem:[%s199 + $0x6d0] sm:$0xff]
                %350 = vst [vmem:[%s200 + $0x250] sm:$0xff] %v349
                %v351 = vld [vmem:[%s199 + $0x6d8] sm:$0xff]
                %352 = vst [vmem:[%s200 + $0x258] sm:$0xff] %v351
                %v353 = vld [vmem:[%s199 + $0x720] sm:$0xff]
                %354 = vst [vmem:[%s200 + $0x260] sm:$0xff] %v353
                %v355 = vld [vmem:[%s199 + $0x728] sm:$0xff]
                %356 = vst [vmem:[%s200 + $0x268] sm:$0xff] %v355
                %v357 = vld [vmem:[%s199 + $0x730] sm:$0xff]
                %358 = vst [vmem:[%s200 + $0x270] sm:$0xff] %v357
                %v359 = vld [vmem:[%s199 + $0x738] sm:$0xff]
                %360 = vst [vmem:[%s200 + $0x278] sm:$0xff] %v359
                %v361 = vld [vmem:[%s199 + $0x780] sm:$0xff]
                %362 = vst [vmem:[%s200 + $0x280] sm:$0xff] %v361
                %v363 = vld [vmem:[%s199 + $0x788] sm:$0xff]
                %364 = vst [vmem:[%s200 + $0x288] sm:$0xff] %v363
                %v365 = vld [vmem:[%s199 + $0x790] sm:$0xff]
                %366 = vst [vmem:[%s200 + $0x290] sm:$0xff] %v365
                %v367 = vld [vmem:[%s199 + $0x798] sm:$0xff]
                %368 = vst [vmem:[%s200 + $0x298] sm:$0xff] %v367
                %v369 = vld [vmem:[%s199 + $0x7e0] sm:$0xff]
                %370 = vst [vmem:[%s200 + $0x2a0] sm:$0xff] %v369
                %v371 = vld [vmem:[%s199 + $0x7e8] sm:$0xff]
                %372 = vst [vmem:[%s200 + $0x2a8] sm:$0xff] %v371
                %v373 = vld [vmem:[%s199 + $0x7f0] sm:$0xff]
                %374 = vst [vmem:[%s200 + $0x2b0] sm:$0xff] %v373
                %v375 = vld [vmem:[%s199 + $0x7f8] sm:$0xff]
                %376 = vst [vmem:[%s200 + $0x2b8] sm:$0xff] %v375
                %v377 = vld [vmem:[%s199 + $0x840] sm:$0xff]
                %378 = vst [vmem:[%s200 + $0x2c0] sm:$0xff] %v377
                %v379 = vld [vmem:[%s199 + $0x848] sm:$0xff]
                %380 = vst [vmem:[%s200 + $0x2c8] sm:$0xff] %v379
                %v381 = vld [vmem:[%s199 + $0x850] sm:$0xff]
                %382 = vst [vmem:[%s200 + $0x2d0] sm:$0xff] %v381
                %v383 = vld [vmem:[%s199 + $0x858] sm:$0xff]
                %384 = vst [vmem:[%s200 + $0x2d8] sm:$0xff] %v383
                %v385 = vld [vmem:[%s199 + $0x8a0] sm:$0xff]
                %386 = vst [vmem:[%s200 + $0x2e0] sm:$0xff] %v385
                %v387 = vld [vmem:[%s199 + $0x8a8] sm:$0xff]
                %388 = vst [vmem:[%s200 + $0x2e8] sm:$0xff] %v387
                %v389 = vld [vmem:[%s199 + $0x8b0] sm:$0xff]
                %390 = vst [vmem:[%s200 + $0x2f0] sm:$0xff] %v389
                %v391 = vld [vmem:[%s199 + $0x8b8] sm:$0xff]
                %392 = vst [vmem:[%s200 + $0x2f8] sm:$0xff] %v391
                %v393 = vld [vmem:[%s199 + $0x900] sm:$0xff]
                %394 = vst [vmem:[%s200 + $0x300] sm:$0xff] %v393
                %v395 = vld [vmem:[%s199 + $0x908] sm:$0xff]
                %396 = vst [vmem:[%s200 + $0x308] sm:$0xff] %v395
                %v397 = vld [vmem:[%s199 + $0x910] sm:$0xff]
                %398 = vst [vmem:[%s200 + $0x310] sm:$0xff] %v397
                %v399 = vld [vmem:[%s199 + $0x918] sm:$0xff]
                %400 = vst [vmem:[%s200 + $0x318] sm:$0xff] %v399
                %v401 = vld [vmem:[%s199 + $0x960] sm:$0xff]
                %402 = vst [vmem:[%s200 + $0x320] sm:$0xff] %v401
                %v403 = vld [vmem:[%s199 + $0x968] sm:$0xff]
                %404 = vst [vmem:[%s200 + $0x328] sm:$0xff] %v403
                %v405 = vld [vmem:[%s199 + $0x970] sm:$0xff]
                %406 = vst [vmem:[%s200 + $0x330] sm:$0xff] %v405
                %v407 = vld [vmem:[%s199 + $0x978] sm:$0xff]
                %408 = vst [vmem:[%s200 + $0x338] sm:$0xff] %v407
                %v409 = vld [vmem:[%s199 + $0x9c0] sm:$0xff]
                %410 = vst [vmem:[%s200 + $0x340] sm:$0xff] %v409
                %v411 = vld [vmem:[%s199 + $0x9c8] sm:$0xff]
                %412 = vst [vmem:[%s200 + $0x348] sm:$0xff] %v411
                %v413 = vld [vmem:[%s199 + $0x9d0] sm:$0xff]
                %414 = vst [vmem:[%s200 + $0x350] sm:$0xff] %v413
                %v415 = vld [vmem:[%s199 + $0x9d8] sm:$0xff]
                %416 = vst [vmem:[%s200 + $0x358] sm:$0xff] %v415
                %v417 = vld [vmem:[%s199 + $0xa20] sm:$0xff]
                %418 = vst [vmem:[%s200 + $0x360] sm:$0xff] %v417
                %v419 = vld [vmem:[%s199 + $0xa28] sm:$0xff]
                %420 = vst [vmem:[%s200 + $0x368] sm:$0xff] %v419
                %v421 = vld [vmem:[%s199 + $0xa30] sm:$0xff]
                %422 = vst [vmem:[%s200 + $0x370] sm:$0xff] %v421
                %v423 = vld [vmem:[%s199 + $0xa38] sm:$0xff]
                %424 = vst [vmem:[%s200 + $0x378] sm:$0xff] %v423
              $region49: #{_lambda_.1} parent=43 // loop_footer
                %s198 = sadd.s32 1, %s194
              $region50: #{_lambda_.1} parent=43 // loop_footer_branch
                %193 = sbr.rel target = $region46
              $region51: #{_lambda_.1} parent=43 // loop_exit
                _
            $region44: #{_lambda_.1} parent=39 // pred_fallthru
              _
            // Predicated region
            $region52: #{_lambda_.1} parent=39 // pred_check
              _
            $region53: #{_lambda_.1} parent=39 // pred_check_branch
              %426 = sbr.rel target = $region55
            $region54: #{_lambda_.1} parent=39 // pred_region
              _
            $region55: #{_lambda_.1} parent=39 // pred_fallthru
              _
          $region40: #{_lambda_.1} parent=35 // pred_fallthru
            _
          %427 = vnop
        $region36: #{_lambda_.1} parent=31 // pred_fallthru
          _
      $region32: #{_lambda_.1} parent=5 // pred_fallthru
        _
      %p428 = scmp.le.s32.totalorder 1, %s11
      %p429 = scmp.lt.s32.totalorder %s11, 4
      %p430 = pnand %p428, %p429
      %p431 = pneg %p430
      // Predicated region
      $region56: #{_lambda_.1} parent=5 // pred_check
        _
      $region57: #{_lambda_.1} parent=5 // pred_check_branch
        %433 = sbr.rel (%p430) target = $region59
      $region58: #{_lambda_.1} parent=5 // pred_region
        %s434 = ssub.s32 %s11, 1
        %s435 = sand.u32 %s24, 1
        %s436 = sand.u32 %s24, 1
        %s437 = smul.addr %s436, 896
        %s438 = scalar_lea.vmem [#allocation2], %s437
        // Predicated region
        $region60: #{_lambda_.1} parent=58 // pred_check
          %p439 = pneg %p37
        $region61: #{_lambda_.1} parent=58 // pred_check_branch
          %441 = sbr.rel (%p439) target = $region63
        $region62: #{_lambda_.1} parent=58 // pred_region
          _
        $region63: #{_lambda_.1} parent=58 // pred_fallthru
          _
        %s442 = sand.u32 %s24, 1
        %s443 = sand.u32 %s24, 1
        %s444 = smul.addr %s443, 896
        %s445 = scalar_lea.vmem [#allocation2], %s444
        %p446 = pneg %p37
        %p447 = pneg %p34
        %p448 = pneg %p58
        %p449 = pneg %p55
        %p450 = pneg %p79
        %p451 = pneg %p76
        %p452 = pneg %p100
        %p453 = pneg %p97
        %p454 = pneg %p121
        %p455 = pneg %p118
        %p456 = pneg %p147
        %p457 = pneg %p144
        %s458 = smul.u32 2, %s16
        %p459 = scmp.lt.s32.totalorder %s458, 5
        %s460 = scalar_select %p459, %s458, 5
        %s461 = smul.addr %s460, 8
        %s462 = scalar_lea.vmem %s5, %s461
        %s463 = smul.u32 2, %s16
        %s464 = smul.u32 2, %s16
        %p465 = scmp.lt.s32.totalorder %s464, 5
        %s466 = scalar_select %p465, %s464, 5
        %s467 = smul.addr %s466, 8
        %s468 = scalar_lea.vmem %s5, %s467
        %s469 = smul.u32 2, %s16
        %v471 = vld [vmem:[%s1] sm:$0xff]
        %v472 = vld [vmem:[%s1 + $0x8] sm:$0xff]
        %v473 = vld [vmem:[%s1 + $0x10] sm:$0xff]
        %v474 = vld [vmem:[%s1 + $0x18] sm:$0xff]
        %v475 = vld [vmem:[%s1 + $0x20] sm:$0xff]
        %v476 = vld [vmem:[%s1 + $0x28] sm:$0xff]
        %v477 = vld [vmem:[%s1 + $0x30] sm:$0xff]
        %v478 = vld [vmem:[%s1 + $0x38] sm:$0xff]
        %v479 = vld [vmem:[%s2] sm:$0x1]
        %v481 = vlaneseq
        %v482 = vshrl.u32 %v481, 7
        %v483 = vsub.s32 0, %v482
        %v484 = vrot.slane %v479, %v483
        %v486 = vld [vmem:[%s438] sm:$0xff]
        %v487 = vld [vmem:[%s438 + $0x8] sm:$0xff]
        %v488 = vld [vmem:[%s438 + $0x10] sm:$0xff]
        %v489 = vld [vmem:[%s438 + $0x18] sm:$0xff]
        %v498 = vunpack.c.l.b16 %v471
        %v499 = vunpack.c.h.b16 %v471
        %v500 = vunpack.c.l.b16 %v472
        %v501 = vunpack.c.h.b16 %v472
        %v502 = vunpack.c.l.b16 %v473
        %v503 = vunpack.c.h.b16 %v473
        %v504 = vunpack.c.l.b16 %v474
        %v505 = vunpack.c.h.b16 %v474
        %v506 = vunpack.c.l.b16 %v475
        %v507 = vunpack.c.h.b16 %v475
        %v508 = vunpack.c.l.b16 %v476
        %v509 = vunpack.c.h.b16 %v476
        %v510 = vunpack.c.l.b16 %v477
        %v511 = vunpack.c.h.b16 %v477
        %v512 = vunpack.c.l.b16 %v478
        %v513 = vunpack.c.h.b16 %v478
        %v514 = vpack.c.b16 %v500, %v498
        %v515 = vpack.c.b16 %v501, %v499
        %v516 = vpack.c.b16 %v504, %v502
        %v517 = vpack.c.b16 %v505, %v503
        %v518 = vpack.c.b16 %v508, %v506
        %v519 = vpack.c.b16 %v509, %v507
        %v520 = vpack.c.b16 %v512, %v510
        %v521 = vpack.c.b16 %v513, %v511
        %vm530 = vcmask 523264
        %v532 = vsel %vm530, 0, 0
        %534 = vmatprep.subr.bf16.mxu0 %v515
        %535 = vmatpush1.bf16.msra.mxu0 %v514
        %536 = vmatprep.subr.bf16.mxu0 %v517
        %537 = vmatpush1.bf16.msra.mxu0 %v516
        %538 = vmatprep.subr.bf16.mxu0 %v519
        %539 = vmatpush1.bf16.msra.mxu0 %v518
        %540 = vmatprep.subr.bf16.mxu0 %v521
        %541 = vmatpush1.bf16.msra.mxu0 %v520
        %542 = vmatprep.subr.bf16.mxu0 0
        %543 = vmatpush1.bf16.msra.mxu0 0
        %544 = vmatprep.subr.bf16.mxu0 0
        %545 = vmatpush1.bf16.msra.mxu0 0
        %546 = vmatprep.subr.bf16.mxu0 0
        %547 = vmatpush1.bf16.msra.mxu0 0
        %548 = vmatprep.subr.bf16.mxu0 0
        %549 = vmatpush1.bf16.msra.mxu0 0
        %550 = vmatprep.subr.bf16.mxu0 0
        %551 = vmatpush1.bf16.msra.mxu0 0
        %552 = vmatprep.subr.bf16.mxu0 0
        %553 = vmatpush1.bf16.msra.mxu0 0
        %554 = vmatprep.subr.bf16.mxu0 0
        %555 = vmatpush1.bf16.msra.mxu0 0
        %556 = vmatprep.subr.bf16.mxu0 0
        %557 = vmatpush1.bf16.msra.mxu0 0
        %558 = vmatprep.subr.bf16.mxu0 0
        %559 = vmatpush1.bf16.msra.mxu0 0
        %560 = vmatprep.subr.bf16.mxu0 0
        %561 = vmatpush1.bf16.msra.mxu0 0
        %562 = vmatprep.subr.bf16.mxu0 0
        %563 = vmatpush1.bf16.msra.mxu0 0
        %564 = vmatprep.subr.bf16.mxu0 0
        %565 = vmatpush1.bf16.msra.mxu0 0
        %566 = vmatprep.mubr.bf16.mxu0 0
        %567 = vmatmul.mubr.bf16.gmra.mrb[0].mxu0 %v532
        %v568 = vpop.f32.mrb[0].mxu0
        %v569 = vadd.f32 0.0, %v568
        %v570 = vpop.f32.mrb[0].mxu0
        %v571 = vadd.f32 0.0, %v570
        %v572 = vpop.f32.mrb[0].mxu0
        %v573 = vadd.f32 0.0, %v572
        %v574 = vpop.f32.mrb[0].mxu0
        %v575 = vadd.f32 0.0, %v574
        %576 = vdwg.mxu0
        %v577 = vadd.f32 %v486, %v569
        %v578 = vadd.f32 %v488, %v573
        %v579 = vxor.u32 %v577, 2147483648
        %v580 = vxor.u32 %v578, 2147483648
        %v581 = vmul.f32 %v579, 1.442695
        %v582 = vpow.pop %v581
        %v583 = vmul.f32 %v580, 1.442695
        %v584 = vpow.pop %v583
        %v585 = vadd.f32 %v582, 1.0
        %v586 = vadd.f32 %v584, 1.0
        %v587 = vrcp.pop %v585
        %v588 = vmul.f32 1.0, %v587
        %v589 = vrcp.pop %v586
        %v590 = vmul.f32 1.0, %v589
        %v591 = vadd.f32 %v571, %v484
        %v592 = vadd.f32 %v575, %v484
        %v593 = vmul.f32 %v588, %v591
        %v594 = vmul.f32 %v590, %v592
        %v595 = vadd.f32 %v487, %v593
        %v596 = vadd.f32 %v489, %v594
        %v597 = vtanh.pop %v595
        %v598 = vtanh.pop %v596
        %v599 = vsub.f32 0.0, %v597
        %v600 = vsub.f32 0.0, %v598
        %603 = vrot.lane.b32.xlu0 %v599, 64
        %v604 = vpop.permute.xlu0 %603
        %605 = vrot.lane.b32.xlu0 %v600, 64
        %v606 = vpop.permute.xlu0 %605
        %v609 = vmul.f32 %v588, %v604
        %v610 = vmul.f32 %v590, %v606
        %613 = vrot.lane.b32.xlu0 %v609, 64
        %v614 = vpop.permute.xlu0 %613
        %615 = vrot.lane.b32.xlu0 %v610, 64
        %v616 = vpop.permute.xlu0 %615
        %v619 = vadd.f32 %v597, %v614
        %v620 = vadd.f32 %v598, %v616
        %s621 = scalar_lea.vmem %s438, 32 [#allocation2]
        %v622 = vld [vmem:[%s621] sm:$0xff]
        %v623 = vld [vmem:[%s621 + $0x8] sm:$0xff]
        %v624 = vld [vmem:[%s621 + $0x10] sm:$0xff]
        %v625 = vld [vmem:[%s621 + $0x18] sm:$0xff]
        %v626 = vpack.c.bf16 %v620, %v619
        %v628 = vsel %vm530, %v626, 0
        %630 = vmatprep.subr.bf16.mxu0 %v515
        %631 = vmatpush1.bf16.msra.mxu0 %v514
        %632 = vmatprep.subr.bf16.mxu0 %v517
        %633 = vmatpush1.bf16.msra.mxu0 %v516
        %634 = vmatprep.subr.bf16.mxu0 %v519
        %635 = vmatpush1.bf16.msra.mxu0 %v518
        %636 = vmatprep.subr.bf16.mxu0 %v521
        %637 = vmatpush1.bf16.msra.mxu0 %v520
        %638 = vmatprep.subr.bf16.mxu0 0
        %639 = vmatpush1.bf16.msra.mxu0 0
        %640 = vmatprep.subr.bf16.mxu0 0
        %641 = vmatpush1.bf16.msra.mxu0 0
        %642 = vmatprep.subr.bf16.mxu0 0
        %643 = vmatpush1.bf16.msra.mxu0 0
        %644 = vmatprep.subr.bf16.mxu0 0
        %645 = vmatpush1.bf16.msra.mxu0 0
        %646 = vmatprep.subr.bf16.mxu0 0
        %647 = vmatpush1.bf16.msra.mxu0 0
        %648 = vmatprep.subr.bf16.mxu0 0
        %649 = vmatpush1.bf16.msra.mxu0 0
        %650 = vmatprep.subr.bf16.mxu0 0
        %651 = vmatpush1.bf16.msra.mxu0 0
        %652 = vmatprep.subr.bf16.mxu0 0
        %653 = vmatpush1.bf16.msra.mxu0 0
        %654 = vmatprep.subr.bf16.mxu0 0
        %655 = vmatpush1.bf16.msra.mxu0 0
        %656 = vmatprep.subr.bf16.mxu0 0
        %657 = vmatpush1.bf16.msra.mxu0 0
        %658 = vmatprep.subr.bf16.mxu0 0
        %659 = vmatpush1.bf16.msra.mxu0 0
        %660 = vmatprep.subr.bf16.mxu0 0
        %661 = vmatpush1.bf16.msra.mxu0 0
        %662 = vmatprep.mubr.bf16.mxu0 0
        %663 = vmatmul.mubr.bf16.gmra.mrb[0].mxu0 %v628
        %v664 = vpop.f32.mrb[0].mxu0
        %v665 = vadd.f32 0.0, %v664
        %v666 = vpop.f32.mrb[0].mxu0
        %v667 = vadd.f32 0.0, %v666
        %v668 = vpop.f32.mrb[0].mxu0
        %v669 = vadd.f32 0.0, %v668
        %v670 = vpop.f32.mrb[0].mxu0
        %v671 = vadd.f32 0.0, %v670
        %672 = vdwg.mxu0
        %v673 = vadd.f32 %v622, %v665
        %v674 = vadd.f32 %v624, %v669
        %v675 = vxor.u32 %v673, 2147483648
        %v676 = vxor.u32 %v674, 2147483648
        %v677 = vmul.f32 %v675, 1.442695
        %v678 = vpow.pop %v677
        %v679 = vmul.f32 %v676, 1.442695
        %v680 = vpow.pop %v679
        %v681 = vadd.f32 %v678, 1.0
        %v682 = vadd.f32 %v680, 1.0
        %v683 = vrcp.pop %v681
        %v684 = vmul.f32 1.0, %v683
        %v685 = vrcp.pop %v682
        %v686 = vmul.f32 1.0, %v685
        %v687 = vadd.f32 %v667, %v484
        %v688 = vadd.f32 %v671, %v484
        %v689 = vmul.f32 %v684, %v687
        %v690 = vmul.f32 %v686, %v688
        %v691 = vadd.f32 %v623, %v689
        %v692 = vadd.f32 %v625, %v690
        %v693 = vtanh.pop %v691
        %v694 = vtanh.pop %v692
        %v695 = vsub.f32 %v619, %v693
        %v696 = vsub.f32 %v620, %v694
        %699 = vrot.lane.b32.xlu0 %v695, 64
        %v700 = vpop.permute.xlu0 %699
        %701 = vrot.lane.b32.xlu0 %v696, 64
        %v702 = vpop.permute.xlu0 %701
        %v705 = vmul.f32 %v684, %v700
        %v706 = vmul.f32 %v686, %v702
        %709 = vrot.lane.b32.xlu0 %v705, 64
        %v710 = vpop.permute.xlu0 %709
        %711 = vrot.lane.b32.xlu0 %v706, 64
        %v712 = vpop.permute.xlu0 %711
        %v715 = vadd.f32 %v693, %v710
        %v716 = vadd.f32 %v694, %v712
        %s717 = scalar_lea.vmem %s438, 64 [#allocation2]
        %v718 = vld [vmem:[%s717] sm:$0xff]
        %v719 = vld [vmem:[%s717 + $0x8] sm:$0xff]
        %v720 = vld [vmem:[%s717 + $0x10] sm:$0xff]
        %v721 = vld [vmem:[%s717 + $0x18] sm:$0xff]
        %v722 = vpack.c.bf16 %v716, %v715
        %v724 = vsel %vm530, %v722, 0
        %726 = vmatprep.subr.bf16.mxu0 %v515
        %727 = vmatpush1.bf16.msra.mxu0 %v514
        %728 = vmatprep.subr.bf16.mxu0 %v517
        %729 = vmatpush1.bf16.msra.mxu0 %v516
        %730 = vmatprep.subr.bf16.mxu0 %v519
        %731 = vmatpush1.bf16.msra.mxu0 %v518
        %732 = vmatprep.subr.bf16.mxu0 %v521
        %733 = vmatpush1.bf16.msra.mxu0 %v520
        %734 = vmatprep.subr.bf16.mxu0 0
        %735 = vmatpush1.bf16.msra.mxu0 0
        %736 = vmatprep.subr.bf16.mxu0 0
        %737 = vmatpush1.bf16.msra.mxu0 0
        %738 = vmatprep.subr.bf16.mxu0 0
        %739 = vmatpush1.bf16.msra.mxu0 0
        %740 = vmatprep.subr.bf16.mxu0 0
        %741 = vmatpush1.bf16.msra.mxu0 0
        %742 = vmatprep.subr.bf16.mxu0 0
        %743 = vmatpush1.bf16.msra.mxu0 0
        %744 = vmatprep.subr.bf16.mxu0 0
        %745 = vmatpush1.bf16.msra.mxu0 0
        %746 = vmatprep.subr.bf16.mxu0 0
        %747 = vmatpush1.bf16.msra.mxu0 0
        %748 = vmatprep.subr.bf16.mxu0 0
        %749 = vmatpush1.bf16.msra.mxu0 0
        %750 = vmatprep.subr.bf16.mxu0 0
        %751 = vmatpush1.bf16.msra.mxu0 0
        %752 = vmatprep.subr.bf16.mxu0 0
        %753 = vmatpush1.bf16.msra.mxu0 0
        %754 = vmatprep.subr.bf16.mxu0 0
        %755 = vmatpush1.bf16.msra.mxu0 0
        %756 = vmatprep.subr.bf16.mxu0 0
        %757 = vmatpush1.bf16.msra.mxu0 0
        %758 = vmatprep.mubr.bf16.mxu0 0
        %759 = vmatmul.mubr.bf16.gmra.mrb[0].mxu0 %v724
        %v760 = vpop.f32.mrb[0].mxu0
        %v761 = vadd.f32 0.0, %v760
        %v762 = vpop.f32.mrb[0].mxu0
        %v763 = vadd.f32 0.0, %v762
        %v764 = vpop.f32.mrb[0].mxu0
        %v765 = vadd.f32 0.0, %v764
        %v766 = vpop.f32.mrb[0].mxu0
        %v767 = vadd.f32 0.0, %v766
        %768 = vdwg.mxu0
        %v769 = vadd.f32 %v718, %v761
        %v770 = vadd.f32 %v720, %v765
        %v771 = vxor.u32 %v769, 2147483648
        %v772 = vxor.u32 %v770, 2147483648
        %v773 = vmul.f32 %v771, 1.442695
        %v774 = vpow.pop %v773
        %v775 = vmul.f32 %v772, 1.442695
        %v776 = vpow.pop %v775
        %v777 = vadd.f32 %v774, 1.0
        %v778 = vadd.f32 %v776, 1.0
        %v779 = vrcp.pop %v777
        %v780 = vmul.f32 1.0, %v779
        %v781 = vrcp.pop %v778
        %v782 = vmul.f32 1.0, %v781
        %v783 = vadd.f32 %v763, %v484
        %v784 = vadd.f32 %v767, %v484
        %v785 = vmul.f32 %v780, %v783
        %v786 = vmul.f32 %v782, %v784
        %v787 = vadd.f32 %v719, %v785
        %v788 = vadd.f32 %v721, %v786
        %v789 = vtanh.pop %v787
        %v790 = vtanh.pop %v788
        %v791 = vsub.f32 %v715, %v789
        %v792 = vsub.f32 %v716, %v790
        %795 = vrot.lane.b32.xlu0 %v791, 64
        %v796 = vpop.permute.xlu0 %795
        %797 = vrot.lane.b32.xlu0 %v792, 64
        %v798 = vpop.permute.xlu0 %797
        %v801 = vmul.f32 %v780, %v796
        %v802 = vmul.f32 %v782, %v798
        %805 = vrot.lane.b32.xlu0 %v801, 64
        %v806 = vpop.permute.xlu0 %805
        %807 = vrot.lane.b32.xlu0 %v802, 64
        %v808 = vpop.permute.xlu0 %807
        %v811 = vadd.f32 %v789, %v806
        %v812 = vadd.f32 %v790, %v808
        %s813 = scalar_lea.vmem %s438, 96 [#allocation2]
        %v814 = vld [vmem:[%s813] sm:$0xff]
        %v815 = vld [vmem:[%s813 + $0x8] sm:$0xff]
        %v816 = vld [vmem:[%s813 + $0x10] sm:$0xff]
        %v817 = vld [vmem:[%s813 + $0x18] sm:$0xff]
        %v818 = vpack.c.bf16 %v812, %v811
        %v820 = vsel %vm530, %v818, 0
        %822 = vmatprep.subr.bf16.mxu0 %v515
        %823 = vmatpush1.bf16.msra.mxu0 %v514
        %824 = vmatprep.subr.bf16.mxu0 %v517
        %825 = vmatpush1.bf16.msra.mxu0 %v516
        %826 = vmatprep.subr.bf16.mxu0 %v519
        %827 = vmatpush1.bf16.msra.mxu0 %v518
        %828 = vmatprep.subr.bf16.mxu0 %v521
        %829 = vmatpush1.bf16.msra.mxu0 %v520
        %830 = vmatprep.subr.bf16.mxu0 0
        %831 = vmatpush1.bf16.msra.mxu0 0
        %832 = vmatprep.subr.bf16.mxu0 0
        %833 = vmatpush1.bf16.msra.mxu0 0
        %834 = vmatprep.subr.bf16.mxu0 0
        %835 = vmatpush1.bf16.msra.mxu0 0
        %836 = vmatprep.subr.bf16.mxu0 0
        %837 = vmatpush1.bf16.msra.mxu0 0
        %838 = vmatprep.subr.bf16.mxu0 0
        %839 = vmatpush1.bf16.msra.mxu0 0
        %840 = vmatprep.subr.bf16.mxu0 0
        %841 = vmatpush1.bf16.msra.mxu0 0
        %842 = vmatprep.subr.bf16.mxu0 0
        %843 = vmatpush1.bf16.msra.mxu0 0
        %844 = vmatprep.subr.bf16.mxu0 0
        %845 = vmatpush1.bf16.msra.mxu0 0
        %846 = vmatprep.subr.bf16.mxu0 0
        %847 = vmatpush1.bf16.msra.mxu0 0
        %848 = vmatprep.subr.bf16.mxu0 0
        %849 = vmatpush1.bf16.msra.mxu0 0
        %850 = vmatprep.subr.bf16.mxu0 0
        %851 = vmatpush1.bf16.msra.mxu0 0
        %852 = vmatprep.subr.bf16.mxu0 0
        %853 = vmatpush1.bf16.msra.mxu0 0
        %854 = vmatprep.mubr.bf16.mxu0 0
        %855 = vmatmul.mubr.bf16.gmra.mrb[0].mxu0 %v820
        %v856 = vpop.f32.mrb[0].mxu0
        %v857 = vadd.f32 0.0, %v856
        %v858 = vpop.f32.mrb[0].mxu0
        %v859 = vadd.f32 0.0, %v858
        %v860 = vpop.f32.mrb[0].mxu0
        %v861 = vadd.f32 0.0, %v860
        %v862 = vpop.f32.mrb[0].mxu0
        %v863 = vadd.f32 0.0, %v862
        %864 = vdwg.mxu0
        %v865 = vadd.f32 %v814, %v857
        %v866 = vadd.f32 %v816, %v861
        %v867 = vxor.u32 %v865, 2147483648
        %v868 = vxor.u32 %v866, 2147483648
        %v869 = vmul.f32 %v867, 1.442695
        %v870 = vpow.pop %v869
        %v871 = vmul.f32 %v868, 1.442695
        %v872 = vpow.pop %v871
        %v873 = vadd.f32 %v870, 1.0
        %v874 = vadd.f32 %v872, 1.0
        %v875 = vrcp.pop %v873
        %v876 = vmul.f32 1.0, %v875
        %v877 = vrcp.pop %v874
        %v878 = vmul.f32 1.0, %v877
        %v879 = vadd.f32 %v859, %v484
        %v880 = vadd.f32 %v863, %v484
        %v881 = vmul.f32 %v876, %v879
        %v882 = vmul.f32 %v878, %v880
        %v883 = vadd.f32 %v815, %v881
        %v884 = vadd.f32 %v817, %v882
        %v885 = vtanh.pop %v883
        %v886 = vtanh.pop %v884
        %v887 = vsub.f32 %v811, %v885
        %v888 = vsub.f32 %v812, %v886
        %891 = vrot.lane.b32.xlu0 %v887, 64
        %v892 = vpop.permute.xlu0 %891
        %893 = vrot.lane.b32.xlu0 %v888, 64
        %v894 = vpop.permute.xlu0 %893
        %v897 = vmul.f32 %v876, %v892
        %v898 = vmul.f32 %v878, %v894
        %901 = vrot.lane.b32.xlu0 %v897, 64
        %v902 = vpop.permute.xlu0 %901
        %903 = vrot.lane.b32.xlu0 %v898, 64
        %v904 = vpop.permute.xlu0 %903
        %v907 = vadd.f32 %v885, %v902
        %v908 = vadd.f32 %v886, %v904
        %s909 = scalar_lea.vmem %s438, 128 [#allocation2]
        %v910 = vld [vmem:[%s909] sm:$0xff]
        %v911 = vld [vmem:[%s909 + $0x8] sm:$0xff]
        %v912 = vld [vmem:[%s909 + $0x10] sm:$0xff]
        %v913 = vld [vmem:[%s909 + $0x18] sm:$0xff]
        %v914 = vpack.c.bf16 %v908, %v907
        %v916 = vsel %vm530, %v914, 0
        %918 = vmatprep.subr.bf16.mxu0 %v515
        %919 = vmatpush1.bf16.msra.mxu0 %v514
        %920 = vmatprep.subr.bf16.mxu0 %v517
        %921 = vmatpush1.bf16.msra.mxu0 %v516
        %922 = vmatprep.subr.bf16.mxu0 %v519
        %923 = vmatpush1.bf16.msra.mxu0 %v518
        %924 = vmatprep.subr.bf16.mxu0 %v521
        %925 = vmatpush1.bf16.msra.mxu0 %v520
        %926 = vmatprep.subr.bf16.mxu0 0
        %927 = vmatpush1.bf16.msra.mxu0 0
        %928 = vmatprep.subr.bf16.mxu0 0
        %929 = vmatpush1.bf16.msra.mxu0 0
        %930 = vmatprep.subr.bf16.mxu0 0
        %931 = vmatpush1.bf16.msra.mxu0 0
        %932 = vmatprep.subr.bf16.mxu0 0
        %933 = vmatpush1.bf16.msra.mxu0 0
        %934 = vmatprep.subr.bf16.mxu0 0
        %935 = vmatpush1.bf16.msra.mxu0 0
        %936 = vmatprep.subr.bf16.mxu0 0
        %937 = vmatpush1.bf16.msra.mxu0 0
        %938 = vmatprep.subr.bf16.mxu0 0
        %939 = vmatpush1.bf16.msra.mxu0 0
        %940 = vmatprep.subr.bf16.mxu0 0
        %941 = vmatpush1.bf16.msra.mxu0 0
        %942 = vmatprep.subr.bf16.mxu0 0
        %943 = vmatpush1.bf16.msra.mxu0 0
        %944 = vmatprep.subr.bf16.mxu0 0
        %945 = vmatpush1.bf16.msra.mxu0 0
        %946 = vmatprep.subr.bf16.mxu0 0
        %947 = vmatpush1.bf16.msra.mxu0 0
        %948 = vmatprep.subr.bf16.mxu0 0
        %949 = vmatpush1.bf16.msra.mxu0 0
        %950 = vmatprep.mubr.bf16.mxu0 0
        %951 = vmatmul.mubr.bf16.gmra.mrb[0].mxu0 %v916
        %v952 = vpop.f32.mrb[0].mxu0
        %v953 = vadd.f32 0.0, %v952
        %v954 = vpop.f32.mrb[0].mxu0
        %v955 = vadd.f32 0.0, %v954
        %v956 = vpop.f32.mrb[0].mxu0
        %v957 = vadd.f32 0.0, %v956
        %v958 = vpop.f32.mrb[0].mxu0
        %v959 = vadd.f32 0.0, %v958
        %960 = vdwg.mxu0
        %v961 = vadd.f32 %v910, %v953
        %v962 = vadd.f32 %v912, %v957
        %v963 = vxor.u32 %v961, 2147483648
        %v964 = vxor.u32 %v962, 2147483648
        %v965 = vmul.f32 %v963, 1.442695
        %v966 = vpow.pop %v965
        %v967 = vmul.f32 %v964, 1.442695
        %v968 = vpow.pop %v967
        %v969 = vadd.f32 %v966, 1.0
        %v970 = vadd.f32 %v968, 1.0
        %v971 = vrcp.pop %v969
        %v972 = vmul.f32 1.0, %v971
        %v973 = vrcp.pop %v970
        %v974 = vmul.f32 1.0, %v973
        %v975 = vadd.f32 %v955, %v484
        %v976 = vadd.f32 %v959, %v484
        %v977 = vmul.f32 %v972, %v975
        %v978 = vmul.f32 %v974, %v976
        %v979 = vadd.f32 %v911, %v977
        %v980 = vadd.f32 %v913, %v978
        %v981 = vtanh.pop %v979
        %v982 = vtanh.pop %v980
        %v983 = vsub.f32 %v907, %v981
        %v984 = vsub.f32 %v908, %v982
        %987 = vrot.lane.b32.xlu0 %v983, 64
        %v988 = vpop.permute.xlu0 %987
        %989 = vrot.lane.b32.xlu0 %v984, 64
        %v990 = vpop.permute.xlu0 %989
        %v993 = vmul.f32 %v972, %v988
        %v994 = vmul.f32 %v974, %v990
        %997 = vrot.lane.b32.xlu0 %v993, 64
        %v998 = vpop.permute.xlu0 %997
        %999 = vrot.lane.b32.xlu0 %v994, 64
        %v1000 = vpop.permute.xlu0 %999
        %v1003 = vadd.f32 %v981, %v998
        %v1004 = vadd.f32 %v982, %v1000
        %s1005 = scalar_lea.vmem %s438, 160 [#allocation2]
        %v1006 = vld [vmem:[%s1005] sm:$0xff]
        %v1007 = vld [vmem:[%s1005 + $0x8] sm:$0xff]
        %v1008 = vld [vmem:[%s1005 + $0x10] sm:$0xff]
        %v1009 = vld [vmem:[%s1005 + $0x18] sm:$0xff]
        %v1010 = vpack.c.bf16 %v1004, %v1003
        %v1012 = vsel %vm530, %v1010, 0
        %1014 = vmatprep.subr.bf16.mxu0 %v515
        %1015 = vmatpush1.bf16.msra.mxu0 %v514
        %1016 = vmatprep.subr.bf16.mxu0 %v517
        %1017 = vmatpush1.bf16.msra.mxu0 %v516
        %1018 = vmatprep.subr.bf16.mxu0 %v519
        %1019 = vmatpush1.bf16.msra.mxu0 %v518
        %1020 = vmatprep.subr.bf16.mxu0 %v521
        %1021 = vmatpush1.bf16.msra.mxu0 %v520
        %1022 = vmatprep.subr.bf16.mxu0 0
        %1023 = vmatpush1.bf16.msra.mxu0 0
        %1024 = vmatprep.subr.bf16.mxu0 0
        %1025 = vmatpush1.bf16.msra.mxu0 0
        %1026 = vmatprep.subr.bf16.mxu0 0
        %1027 = vmatpush1.bf16.msra.mxu0 0
        %1028 = vmatprep.subr.bf16.mxu0 0
        %1029 = vmatpush1.bf16.msra.mxu0 0
        %1030 = vmatprep.subr.bf16.mxu0 0
        %1031 = vmatpush1.bf16.msra.mxu0 0
        %1032 = vmatprep.subr.bf16.mxu0 0
        %1033 = vmatpush1.bf16.msra.mxu0 0
        %1034 = vmatprep.subr.bf16.mxu0 0
        %1035 = vmatpush1.bf16.msra.mxu0 0
        %1036 = vmatprep.subr.bf16.mxu0 0
        %1037 = vmatpush1.bf16.msra.mxu0 0
        %1038 = vmatprep.subr.bf16.mxu0 0
        %1039 = vmatpush1.bf16.msra.mxu0 0
        %1040 = vmatprep.subr.bf16.mxu0 0
        %1041 = vmatpush1.bf16.msra.mxu0 0
        %1042 = vmatprep.subr.bf16.mxu0 0
        %1043 = vmatpush1.bf16.msra.mxu0 0
        %1044 = vmatprep.subr.bf16.mxu0 0
        %1045 = vmatpush1.bf16.msra.mxu0 0
        %1046 = vmatprep.mubr.bf16.mxu0 0
        %1047 = vmatmul.mubr.bf16.gmra.mrb[0].mxu0 %v1012
        %v1048 = vpop.f32.mrb[0].mxu0
        %v1049 = vadd.f32 0.0, %v1048
        %v1050 = vpop.f32.mrb[0].mxu0
        %v1051 = vadd.f32 0.0, %v1050
        %v1052 = vpop.f32.mrb[0].mxu0
        %v1053 = vadd.f32 0.0, %v1052
        %v1054 = vpop.f32.mrb[0].mxu0
        %v1055 = vadd.f32 0.0, %v1054
        %1056 = vdwg.mxu0
        %v1057 = vadd.f32 %v1006, %v1049
        %v1058 = vadd.f32 %v1008, %v1053
        %v1059 = vxor.u32 %v1057, 2147483648
        %v1060 = vxor.u32 %v1058, 2147483648
        %v1061 = vmul.f32 %v1059, 1.442695
        %v1062 = vpow.pop %v1061
        %v1063 = vmul.f32 %v1060, 1.442695
        %v1064 = vpow.pop %v1063
        %v1065 = vadd.f32 %v1062, 1.0
        %v1066 = vadd.f32 %v1064, 1.0
        %v1067 = vrcp.pop %v1065
        %v1068 = vmul.f32 1.0, %v1067
        %v1069 = vrcp.pop %v1066
        %v1070 = vmul.f32 1.0, %v1069
        %v1071 = vadd.f32 %v1051, %v484
        %v1072 = vadd.f32 %v1055, %v484
        %v1073 = vmul.f32 %v1068, %v1071
        %v1074 = vmul.f32 %v1070, %v1072
        %v1075 = vadd.f32 %v1007, %v1073
        %v1076 = vadd.f32 %v1009, %v1074
        %v1077 = vtanh.pop %v1075
        %v1078 = vtanh.pop %v1076
        %v1079 = vsub.f32 %v1003, %v1077
        %v1080 = vsub.f32 %v1004, %v1078
        %1083 = vrot.lane.b32.xlu0 %v1079, 64
        %v1084 = vpop.permute.xlu0 %1083
        %1085 = vrot.lane.b32.xlu0 %v1080, 64
        %v1086 = vpop.permute.xlu0 %1085
        %v1089 = vmul.f32 %v1068, %v1084
        %v1090 = vmul.f32 %v1070, %v1086
        %1093 = vrot.lane.b32.xlu0 %v1089, 64
        %v1094 = vpop.permute.xlu0 %1093
        %1095 = vrot.lane.b32.xlu0 %v1090, 64
        %v1096 = vpop.permute.xlu0 %1095
        %v1099 = vadd.f32 %v1077, %v1094
        %v1100 = vadd.f32 %v1078, %v1096
        %s1101 = scalar_lea.vmem %s438, 192 [#allocation2]
        %v1102 = vld [vmem:[%s1101] sm:$0xff]
        %v1103 = vld [vmem:[%s1101 + $0x8] sm:$0xff]
        %v1104 = vld [vmem:[%s1101 + $0x10] sm:$0xff]
        %v1105 = vld [vmem:[%s1101 + $0x18] sm:$0xff]
        %v1106 = vpack.c.bf16 %v1100, %v1099
        %v1108 = vsel %vm530, %v1106, 0
        %1110 = vmatprep.subr.bf16.mxu0 %v515
        %1111 = vmatpush1.bf16.msra.mxu0 %v514
        %1112 = vmatprep.subr.bf16.mxu0 %v517
        %1113 = vmatpush1.bf16.msra.mxu0 %v516
        %1114 = vmatprep.subr.bf16.mxu0 %v519
        %1115 = vmatpush1.bf16.msra.mxu0 %v518
        %1116 = vmatprep.subr.bf16.mxu0 %v521
        %1117 = vmatpush1.bf16.msra.mxu0 %v520
        %1118 = vmatprep.subr.bf16.mxu0 0
        %1119 = vmatpush1.bf16.msra.mxu0 0
        %1120 = vmatprep.subr.bf16.mxu0 0
        %1121 = vmatpush1.bf16.msra.mxu0 0
        %1122 = vmatprep.subr.bf16.mxu0 0
        %1123 = vmatpush1.bf16.msra.mxu0 0
        %1124 = vmatprep.subr.bf16.mxu0 0
        %1125 = vmatpush1.bf16.msra.mxu0 0
        %1126 = vmatprep.subr.bf16.mxu0 0
        %1127 = vmatpush1.bf16.msra.mxu0 0
        %1128 = vmatprep.subr.bf16.mxu0 0
        %1129 = vmatpush1.bf16.msra.mxu0 0
        %1130 = vmatprep.subr.bf16.mxu0 0
        %1131 = vmatpush1.bf16.msra.mxu0 0
        %1132 = vmatprep.subr.bf16.mxu0 0
        %1133 = vmatpush1.bf16.msra.mxu0 0
        %1134 = vmatprep.subr.bf16.mxu0 0
        %1135 = vmatpush1.bf16.msra.mxu0 0
        %1136 = vmatprep.subr.bf16.mxu0 0
        %1137 = vmatpush1.bf16.msra.mxu0 0
        %1138 = vmatprep.subr.bf16.mxu0 0
        %1139 = vmatpush1.bf16.msra.mxu0 0
        %1140 = vmatprep.subr.bf16.mxu0 0
        %1141 = vmatpush1.bf16.msra.mxu0 0
        %1142 = vmatprep.mubr.bf16.mxu0 0
        %1143 = vmatmul.mubr.bf16.gmra.mrb[0].mxu0 %v1108
        %v1144 = vpop.f32.mrb[0].mxu0
        %v1145 = vadd.f32 0.0, %v1144
        %v1146 = vpop.f32.mrb[0].mxu0
        %v1147 = vadd.f32 0.0, %v1146
        %v1148 = vpop.f32.mrb[0].mxu0
        %v1149 = vadd.f32 0.0, %v1148
        %v1150 = vpop.f32.mrb[0].mxu0
        %v1151 = vadd.f32 0.0, %v1150
        %1152 = vdwg.mxu0
        %v1153 = vadd.f32 %v1102, %v1145
        %v1154 = vadd.f32 %v1104, %v1149
        %v1155 = vxor.u32 %v1153, 2147483648
        %v1156 = vxor.u32 %v1154, 2147483648
        %v1157 = vmul.f32 %v1155, 1.442695
        %v1158 = vpow.pop %v1157
        %v1159 = vmul.f32 %v1156, 1.442695
        %v1160 = vpow.pop %v1159
        %v1161 = vadd.f32 %v1158, 1.0
        %v1162 = vadd.f32 %v1160, 1.0
        %v1163 = vrcp.pop %v1161
        %v1164 = vmul.f32 1.0, %v1163
        %v1165 = vrcp.pop %v1162
        %v1166 = vmul.f32 1.0, %v1165
        %v1167 = vadd.f32 %v1147, %v484
        %v1168 = vadd.f32 %v1151, %v484
        %v1169 = vmul.f32 %v1164, %v1167
        %v1170 = vmul.f32 %v1166, %v1168
        %v1171 = vadd.f32 %v1103, %v1169
        %v1172 = vadd.f32 %v1105, %v1170
        %v1173 = vtanh.pop %v1171
        %v1174 = vtanh.pop %v1172
        %v1175 = vsub.f32 %v1099, %v1173
        %v1176 = vsub.f32 %v1100, %v1174
        %1179 = vrot.lane.b32.xlu0 %v1175, 64
        %v1180 = vpop.permute.xlu0 %1179
        %1181 = vrot.lane.b32.xlu0 %v1176, 64
        %v1182 = vpop.permute.xlu0 %1181
        %v1185 = vmul.f32 %v1164, %v1180
        %v1186 = vmul.f32 %v1166, %v1182
        %1189 = vrot.lane.b32.xlu0 %v1185, 64
        %v1190 = vpop.permute.xlu0 %1189
        %1191 = vrot.lane.b32.xlu0 %v1186, 64
        %v1192 = vpop.permute.xlu0 %1191
        %v1195 = vadd.f32 %v1173, %v1190
        %v1196 = vadd.f32 %v1174, %v1192
        %s1197 = scalar_lea.vmem %s438, 224 [#allocation2]
        %v1198 = vld [vmem:[%s1197] sm:$0xff]
        %v1199 = vld [vmem:[%s1197 + $0x8] sm:$0xff]
        %v1200 = vld [vmem:[%s1197 + $0x10] sm:$0xff]
        %v1201 = vld [vmem:[%s1197 + $0x18] sm:$0xff]
        %v1202 = vpack.c.bf16 %v1196, %v1195
        %v1204 = vsel %vm530, %v1202, 0
        %1206 = vmatprep.subr.bf16.mxu0 %v515
        %1207 = vmatpush1.bf16.msra.mxu0 %v514
        %1208 = vmatprep.subr.bf16.mxu0 %v517
        %1209 = vmatpush1.bf16.msra.mxu0 %v516
        %1210 = vmatprep.subr.bf16.mxu0 %v519
        %1211 = vmatpush1.bf16.msra.mxu0 %v518
        %1212 = vmatprep.subr.bf16.mxu0 %v521
        %1213 = vmatpush1.bf16.msra.mxu0 %v520
        %1214 = vmatprep.subr.bf16.mxu0 0
        %1215 = vmatpush1.bf16.msra.mxu0 0
        %1216 = vmatprep.subr.bf16.mxu0 0
        %1217 = vmatpush1.bf16.msra.mxu0 0
        %1218 = vmatprep.subr.bf16.mxu0 0
        %1219 = vmatpush1.bf16.msra.mxu0 0
        %1220 = vmatprep.subr.bf16.mxu0 0
        %1221 = vmatpush1.bf16.msra.mxu0 0
        %1222 = vmatprep.subr.bf16.mxu0 0
        %1223 = vmatpush1.bf16.msra.mxu0 0
        %1224 = vmatprep.subr.bf16.mxu0 0
        %1225 = vmatpush1.bf16.msra.mxu0 0
        %1226 = vmatprep.subr.bf16.mxu0 0
        %1227 = vmatpush1.bf16.msra.mxu0 0
        %1228 = vmatprep.subr.bf16.mxu0 0
        %1229 = vmatpush1.bf16.msra.mxu0 0
        %1230 = vmatprep.subr.bf16.mxu0 0
        %1231 = vmatpush1.bf16.msra.mxu0 0
        %1232 = vmatprep.subr.bf16.mxu0 0
        %1233 = vmatpush1.bf16.msra.mxu0 0
        %1234 = vmatprep.subr.bf16.mxu0 0
        %1235 = vmatpush1.bf16.msra.mxu0 0
        %1236 = vmatprep.subr.bf16.mxu0 0
        %1237 = vmatpush1.bf16.msra.mxu0 0
        %1238 = vmatprep.mubr.bf16.mxu0 0
        %1239 = vmatmul.mubr.bf16.gmra.mrb[0].mxu0 %v1204
        %v1240 = vpop.f32.mrb[0].mxu0
        %v1241 = vadd.f32 0.0, %v1240
        %v1242 = vpop.f32.mrb[0].mxu0
        %v1243 = vadd.f32 0.0, %v1242
        %v1244 = vpop.f32.mrb[0].mxu0
        %v1245 = vadd.f32 0.0, %v1244
        %v1246 = vpop.f32.mrb[0].mxu0
        %v1247 = vadd.f32 0.0, %v1246
        %1248 = vdwg.mxu0
        %v1249 = vadd.f32 %v1198, %v1241
        %v1250 = vadd.f32 %v1200, %v1245
        %v1251 = vxor.u32 %v1249, 2147483648
        %v1252 = vxor.u32 %v1250, 2147483648
        %v1253 = vmul.f32 %v1251, 1.442695
        %v1254 = vpow.pop %v1253
        %v1255 = vmul.f32 %v1252, 1.442695
        %v1256 = vpow.pop %v1255
        %v1257 = vadd.f32 %v1254, 1.0
        %v1258 = vadd.f32 %v1256, 1.0
        %v1259 = vrcp.pop %v1257
        %v1260 = vmul.f32 1.0, %v1259
        %v1261 = vrcp.pop %v1258
        %v1262 = vmul.f32 1.0, %v1261
        %v1263 = vadd.f32 %v1243, %v484
        %v1264 = vadd.f32 %v1247, %v484
        %v1265 = vmul.f32 %v1260, %v1263
        %v1266 = vmul.f32 %v1262, %v1264
        %v1267 = vadd.f32 %v1199, %v1265
        %v1268 = vadd.f32 %v1201, %v1266
        %v1269 = vtanh.pop %v1267
        %v1270 = vtanh.pop %v1268
        %v1271 = vsub.f32 %v1195, %v1269
        %v1272 = vsub.f32 %v1196, %v1270
        %1275 = vrot.lane.b32.xlu0 %v1271, 64
        %v1276 = vpop.permute.xlu0 %1275
        %1277 = vrot.lane.b32.xlu0 %v1272, 64
        %v1278 = vpop.permute.xlu0 %1277
        %v1281 = vmul.f32 %v1260, %v1276
        %v1282 = vmul.f32 %v1262, %v1278
        %1285 = vrot.lane.b32.xlu0 %v1281, 64
        %v1286 = vpop.permute.xlu0 %1285
        %1287 = vrot.lane.b32.xlu0 %v1282, 64
        %v1288 = vpop.permute.xlu0 %1287
        %v1291 = vadd.f32 %v1269, %v1286
        %v1292 = vadd.f32 %v1270, %v1288
        %s1293 = scalar_lea.vmem %s438, 256 [#allocation2]
        %v1294 = vld [vmem:[%s1293] sm:$0xff]
        %v1295 = vld [vmem:[%s1293 + $0x8] sm:$0xff]
        %v1296 = vld [vmem:[%s1293 + $0x10] sm:$0xff]
        %v1297 = vld [vmem:[%s1293 + $0x18] sm:$0xff]
        %v1298 = vpack.c.bf16 %v1292, %v1291
        %v1300 = vsel %vm530, %v1298, 0
        %1302 = vmatprep.subr.bf16.mxu0 %v515
        %1303 = vmatpush1.bf16.msra.mxu0 %v514
        %1304 = vmatprep.subr.bf16.mxu0 %v517
        %1305 = vmatpush1.bf16.msra.mxu0 %v516
        %1306 = vmatprep.subr.bf16.mxu0 %v519
        %1307 = vmatpush1.bf16.msra.mxu0 %v518
        %1308 = vmatprep.subr.bf16.mxu0 %v521
        %1309 = vmatpush1.bf16.msra.mxu0 %v520
        %1310 = vmatprep.subr.bf16.mxu0 0
        %1311 = vmatpush1.bf16.msra.mxu0 0
        %1312 = vmatprep.subr.bf16.mxu0 0
        %1313 = vmatpush1.bf16.msra.mxu0 0
        %1314 = vmatprep.subr.bf16.mxu0 0
        %1315 = vmatpush1.bf16.msra.mxu0 0
        %1316 = vmatprep.subr.bf16.mxu0 0
        %1317 = vmatpush1.bf16.msra.mxu0 0
        %1318 = vmatprep.subr.bf16.mxu0 0
        %1319 = vmatpush1.bf16.msra.mxu0 0
        %1320 = vmatprep.subr.bf16.mxu0 0
        %1321 = vmatpush1.bf16.msra.mxu0 0
        %1322 = vmatprep.subr.bf16.mxu0 0
        %1323 = vmatpush1.bf16.msra.mxu0 0
        %1324 = vmatprep.subr.bf16.mxu0 0
        %1325 = vmatpush1.bf16.msra.mxu0 0
        %1326 = vmatprep.subr.bf16.mxu0 0
        %1327 = vmatpush1.bf16.msra.mxu0 0
        %1328 = vmatprep.subr.bf16.mxu0 0
        %1329 = vmatpush1.bf16.msra.mxu0 0
        %1330 = vmatprep.subr.bf16.mxu0 0
        %1331 = vmatpush1.bf16.msra.mxu0 0
        %1332 = vmatprep.subr.bf16.mxu0 0
        %1333 = vmatpush1.bf16.msra.mxu0 0
        %1334 = vmatprep.mubr.bf16.mxu0 0
        %1335 = vmatmul.mubr.bf16.gmra.mrb[0].mxu0 %v1300
        %v1336 = vpop.f32.mrb[0].mxu0
        %v1337 = vadd.f32 0.0, %v1336
        %v1338 = vpop.f32.mrb[0].mxu0
        %v1339 = vadd.f32 0.0, %v1338
        %v1340 = vpop.f32.mrb[0].mxu0
        %v1341 = vadd.f32 0.0, %v1340
        %v1342 = vpop.f32.mrb[0].mxu0
        %v1343 = vadd.f32 0.0, %v1342
        %1344 = vdwg.mxu0
        %v1345 = vadd.f32 %v1294, %v1337
        %v1346 = vadd.f32 %v1296, %v1341
        %v1347 = vxor.u32 %v1345, 2147483648
        %v1348 = vxor.u32 %v1346, 2147483648
        %v1349 = vmul.f32 %v1347, 1.442695
        %v1350 = vpow.pop %v1349
        %v1351 = vmul.f32 %v1348, 1.442695
        %v1352 = vpow.pop %v1351
        %v1353 = vadd.f32 %v1350, 1.0
        %v1354 = vadd.f32 %v1352, 1.0
        %v1355 = vrcp.pop %v1353
        %v1356 = vmul.f32 1.0, %v1355
        %v1357 = vrcp.pop %v1354
        %v1358 = vmul.f32 1.0, %v1357
        %v1359 = vadd.f32 %v1339, %v484
        %v1360 = vadd.f32 %v1343, %v484
        %v1361 = vmul.f32 %v1356, %v1359
        %v1362 = vmul.f32 %v1358, %v1360
        %v1363 = vadd.f32 %v1295, %v1361
        %v1364 = vadd.f32 %v1297, %v1362
        %v1365 = vtanh.pop %v1363
        %v1366 = vtanh.pop %v1364
        %v1367 = vsub.f32 %v1291, %v1365
        %v1368 = vsub.f32 %v1292, %v1366
        %1371 = vrot.lane.b32.xlu0 %v1367, 64
        %v1372 = vpop.permute.xlu0 %1371
        %1373 = vrot.lane.b32.xlu0 %v1368, 64
        %v1374 = vpop.permute.xlu0 %1373
        %v1377 = vmul.f32 %v1356, %v1372
        %v1378 = vmul.f32 %v1358, %v1374
        %1381 = vrot.lane.b32.xlu0 %v1377, 64
        %v1382 = vpop.permute.xlu0 %1381
        %1383 = vrot.lane.b32.xlu0 %v1378, 64
        %v1384 = vpop.permute.xlu0 %1383
        %v1387 = vadd.f32 %v1365, %v1382
        %v1388 = vadd.f32 %v1366, %v1384
        %s1389 = scalar_lea.vmem %s438, 288 [#allocation2]
        %v1390 = vld [vmem:[%s1389] sm:$0xff]
        %v1391 = vld [vmem:[%s1389 + $0x8] sm:$0xff]
        %v1392 = vld [vmem:[%s1389 + $0x10] sm:$0xff]
        %v1393 = vld [vmem:[%s1389 + $0x18] sm:$0xff]
        %v1394 = vpack.c.bf16 %v1388, %v1387
        %v1396 = vsel %vm530, %v1394, 0
        %1398 = vmatprep.subr.bf16.mxu0 %v515
        %1399 = vmatpush1.bf16.msra.mxu0 %v514
        %1400 = vmatprep.subr.bf16.mxu0 %v517
        %1401 = vmatpush1.bf16.msra.mxu0 %v516
        %1402 = vmatprep.subr.bf16.mxu0 %v519
        %1403 = vmatpush1.bf16.msra.mxu0 %v518
        %1404 = vmatprep.subr.bf16.mxu0 %v521
        %1405 = vmatpush1.bf16.msra.mxu0 %v520
        %1406 = vmatprep.subr.bf16.mxu0 0
        %1407 = vmatpush1.bf16.msra.mxu0 0
        %1408 = vmatprep.subr.bf16.mxu0 0
        %1409 = vmatpush1.bf16.msra.mxu0 0
        %1410 = vmatprep.subr.bf16.mxu0 0
        %1411 = vmatpush1.bf16.msra.mxu0 0
        %1412 = vmatprep.subr.bf16.mxu0 0
        %1413 = vmatpush1.bf16.msra.mxu0 0
        %1414 = vmatprep.subr.bf16.mxu0 0
        %1415 = vmatpush1.bf16.msra.mxu0 0
        %1416 = vmatprep.subr.bf16.mxu0 0
        %1417 = vmatpush1.bf16.msra.mxu0 0
        %1418 = vmatprep.subr.bf16.mxu0 0
        %1419 = vmatpush1.bf16.msra.mxu0 0
        %1420 = vmatprep.subr.bf16.mxu0 0
        %1421 = vmatpush1.bf16.msra.mxu0 0
        %1422 = vmatprep.subr.bf16.mxu0 0
        %1423 = vmatpush1.bf16.msra.mxu0 0
        %1424 = vmatprep.subr.bf16.mxu0 0
        %1425 = vmatpush1.bf16.msra.mxu0 0
        %1426 = vmatprep.subr.bf16.mxu0 0
        %1427 = vmatpush1.bf16.msra.mxu0 0
        %1428 = vmatprep.subr.bf16.mxu0 0
        %1429 = vmatpush1.bf16.msra.mxu0 0
        %1430 = vmatprep.mubr.bf16.mxu0 0
        %1431 = vmatmul.mubr.bf16.gmra.mrb[0].mxu0 %v1396
        %v1432 = vpop.f32.mrb[0].mxu0
        %v1433 = vadd.f32 0.0, %v1432
        %v1434 = vpop.f32.mrb[0].mxu0
        %v1435 = vadd.f32 0.0, %v1434
        %v1436 = vpop.f32.mrb[0].mxu0
        %v1437 = vadd.f32 0.0, %v1436
        %v1438 = vpop.f32.mrb[0].mxu0
        %v1439 = vadd.f32 0.0, %v1438
        %1440 = vdwg.mxu0
        %v1441 = vadd.f32 %v1390, %v1433
        %v1442 = vadd.f32 %v1392, %v1437
        %v1443 = vxor.u32 %v1441, 2147483648
        %v1444 = vxor.u32 %v1442, 2147483648
        %v1445 = vmul.f32 %v1443, 1.442695
        %v1446 = vpow.pop %v1445
        %v1447 = vmul.f32 %v1444, 1.442695
        %v1448 = vpow.pop %v1447
        %v1449 = vadd.f32 %v1446, 1.0
        %v1450 = vadd.f32 %v1448, 1.0
        %v1451 = vrcp.pop %v1449
        %v1452 = vmul.f32 1.0, %v1451
        %v1453 = vrcp.pop %v1450
        %v1454 = vmul.f32 1.0, %v1453
        %v1455 = vadd.f32 %v1435, %v484
        %v1456 = vadd.f32 %v1439, %v484
        %v1457 = vmul.f32 %v1452, %v1455
        %v1458 = vmul.f32 %v1454, %v1456
        %v1459 = vadd.f32 %v1391, %v1457
        %v1460 = vadd.f32 %v1393, %v1458
        %v1461 = vtanh.pop %v1459
        %v1462 = vtanh.pop %v1460
        %v1463 = vsub.f32 %v1387, %v1461
        %v1464 = vsub.f32 %v1388, %v1462
        %1467 = vrot.lane.b32.xlu0 %v1463, 64
        %v1468 = vpop.permute.xlu0 %1467
        %1469 = vrot.lane.b32.xlu0 %v1464, 64
        %v1470 = vpop.permute.xlu0 %1469
        %v1473 = vmul.f32 %v1452, %v1468
        %v1474 = vmul.f32 %v1454, %v1470
        %1477 = vrot.lane.b32.xlu0 %v1473, 64
        %v1478 = vpop.permute.xlu0 %1477
        %1479 = vrot.lane.b32.xlu0 %v1474, 64
        %v1480 = vpop.permute.xlu0 %1479
        %v1483 = vadd.f32 %v1461, %v1478
        %v1484 = vadd.f32 %v1462, %v1480
        %s1485 = scalar_lea.vmem %s438, 320 [#allocation2]
        %v1486 = vld [vmem:[%s1485] sm:$0xff]
        %v1487 = vld [vmem:[%s1485 + $0x8] sm:$0xff]
        %v1488 = vld [vmem:[%s1485 + $0x10] sm:$0xff]
        %v1489 = vld [vmem:[%s1485 + $0x18] sm:$0xff]
        %v1490 = vpack.c.bf16 %v1484, %v1483
        %v1492 = vsel %vm530, %v1490, 0
        %1494 = vmatprep.subr.bf16.mxu0 %v515
        %1495 = vmatpush1.bf16.msra.mxu0 %v514
        %1496 = vmatprep.subr.bf16.mxu0 %v517
        %1497 = vmatpush1.bf16.msra.mxu0 %v516
        %1498 = vmatprep.subr.bf16.mxu0 %v519
        %1499 = vmatpush1.bf16.msra.mxu0 %v518
        %1500 = vmatprep.subr.bf16.mxu0 %v521
        %1501 = vmatpush1.bf16.msra.mxu0 %v520
        %1502 = vmatprep.subr.bf16.mxu0 0
        %1503 = vmatpush1.bf16.msra.mxu0 0
        %1504 = vmatprep.subr.bf16.mxu0 0
        %1505 = vmatpush1.bf16.msra.mxu0 0
        %1506 = vmatprep.subr.bf16.mxu0 0
        %1507 = vmatpush1.bf16.msra.mxu0 0
        %1508 = vmatprep.subr.bf16.mxu0 0
        %1509 = vmatpush1.bf16.msra.mxu0 0
        %1510 = vmatprep.subr.bf16.mxu0 0
        %1511 = vmatpush1.bf16.msra.mxu0 0
        %1512 = vmatprep.subr.bf16.mxu0 0
        %1513 = vmatpush1.bf16.msra.mxu0 0
        %1514 = vmatprep.subr.bf16.mxu0 0
        %1515 = vmatpush1.bf16.msra.mxu0 0
        %1516 = vmatprep.subr.bf16.mxu0 0
        %1517 = vmatpush1.bf16.msra.mxu0 0
        %1518 = vmatprep.subr.bf16.mxu0 0
        %1519 = vmatpush1.bf16.msra.mxu0 0
        %1520 = vmatprep.subr.bf16.mxu0 0
        %1521 = vmatpush1.bf16.msra.mxu0 0
        %1522 = vmatprep.subr.bf16.mxu0 0
        %1523 = vmatpush1.bf16.msra.mxu0 0
        %1524 = vmatprep.subr.bf16.mxu0 0
        %1525 = vmatpush1.bf16.msra.mxu0 0
        %1526 = vmatprep.mubr.bf16.mxu0 0
        %1527 = vmatmul.mubr.bf16.gmra.mrb[0].mxu0 %v1492
        %v1528 = vpop.f32.mrb[0].mxu0
        %v1529 = vadd.f32 0.0, %v1528
        %v1530 = vpop.f32.mrb[0].mxu0
        %v1531 = vadd.f32 0.0, %v1530
        %v1532 = vpop.f32.mrb[0].mxu0
        %v1533 = vadd.f32 0.0, %v1532
        %v1534 = vpop.f32.mrb[0].mxu0
        %v1535 = vadd.f32 0.0, %v1534
        %1536 = vdwg.mxu0
        %v1537 = vadd.f32 %v1486, %v1529
        %v1538 = vadd.f32 %v1488, %v1533
        %v1539 = vxor.u32 %v1537, 2147483648
        %v1540 = vxor.u32 %v1538, 2147483648
        %v1541 = vmul.f32 %v1539, 1.442695
        %v1542 = vpow.pop %v1541
        %v1543 = vmul.f32 %v1540, 1.442695
        %v1544 = vpow.pop %v1543
        %v1545 = vadd.f32 %v1542, 1.0
        %v1546 = vadd.f32 %v1544, 1.0
        %v1547 = vrcp.pop %v1545
        %v1548 = vmul.f32 1.0, %v1547
        %v1549 = vrcp.pop %v1546
        %v1550 = vmul.f32 1.0, %v1549
        %v1551 = vadd.f32 %v1531, %v484
        %v1552 = vadd.f32 %v1535, %v484
        %v1553 = vmul.f32 %v1548, %v1551
        %v1554 = vmul.f32 %v1550, %v1552
        %v1555 = vadd.f32 %v1487, %v1553
        %v1556 = vadd.f32 %v1489, %v1554
        %v1557 = vtanh.pop %v1555
        %v1558 = vtanh.pop %v1556
        %v1559 = vsub.f32 %v1483, %v1557
        %v1560 = vsub.f32 %v1484, %v1558
        %1563 = vrot.lane.b32.xlu0 %v1559, 64
        %v1564 = vpop.permute.xlu0 %1563
        %1565 = vrot.lane.b32.xlu0 %v1560, 64
        %v1566 = vpop.permute.xlu0 %1565
        %v1569 = vmul.f32 %v1548, %v1564
        %v1570 = vmul.f32 %v1550, %v1566
        %1573 = vrot.lane.b32.xlu0 %v1569, 64
        %v1574 = vpop.permute.xlu0 %1573
        %1575 = vrot.lane.b32.xlu0 %v1570, 64
        %v1576 = vpop.permute.xlu0 %1575
        %v1579 = vadd.f32 %v1557, %v1574
        %v1580 = vadd.f32 %v1558, %v1576
        %s1581 = scalar_lea.vmem %s438, 352 [#allocation2]
        %v1582 = vld [vmem:[%s1581] sm:$0xff]
        %v1583 = vld [vmem:[%s1581 + $0x8] sm:$0xff]
        %v1584 = vld [vmem:[%s1581 + $0x10] sm:$0xff]
        %v1585 = vld [vmem:[%s1581 + $0x18] sm:$0xff]
        %v1586 = vpack.c.bf16 %v1580, %v1579
        %v1588 = vsel %vm530, %v1586, 0
        %1590 = vmatprep.subr.bf16.mxu0 %v515
        %1591 = vmatpush1.bf16.msra.mxu0 %v514
        %1592 = vmatprep.subr.bf16.mxu0 %v517
        %1593 = vmatpush1.bf16.msra.mxu0 %v516
        %1594 = vmatprep.subr.bf16.mxu0 %v519
        %1595 = vmatpush1.bf16.msra.mxu0 %v518
        %1596 = vmatprep.subr.bf16.mxu0 %v521
        %1597 = vmatpush1.bf16.msra.mxu0 %v520
        %1598 = vmatprep.subr.bf16.mxu0 0
        %1599 = vmatpush1.bf16.msra.mxu0 0
        %1600 = vmatprep.subr.bf16.mxu0 0
        %1601 = vmatpush1.bf16.msra.mxu0 0
        %1602 = vmatprep.subr.bf16.mxu0 0
        %1603 = vmatpush1.bf16.msra.mxu0 0
        %1604 = vmatprep.subr.bf16.mxu0 0
        %1605 = vmatpush1.bf16.msra.mxu0 0
        %1606 = vmatprep.subr.bf16.mxu0 0
        %1607 = vmatpush1.bf16.msra.mxu0 0
        %1608 = vmatprep.subr.bf16.mxu0 0
        %1609 = vmatpush1.bf16.msra.mxu0 0
        %1610 = vmatprep.subr.bf16.mxu0 0
        %1611 = vmatpush1.bf16.msra.mxu0 0
        %1612 = vmatprep.subr.bf16.mxu0 0
        %1613 = vmatpush1.bf16.msra.mxu0 0
        %1614 = vmatprep.subr.bf16.mxu0 0
        %1615 = vmatpush1.bf16.msra.mxu0 0
        %1616 = vmatprep.subr.bf16.mxu0 0
        %1617 = vmatpush1.bf16.msra.mxu0 0
        %1618 = vmatprep.subr.bf16.mxu0 0
        %1619 = vmatpush1.bf16.msra.mxu0 0
        %1620 = vmatprep.subr.bf16.mxu0 0
        %1621 = vmatpush1.bf16.msra.mxu0 0
        %1622 = vmatprep.mubr.bf16.mxu0 0
        %1623 = vmatmul.mubr.bf16.gmra.mrb[0].mxu0 %v1588
        %v1624 = vpop.f32.mrb[0].mxu0
        %v1625 = vadd.f32 0.0, %v1624
        %v1626 = vpop.f32.mrb[0].mxu0
        %v1627 = vadd.f32 0.0, %v1626
        %v1628 = vpop.f32.mrb[0].mxu0
        %v1629 = vadd.f32 0.0, %v1628
        %v1630 = vpop.f32.mrb[0].mxu0
        %v1631 = vadd.f32 0.0, %v1630
        %1632 = vdwg.mxu0
        %v1633 = vadd.f32 %v1582, %v1625
        %v1634 = vadd.f32 %v1584, %v1629
        %v1635 = vxor.u32 %v1633, 2147483648
        %v1636 = vxor.u32 %v1634, 2147483648
        %v1637 = vmul.f32 %v1635, 1.442695
        %v1638 = vpow.pop %v1637
        %v1639 = vmul.f32 %v1636, 1.442695
        %v1640 = vpow.pop %v1639
        %v1641 = vadd.f32 %v1638, 1.0
        %v1642 = vadd.f32 %v1640, 1.0
        %v1643 = vrcp.pop %v1641
        %v1644 = vmul.f32 1.0, %v1643
        %v1645 = vrcp.pop %v1642
        %v1646 = vmul.f32 1.0, %v1645
        %v1647 = vadd.f32 %v1627, %v484
        %v1648 = vadd.f32 %v1631, %v484
        %v1649 = vmul.f32 %v1644, %v1647
        %v1650 = vmul.f32 %v1646, %v1648
        %v1651 = vadd.f32 %v1583, %v1649
        %v1652 = vadd.f32 %v1585, %v1650
        %v1653 = vtanh.pop %v1651
        %v1654 = vtanh.pop %v1652
        %v1655 = vsub.f32 %v1579, %v1653
        %v1656 = vsub.f32 %v1580, %v1654
        %1659 = vrot.lane.b32.xlu0 %v1655, 64
        %v1660 = vpop.permute.xlu0 %1659
        %1661 = vrot.lane.b32.xlu0 %v1656, 64
        %v1662 = vpop.permute.xlu0 %1661
        %v1665 = vmul.f32 %v1644, %v1660
        %v1666 = vmul.f32 %v1646, %v1662
        %1669 = vrot.lane.b32.xlu0 %v1665, 64
        %v1670 = vpop.permute.xlu0 %1669
        %1671 = vrot.lane.b32.xlu0 %v1666, 64
        %v1672 = vpop.permute.xlu0 %1671
        %v1675 = vadd.f32 %v1653, %v1670
        %v1676 = vadd.f32 %v1654, %v1672
        %s1677 = scalar_lea.vmem %s438, 384 [#allocation2]
        %v1678 = vld [vmem:[%s1677] sm:$0xff]
        %v1679 = vld [vmem:[%s1677 + $0x8] sm:$0xff]
        %v1680 = vld [vmem:[%s1677 + $0x10] sm:$0xff]
        %v1681 = vld [vmem:[%s1677 + $0x18] sm:$0xff]
        %v1682 = vpack.c.bf16 %v1676, %v1675
        %v1684 = vsel %vm530, %v1682, 0
        %1686 = vmatprep.subr.bf16.mxu0 %v515
        %1687 = vmatpush1.bf16.msra.mxu0 %v514
        %1688 = vmatprep.subr.bf16.mxu0 %v517
        %1689 = vmatpush1.bf16.msra.mxu0 %v516
        %1690 = vmatprep.subr.bf16.mxu0 %v519
        %1691 = vmatpush1.bf16.msra.mxu0 %v518
        %1692 = vmatprep.subr.bf16.mxu0 %v521
        %1693 = vmatpush1.bf16.msra.mxu0 %v520
        %1694 = vmatprep.subr.bf16.mxu0 0
        %1695 = vmatpush1.bf16.msra.mxu0 0
        %1696 = vmatprep.subr.bf16.mxu0 0
        %1697 = vmatpush1.bf16.msra.mxu0 0
        %1698 = vmatprep.subr.bf16.mxu0 0
        %1699 = vmatpush1.bf16.msra.mxu0 0
        %1700 = vmatprep.subr.bf16.mxu0 0
        %1701 = vmatpush1.bf16.msra.mxu0 0
        %1702 = vmatprep.subr.bf16.mxu0 0
        %1703 = vmatpush1.bf16.msra.mxu0 0
        %1704 = vmatprep.subr.bf16.mxu0 0
        %1705 = vmatpush1.bf16.msra.mxu0 0
        %1706 = vmatprep.subr.bf16.mxu0 0
        %1707 = vmatpush1.bf16.msra.mxu0 0
        %1708 = vmatprep.subr.bf16.mxu0 0
        %1709 = vmatpush1.bf16.msra.mxu0 0
        %1710 = vmatprep.subr.bf16.mxu0 0
        %1711 = vmatpush1.bf16.msra.mxu0 0
        %1712 = vmatprep.subr.bf16.mxu0 0
        %1713 = vmatpush1.bf16.msra.mxu0 0
        %1714 = vmatprep.subr.bf16.mxu0 0
        %1715 = vmatpush1.bf16.msra.mxu0 0
        %1716 = vmatprep.subr.bf16.mxu0 0
        %1717 = vmatpush1.bf16.msra.mxu0 0
        %1718 = vmatprep.mubr.bf16.mxu0 0
        %1719 = vmatmul.mubr.bf16.gmra.mrb[0].mxu0 %v1684
        %v1720 = vpop.f32.mrb[0].mxu0
        %v1721 = vadd.f32 0.0, %v1720
        %v1722 = vpop.f32.mrb[0].mxu0
        %v1723 = vadd.f32 0.0, %v1722
        %v1724 = vpop.f32.mrb[0].mxu0
        %v1725 = vadd.f32 0.0, %v1724
        %v1726 = vpop.f32.mrb[0].mxu0
        %v1727 = vadd.f32 0.0, %v1726
        %1728 = vdwg.mxu0
        %v1729 = vadd.f32 %v1678, %v1721
        %v1730 = vadd.f32 %v1680, %v1725
        %v1731 = vxor.u32 %v1729, 2147483648
        %v1732 = vxor.u32 %v1730, 2147483648
        %v1733 = vmul.f32 %v1731, 1.442695
        %v1734 = vpow.pop %v1733
        %v1735 = vmul.f32 %v1732, 1.442695
        %v1736 = vpow.pop %v1735
        %v1737 = vadd.f32 %v1734, 1.0
        %v1738 = vadd.f32 %v1736, 1.0
        %v1739 = vrcp.pop %v1737
        %v1740 = vmul.f32 1.0, %v1739
        %v1741 = vrcp.pop %v1738
        %v1742 = vmul.f32 1.0, %v1741
        %v1743 = vadd.f32 %v1723, %v484
        %v1744 = vadd.f32 %v1727, %v484
        %v1745 = vmul.f32 %v1740, %v1743
        %v1746 = vmul.f32 %v1742, %v1744
        %v1747 = vadd.f32 %v1679, %v1745
        %v1748 = vadd.f32 %v1681, %v1746
        %v1749 = vtanh.pop %v1747
        %v1750 = vtanh.pop %v1748
        %v1751 = vsub.f32 %v1675, %v1749
        %v1752 = vsub.f32 %v1676, %v1750
        %1755 = vrot.lane.b32.xlu0 %v1751, 64
        %v1756 = vpop.permute.xlu0 %1755
        %1757 = vrot.lane.b32.xlu0 %v1752, 64
        %v1758 = vpop.permute.xlu0 %1757
        %v1761 = vmul.f32 %v1740, %v1756
        %v1762 = vmul.f32 %v1742, %v1758
        %1765 = vrot.lane.b32.xlu0 %v1761, 64
        %v1766 = vpop.permute.xlu0 %1765
        %1767 = vrot.lane.b32.xlu0 %v1762, 64
        %v1768 = vpop.permute.xlu0 %1767
        %v1771 = vadd.f32 %v1749, %v1766
        %v1772 = vadd.f32 %v1750, %v1768
        %s1773 = scalar_lea.vmem %s438, 416 [#allocation2]
        %v1774 = vld [vmem:[%s1773] sm:$0xff]
        %v1775 = vld [vmem:[%s1773 + $0x8] sm:$0xff]
        %v1776 = vld [vmem:[%s1773 + $0x10] sm:$0xff]
        %v1777 = vld [vmem:[%s1773 + $0x18] sm:$0xff]
        %v1778 = vpack.c.bf16 %v1772, %v1771
        %v1780 = vsel %vm530, %v1778, 0
        %1782 = vmatprep.subr.bf16.mxu0 %v515
        %1783 = vmatpush1.bf16.msra.mxu0 %v514
        %1784 = vmatprep.subr.bf16.mxu0 %v517
        %1785 = vmatpush1.bf16.msra.mxu0 %v516
        %1786 = vmatprep.subr.bf16.mxu0 %v519
        %1787 = vmatpush1.bf16.msra.mxu0 %v518
        %1788 = vmatprep.subr.bf16.mxu0 %v521
        %1789 = vmatpush1.bf16.msra.mxu0 %v520
        %1790 = vmatprep.subr.bf16.mxu0 0
        %1791 = vmatpush1.bf16.msra.mxu0 0
        %1792 = vmatprep.subr.bf16.mxu0 0
        %1793 = vmatpush1.bf16.msra.mxu0 0
        %1794 = vmatprep.subr.bf16.mxu0 0
        %1795 = vmatpush1.bf16.msra.mxu0 0
        %1796 = vmatprep.subr.bf16.mxu0 0
        %1797 = vmatpush1.bf16.msra.mxu0 0
        %1798 = vmatprep.subr.bf16.mxu0 0
        %1799 = vmatpush1.bf16.msra.mxu0 0
        %1800 = vmatprep.subr.bf16.mxu0 0
        %1801 = vmatpush1.bf16.msra.mxu0 0
        %1802 = vmatprep.subr.bf16.mxu0 0
        %1803 = vmatpush1.bf16.msra.mxu0 0
        %1804 = vmatprep.subr.bf16.mxu0 0
        %1805 = vmatpush1.bf16.msra.mxu0 0
        %1806 = vmatprep.subr.bf16.mxu0 0
        %1807 = vmatpush1.bf16.msra.mxu0 0
        %1808 = vmatprep.subr.bf16.mxu0 0
        %1809 = vmatpush1.bf16.msra.mxu0 0
        %1810 = vmatprep.subr.bf16.mxu0 0
        %1811 = vmatpush1.bf16.msra.mxu0 0
        %1812 = vmatprep.subr.bf16.mxu0 0
        %1813 = vmatpush1.bf16.msra.mxu0 0
        %1814 = vmatprep.mubr.bf16.mxu0 0
        %1815 = vmatmul.mubr.bf16.gmra.mrb[0].mxu0 %v1780
        %v1816 = vpop.f32.mrb[0].mxu0
        %v1817 = vadd.f32 0.0, %v1816
        %v1818 = vpop.f32.mrb[0].mxu0
        %v1819 = vadd.f32 0.0, %v1818
        %v1820 = vpop.f32.mrb[0].mxu0
        %v1821 = vadd.f32 0.0, %v1820
        %v1822 = vpop.f32.mrb[0].mxu0
        %v1823 = vadd.f32 0.0, %v1822
        %1824 = vdwg.mxu0
        %v1825 = vadd.f32 %v1774, %v1817
        %v1826 = vadd.f32 %v1776, %v1821
        %v1827 = vxor.u32 %v1825, 2147483648
        %v1828 = vxor.u32 %v1826, 2147483648
        %v1829 = vmul.f32 %v1827, 1.442695
        %v1830 = vpow.pop %v1829
        %v1831 = vmul.f32 %v1828, 1.442695
        %v1832 = vpow.pop %v1831
        %v1833 = vadd.f32 %v1830, 1.0
        %v1834 = vadd.f32 %v1832, 1.0
        %v1835 = vrcp.pop %v1833
        %v1836 = vmul.f32 1.0, %v1835
        %v1837 = vrcp.pop %v1834
        %v1838 = vmul.f32 1.0, %v1837
        %v1839 = vadd.f32 %v1819, %v484
        %v1840 = vadd.f32 %v1823, %v484
        %v1841 = vmul.f32 %v1836, %v1839
        %v1842 = vmul.f32 %v1838, %v1840
        %v1843 = vadd.f32 %v1775, %v1841
        %v1844 = vadd.f32 %v1777, %v1842
        %v1845 = vtanh.pop %v1843
        %v1846 = vtanh.pop %v1844
        %v1847 = vsub.f32 %v1771, %v1845
        %v1848 = vsub.f32 %v1772, %v1846
        %1851 = vrot.lane.b32.xlu0 %v1847, 64
        %v1852 = vpop.permute.xlu0 %1851
        %1853 = vrot.lane.b32.xlu0 %v1848, 64
        %v1854 = vpop.permute.xlu0 %1853
        %v1857 = vmul.f32 %v1836, %v1852
        %v1858 = vmul.f32 %v1838, %v1854
        %1861 = vrot.lane.b32.xlu0 %v1857, 64
        %v1862 = vpop.permute.xlu0 %1861
        %1863 = vrot.lane.b32.xlu0 %v1858, 64
        %v1864 = vpop.permute.xlu0 %1863
        %v1867 = vadd.f32 %v1845, %v1862
        %v1868 = vadd.f32 %v1846, %v1864
        %s1869 = scalar_lea.vmem %s438, 448 [#allocation2]
        %v1870 = vld [vmem:[%s1869] sm:$0xff]
        %v1871 = vld [vmem:[%s1869 + $0x8] sm:$0xff]
        %v1872 = vld [vmem:[%s1869 + $0x10] sm:$0xff]
        %v1873 = vld [vmem:[%s1869 + $0x18] sm:$0xff]
        %v1874 = vpack.c.bf16 %v1868, %v1867
        %v1876 = vsel %vm530, %v1874, 0
        %1878 = vmatprep.subr.bf16.mxu0 %v515
        %1879 = vmatpush1.bf16.msra.mxu0 %v514
        %1880 = vmatprep.subr.bf16.mxu0 %v517
        %1881 = vmatpush1.bf16.msra.mxu0 %v516
        %1882 = vmatprep.subr.bf16.mxu0 %v519
        %1883 = vmatpush1.bf16.msra.mxu0 %v518
        %1884 = vmatprep.subr.bf16.mxu0 %v521
        %1885 = vmatpush1.bf16.msra.mxu0 %v520
        %1886 = vmatprep.subr.bf16.mxu0 0
        %1887 = vmatpush1.bf16.msra.mxu0 0
        %1888 = vmatprep.subr.bf16.mxu0 0
        %1889 = vmatpush1.bf16.msra.mxu0 0
        %1890 = vmatprep.subr.bf16.mxu0 0
        %1891 = vmatpush1.bf16.msra.mxu0 0
        %1892 = vmatprep.subr.bf16.mxu0 0
        %1893 = vmatpush1.bf16.msra.mxu0 0
        %1894 = vmatprep.subr.bf16.mxu0 0
        %1895 = vmatpush1.bf16.msra.mxu0 0
        %1896 = vmatprep.subr.bf16.mxu0 0
        %1897 = vmatpush1.bf16.msra.mxu0 0
        %1898 = vmatprep.subr.bf16.mxu0 0
        %1899 = vmatpush1.bf16.msra.mxu0 0
        %1900 = vmatprep.subr.bf16.mxu0 0
        %1901 = vmatpush1.bf16.msra.mxu0 0
        %1902 = vmatprep.subr.bf16.mxu0 0
        %1903 = vmatpush1.bf16.msra.mxu0 0
        %1904 = vmatprep.subr.bf16.mxu0 0
        %1905 = vmatpush1.bf16.msra.mxu0 0
        %1906 = vmatprep.subr.bf16.mxu0 0
        %1907 = vmatpush1.bf16.msra.mxu0 0
        %1908 = vmatprep.subr.bf16.mxu0 0
        %1909 = vmatpush1.bf16.msra.mxu0 0
        %1910 = vmatprep.mubr.bf16.mxu0 0
        %1911 = vmatmul.mubr.bf16.gmra.mrb[0].mxu0 %v1876
        %v1912 = vpop.f32.mrb[0].mxu0
        %v1913 = vadd.f32 0.0, %v1912
        %v1914 = vpop.f32.mrb[0].mxu0
        %v1915 = vadd.f32 0.0, %v1914
        %v1916 = vpop.f32.mrb[0].mxu0
        %v1917 = vadd.f32 0.0, %v1916
        %v1918 = vpop.f32.mrb[0].mxu0
        %v1919 = vadd.f32 0.0, %v1918
        %1920 = vdwg.mxu0
        %v1921 = vadd.f32 %v1870, %v1913
        %v1922 = vadd.f32 %v1872, %v1917
        %v1923 = vxor.u32 %v1921, 2147483648
        %v1924 = vxor.u32 %v1922, 2147483648
        %v1925 = vmul.f32 %v1923, 1.442695
        %v1926 = vpow.pop %v1925
        %v1927 = vmul.f32 %v1924, 1.442695
        %v1928 = vpow.pop %v1927
        %v1929 = vadd.f32 %v1926, 1.0
        %v1930 = vadd.f32 %v1928, 1.0
        %v1931 = vrcp.pop %v1929
        %v1932 = vmul.f32 1.0, %v1931
        %v1933 = vrcp.pop %v1930
        %v1934 = vmul.f32 1.0, %v1933
        %v1935 = vadd.f32 %v1915, %v484
        %v1936 = vadd.f32 %v1919, %v484
        %v1937 = vmul.f32 %v1932, %v1935
        %v1938 = vmul.f32 %v1934, %v1936
        %v1939 = vadd.f32 %v1871, %v1937
        %v1940 = vadd.f32 %v1873, %v1938
        %v1941 = vtanh.pop %v1939
        %v1942 = vtanh.pop %v1940
        %v1943 = vsub.f32 %v1867, %v1941
        %v1944 = vsub.f32 %v1868, %v1942
        %1947 = vrot.lane.b32.xlu0 %v1943, 64
        %v1948 = vpop.permute.xlu0 %1947
        %1949 = vrot.lane.b32.xlu0 %v1944, 64
        %v1950 = vpop.permute.xlu0 %1949
        %v1953 = vmul.f32 %v1932, %v1948
        %v1954 = vmul.f32 %v1934, %v1950
        %1957 = vrot.lane.b32.xlu0 %v1953, 64
        %v1958 = vpop.permute.xlu0 %1957
        %1959 = vrot.lane.b32.xlu0 %v1954, 64
        %v1960 = vpop.permute.xlu0 %1959
        %v1963 = vadd.f32 %v1941, %v1958
        %v1964 = vadd.f32 %v1942, %v1960
        %s1965 = scalar_lea.vmem %s438, 480 [#allocation2]
        %v1966 = vld [vmem:[%s1965] sm:$0xff]
        %v1967 = vld [vmem:[%s1965 + $0x8] sm:$0xff]
        %v1968 = vld [vmem:[%s1965 + $0x10] sm:$0xff]
        %v1969 = vld [vmem:[%s1965 + $0x18] sm:$0xff]
        %v1970 = vpack.c.bf16 %v1964, %v1963
        %v1972 = vsel %vm530, %v1970, 0
        %1974 = vmatprep.subr.bf16.mxu0 %v515
        %1975 = vmatpush1.bf16.msra.mxu0 %v514
        %1976 = vmatprep.subr.bf16.mxu0 %v517
        %1977 = vmatpush1.bf16.msra.mxu0 %v516
        %1978 = vmatprep.subr.bf16.mxu0 %v519
        %1979 = vmatpush1.bf16.msra.mxu0 %v518
        %1980 = vmatprep.subr.bf16.mxu0 %v521
        %1981 = vmatpush1.bf16.msra.mxu0 %v520
        %1982 = vmatprep.subr.bf16.mxu0 0
        %1983 = vmatpush1.bf16.msra.mxu0 0
        %1984 = vmatprep.subr.bf16.mxu0 0
        %1985 = vmatpush1.bf16.msra.mxu0 0
        %1986 = vmatprep.subr.bf16.mxu0 0
        %1987 = vmatpush1.bf16.msra.mxu0 0
        %1988 = vmatprep.subr.bf16.mxu0 0
        %1989 = vmatpush1.bf16.msra.mxu0 0
        %1990 = vmatprep.subr.bf16.mxu0 0
        %1991 = vmatpush1.bf16.msra.mxu0 0
        %1992 = vmatprep.subr.bf16.mxu0 0
        %1993 = vmatpush1.bf16.msra.mxu0 0
        %1994 = vmatprep.subr.bf16.mxu0 0
        %1995 = vmatpush1.bf16.msra.mxu0 0
        %1996 = vmatprep.subr.bf16.mxu0 0
        %1997 = vmatpush1.bf16.msra.mxu0 0
        %1998 = vmatprep.subr.bf16.mxu0 0
        %1999 = vmatpush1.bf16.msra.mxu0 0
        %2000 = vmatprep.subr.bf16.mxu0 0
        %2001 = vmatpush1.bf16.msra.mxu0 0
        %2002 = vmatprep.subr.bf16.mxu0 0
        %2003 = vmatpush1.bf16.msra.mxu0 0
        %2004 = vmatprep.subr.bf16.mxu0 0
        %2005 = vmatpush1.bf16.msra.mxu0 0
        %2006 = vmatprep.mubr.bf16.mxu0 0
        %2007 = vmatmul.mubr.bf16.gmra.mrb[0].mxu0 %v1972
        %v2008 = vpop.f32.mrb[0].mxu0
        %v2009 = vadd.f32 0.0, %v2008
        %v2010 = vpop.f32.mrb[0].mxu0
        %v2011 = vadd.f32 0.0, %v2010
        %v2012 = vpop.f32.mrb[0].mxu0
        %v2013 = vadd.f32 0.0, %v2012
        %v2014 = vpop.f32.mrb[0].mxu0
        %v2015 = vadd.f32 0.0, %v2014
        %2016 = vdwg.mxu0
        %v2017 = vadd.f32 %v1966, %v2009
        %v2018 = vadd.f32 %v1968, %v2013
        %v2019 = vxor.u32 %v2017, 2147483648
        %v2020 = vxor.u32 %v2018, 2147483648
        %v2021 = vmul.f32 %v2019, 1.442695
        %v2022 = vpow.pop %v2021
        %v2023 = vmul.f32 %v2020, 1.442695
        %v2024 = vpow.pop %v2023
        %v2025 = vadd.f32 %v2022, 1.0
        %v2026 = vadd.f32 %v2024, 1.0
        %v2027 = vrcp.pop %v2025
        %v2028 = vmul.f32 1.0, %v2027
        %v2029 = vrcp.pop %v2026
        %v2030 = vmul.f32 1.0, %v2029
        %v2031 = vadd.f32 %v2011, %v484
        %v2032 = vadd.f32 %v2015, %v484
        %v2033 = vmul.f32 %v2028, %v2031
        %v2034 = vmul.f32 %v2030, %v2032
        %v2035 = vadd.f32 %v1967, %v2033
        %v2036 = vadd.f32 %v1969, %v2034
        %v2037 = vtanh.pop %v2035
        %v2038 = vtanh.pop %v2036
        %v2039 = vsub.f32 %v1963, %v2037
        %v2040 = vsub.f32 %v1964, %v2038
        %2043 = vrot.lane.b32.xlu0 %v2039, 64
        %v2044 = vpop.permute.xlu0 %2043
        %2045 = vrot.lane.b32.xlu0 %v2040, 64
        %v2046 = vpop.permute.xlu0 %2045
        %v2049 = vmul.f32 %v2028, %v2044
        %v2050 = vmul.f32 %v2030, %v2046
        %2053 = vrot.lane.b32.xlu0 %v2049, 64
        %v2054 = vpop.permute.xlu0 %2053
        %2055 = vrot.lane.b32.xlu0 %v2050, 64
        %v2056 = vpop.permute.xlu0 %2055
        %v2059 = vadd.f32 %v2037, %v2054
        %v2060 = vadd.f32 %v2038, %v2056
        %s2061 = scalar_lea.vmem %s438, 512 [#allocation2]
        %v2062 = vld [vmem:[%s2061] sm:$0xff]
        %v2063 = vld [vmem:[%s2061 + $0x8] sm:$0xff]
        %v2064 = vld [vmem:[%s2061 + $0x10] sm:$0xff]
        %v2065 = vld [vmem:[%s2061 + $0x18] sm:$0xff]
        %v2066 = vpack.c.bf16 %v2060, %v2059
        %v2068 = vsel %vm530, %v2066, 0
        %2070 = vmatprep.subr.bf16.mxu0 %v515
        %2071 = vmatpush1.bf16.msra.mxu0 %v514
        %2072 = vmatprep.subr.bf16.mxu0 %v517
        %2073 = vmatpush1.bf16.msra.mxu0 %v516
        %2074 = vmatprep.subr.bf16.mxu0 %v519
        %2075 = vmatpush1.bf16.msra.mxu0 %v518
        %2076 = vmatprep.subr.bf16.mxu0 %v521
        %2077 = vmatpush1.bf16.msra.mxu0 %v520
        %2078 = vmatprep.subr.bf16.mxu0 0
        %2079 = vmatpush1.bf16.msra.mxu0 0
        %2080 = vmatprep.subr.bf16.mxu0 0
        %2081 = vmatpush1.bf16.msra.mxu0 0
        %2082 = vmatprep.subr.bf16.mxu0 0
        %2083 = vmatpush1.bf16.msra.mxu0 0
        %2084 = vmatprep.subr.bf16.mxu0 0
        %2085 = vmatpush1.bf16.msra.mxu0 0
        %2086 = vmatprep.subr.bf16.mxu0 0
        %2087 = vmatpush1.bf16.msra.mxu0 0
        %2088 = vmatprep.subr.bf16.mxu0 0
        %2089 = vmatpush1.bf16.msra.mxu0 0
        %2090 = vmatprep.subr.bf16.mxu0 0
        %2091 = vmatpush1.bf16.msra.mxu0 0
        %2092 = vmatprep.subr.bf16.mxu0 0
        %2093 = vmatpush1.bf16.msra.mxu0 0
        %2094 = vmatprep.subr.bf16.mxu0 0
        %2095 = vmatpush1.bf16.msra.mxu0 0
        %2096 = vmatprep.subr.bf16.mxu0 0
        %2097 = vmatpush1.bf16.msra.mxu0 0
        %2098 = vmatprep.subr.bf16.mxu0 0
        %2099 = vmatpush1.bf16.msra.mxu0 0
        %2100 = vmatprep.subr.bf16.mxu0 0
        %2101 = vmatpush1.bf16.msra.mxu0 0
        %2102 = vmatprep.mubr.bf16.mxu0 0
        %2103 = vmatmul.mubr.bf16.gmra.mrb[0].mxu0 %v2068
        %v2104 = vpop.f32.mrb[0].mxu0
        %v2105 = vadd.f32 0.0, %v2104
        %v2106 = vpop.f32.mrb[0].mxu0
        %v2107 = vadd.f32 0.0, %v2106
        %v2108 = vpop.f32.mrb[0].mxu0
        %v2109 = vadd.f32 0.0, %v2108
        %v2110 = vpop.f32.mrb[0].mxu0
        %v2111 = vadd.f32 0.0, %v2110
        %2112 = vdwg.mxu0
        %v2113 = vadd.f32 %v2062, %v2105
        %v2114 = vadd.f32 %v2064, %v2109
        %v2115 = vxor.u32 %v2113, 2147483648
        %v2116 = vxor.u32 %v2114, 2147483648
        %v2117 = vmul.f32 %v2115, 1.442695
        %v2118 = vpow.pop %v2117
        %v2119 = vmul.f32 %v2116, 1.442695
        %v2120 = vpow.pop %v2119
        %v2121 = vadd.f32 %v2118, 1.0
        %v2122 = vadd.f32 %v2120, 1.0
        %v2123 = vrcp.pop %v2121
        %v2124 = vmul.f32 1.0, %v2123
        %v2125 = vrcp.pop %v2122
        %v2126 = vmul.f32 1.0, %v2125
        %v2127 = vadd.f32 %v2107, %v484
        %v2128 = vadd.f32 %v2111, %v484
        %v2129 = vmul.f32 %v2124, %v2127
        %v2130 = vmul.f32 %v2126, %v2128
        %v2131 = vadd.f32 %v2063, %v2129
        %v2132 = vadd.f32 %v2065, %v2130
        %v2133 = vtanh.pop %v2131
        %v2134 = vtanh.pop %v2132
        %v2135 = vsub.f32 %v2059, %v2133
        %v2136 = vsub.f32 %v2060, %v2134
        %2139 = vrot.lane.b32.xlu0 %v2135, 64
        %v2140 = vpop.permute.xlu0 %2139
        %2141 = vrot.lane.b32.xlu0 %v2136, 64
        %v2142 = vpop.permute.xlu0 %2141
        %v2145 = vmul.f32 %v2124, %v2140
        %v2146 = vmul.f32 %v2126, %v2142
        %2149 = vrot.lane.b32.xlu0 %v2145, 64
        %v2150 = vpop.permute.xlu0 %2149
        %2151 = vrot.lane.b32.xlu0 %v2146, 64
        %v2152 = vpop.permute.xlu0 %2151
        %v2155 = vadd.f32 %v2133, %v2150
        %v2156 = vadd.f32 %v2134, %v2152
        %s2157 = scalar_lea.vmem %s438, 544 [#allocation2]
        %v2158 = vld [vmem:[%s2157] sm:$0xff]
        %v2159 = vld [vmem:[%s2157 + $0x8] sm:$0xff]
        %v2160 = vld [vmem:[%s2157 + $0x10] sm:$0xff]
        %v2161 = vld [vmem:[%s2157 + $0x18] sm:$0xff]
        %v2162 = vpack.c.bf16 %v2156, %v2155
        %v2164 = vsel %vm530, %v2162, 0
        %2166 = vmatprep.subr.bf16.mxu0 %v515
        %2167 = vmatpush1.bf16.msra.mxu0 %v514
        %2168 = vmatprep.subr.bf16.mxu0 %v517
        %2169 = vmatpush1.bf16.msra.mxu0 %v516
        %2170 = vmatprep.subr.bf16.mxu0 %v519
        %2171 = vmatpush1.bf16.msra.mxu0 %v518
        %2172 = vmatprep.subr.bf16.mxu0 %v521
        %2173 = vmatpush1.bf16.msra.mxu0 %v520
        %2174 = vmatprep.subr.bf16.mxu0 0
        %2175 = vmatpush1.bf16.msra.mxu0 0
        %2176 = vmatprep.subr.bf16.mxu0 0
        %2177 = vmatpush1.bf16.msra.mxu0 0
        %2178 = vmatprep.subr.bf16.mxu0 0
        %2179 = vmatpush1.bf16.msra.mxu0 0
        %2180 = vmatprep.subr.bf16.mxu0 0
        %2181 = vmatpush1.bf16.msra.mxu0 0
        %2182 = vmatprep.subr.bf16.mxu0 0
        %2183 = vmatpush1.bf16.msra.mxu0 0
        %2184 = vmatprep.subr.bf16.mxu0 0
        %2185 = vmatpush1.bf16.msra.mxu0 0
        %2186 = vmatprep.subr.bf16.mxu0 0
        %2187 = vmatpush1.bf16.msra.mxu0 0
        %2188 = vmatprep.subr.bf16.mxu0 0
        %2189 = vmatpush1.bf16.msra.mxu0 0
        %2190 = vmatprep.subr.bf16.mxu0 0
        %2191 = vmatpush1.bf16.msra.mxu0 0
        %2192 = vmatprep.subr.bf16.mxu0 0
        %2193 = vmatpush1.bf16.msra.mxu0 0
        %2194 = vmatprep.subr.bf16.mxu0 0
        %2195 = vmatpush1.bf16.msra.mxu0 0
        %2196 = vmatprep.subr.bf16.mxu0 0
        %2197 = vmatpush1.bf16.msra.mxu0 0
        %2198 = vmatprep.mubr.bf16.mxu0 0
        %2199 = vmatmul.mubr.bf16.gmra.mrb[0].mxu0 %v2164
        %v2200 = vpop.f32.mrb[0].mxu0
        %v2201 = vadd.f32 0.0, %v2200
        %v2202 = vpop.f32.mrb[0].mxu0
        %v2203 = vadd.f32 0.0, %v2202
        %v2204 = vpop.f32.mrb[0].mxu0
        %v2205 = vadd.f32 0.0, %v2204
        %v2206 = vpop.f32.mrb[0].mxu0
        %v2207 = vadd.f32 0.0, %v2206
        %2208 = vdwg.mxu0
        %v2209 = vadd.f32 %v2158, %v2201
        %v2210 = vadd.f32 %v2160, %v2205
        %v2211 = vxor.u32 %v2209, 2147483648
        %v2212 = vxor.u32 %v2210, 2147483648
        %v2213 = vmul.f32 %v2211, 1.442695
        %v2214 = vpow.pop %v2213
        %v2215 = vmul.f32 %v2212, 1.442695
        %v2216 = vpow.pop %v2215
        %v2217 = vadd.f32 %v2214, 1.0
        %v2218 = vadd.f32 %v2216, 1.0
        %v2219 = vrcp.pop %v2217
        %v2220 = vmul.f32 1.0, %v2219
        %v2221 = vrcp.pop %v2218
        %v2222 = vmul.f32 1.0, %v2221
        %v2223 = vadd.f32 %v2203, %v484
        %v2224 = vadd.f32 %v2207, %v484
        %v2225 = vmul.f32 %v2220, %v2223
        %v2226 = vmul.f32 %v2222, %v2224
        %v2227 = vadd.f32 %v2159, %v2225
        %v2228 = vadd.f32 %v2161, %v2226
        %v2229 = vtanh.pop %v2227
        %v2230 = vtanh.pop %v2228
        %v2231 = vsub.f32 %v2155, %v2229
        %v2232 = vsub.f32 %v2156, %v2230
        %2235 = vrot.lane.b32.xlu0 %v2231, 64
        %v2236 = vpop.permute.xlu0 %2235
        %2237 = vrot.lane.b32.xlu0 %v2232, 64
        %v2238 = vpop.permute.xlu0 %2237
        %v2241 = vmul.f32 %v2220, %v2236
        %v2242 = vmul.f32 %v2222, %v2238
        %2245 = vrot.lane.b32.xlu0 %v2241, 64
        %v2246 = vpop.permute.xlu0 %2245
        %2247 = vrot.lane.b32.xlu0 %v2242, 64
        %v2248 = vpop.permute.xlu0 %2247
        %v2251 = vadd.f32 %v2229, %v2246
        %v2252 = vadd.f32 %v2230, %v2248
        %s2253 = scalar_lea.vmem %s438, 576 [#allocation2]
        %v2254 = vld [vmem:[%s2253] sm:$0xff]
        %v2255 = vld [vmem:[%s2253 + $0x8] sm:$0xff]
        %v2256 = vld [vmem:[%s2253 + $0x10] sm:$0xff]
        %v2257 = vld [vmem:[%s2253 + $0x18] sm:$0xff]
        %v2258 = vpack.c.bf16 %v2252, %v2251
        %v2260 = vsel %vm530, %v2258, 0
        %2262 = vmatprep.subr.bf16.mxu0 %v515
        %2263 = vmatpush1.bf16.msra.mxu0 %v514
        %2264 = vmatprep.subr.bf16.mxu0 %v517
        %2265 = vmatpush1.bf16.msra.mxu0 %v516
        %2266 = vmatprep.subr.bf16.mxu0 %v519
        %2267 = vmatpush1.bf16.msra.mxu0 %v518
        %2268 = vmatprep.subr.bf16.mxu0 %v521
        %2269 = vmatpush1.bf16.msra.mxu0 %v520
        %2270 = vmatprep.subr.bf16.mxu0 0
        %2271 = vmatpush1.bf16.msra.mxu0 0
        %2272 = vmatprep.subr.bf16.mxu0 0
        %2273 = vmatpush1.bf16.msra.mxu0 0
        %2274 = vmatprep.subr.bf16.mxu0 0
        %2275 = vmatpush1.bf16.msra.mxu0 0
        %2276 = vmatprep.subr.bf16.mxu0 0
        %2277 = vmatpush1.bf16.msra.mxu0 0
        %2278 = vmatprep.subr.bf16.mxu0 0
        %2279 = vmatpush1.bf16.msra.mxu0 0
        %2280 = vmatprep.subr.bf16.mxu0 0
        %2281 = vmatpush1.bf16.msra.mxu0 0
        %2282 = vmatprep.subr.bf16.mxu0 0
        %2283 = vmatpush1.bf16.msra.mxu0 0
        %2284 = vmatprep.subr.bf16.mxu0 0
        %2285 = vmatpush1.bf16.msra.mxu0 0
        %2286 = vmatprep.subr.bf16.mxu0 0
        %2287 = vmatpush1.bf16.msra.mxu0 0
        %2288 = vmatprep.subr.bf16.mxu0 0
        %2289 = vmatpush1.bf16.msra.mxu0 0
        %2290 = vmatprep.subr.bf16.mxu0 0
        %2291 = vmatpush1.bf16.msra.mxu0 0
        %2292 = vmatprep.subr.bf16.mxu0 0
        %2293 = vmatpush1.bf16.msra.mxu0 0
        %2294 = vmatprep.mubr.bf16.mxu0 0
        %2295 = vmatmul.mubr.bf16.gmra.mrb[0].mxu0 %v2260
        %v2296 = vpop.f32.mrb[0].mxu0
        %v2297 = vadd.f32 0.0, %v2296
        %v2298 = vpop.f32.mrb[0].mxu0
        %v2299 = vadd.f32 0.0, %v2298
        %v2300 = vpop.f32.mrb[0].mxu0
        %v2301 = vadd.f32 0.0, %v2300
        %v2302 = vpop.f32.mrb[0].mxu0
        %v2303 = vadd.f32 0.0, %v2302
        %2304 = vdwg.mxu0
        %v2305 = vadd.f32 %v2254, %v2297
        %v2306 = vadd.f32 %v2256, %v2301
        %v2307 = vxor.u32 %v2305, 2147483648
        %v2308 = vxor.u32 %v2306, 2147483648
        %v2309 = vmul.f32 %v2307, 1.442695
        %v2310 = vpow.pop %v2309
        %v2311 = vmul.f32 %v2308, 1.442695
        %v2312 = vpow.pop %v2311
        %v2313 = vadd.f32 %v2310, 1.0
        %v2314 = vadd.f32 %v2312, 1.0
        %v2315 = vrcp.pop %v2313
        %v2316 = vmul.f32 1.0, %v2315
        %v2317 = vrcp.pop %v2314
        %v2318 = vmul.f32 1.0, %v2317
        %v2319 = vadd.f32 %v2299, %v484
        %v2320 = vadd.f32 %v2303, %v484
        %v2321 = vmul.f32 %v2316, %v2319
        %v2322 = vmul.f32 %v2318, %v2320
        %v2323 = vadd.f32 %v2255, %v2321
        %v2324 = vadd.f32 %v2257, %v2322
        %v2325 = vtanh.pop %v2323
        %v2326 = vtanh.pop %v2324
        %v2327 = vsub.f32 %v2251, %v2325
        %v2328 = vsub.f32 %v2252, %v2326
        %2331 = vrot.lane.b32.xlu0 %v2327, 64
        %v2332 = vpop.permute.xlu0 %2331
        %2333 = vrot.lane.b32.xlu0 %v2328, 64
        %v2334 = vpop.permute.xlu0 %2333
        %v2337 = vmul.f32 %v2316, %v2332
        %v2338 = vmul.f32 %v2318, %v2334
        %2341 = vrot.lane.b32.xlu0 %v2337, 64
        %v2342 = vpop.permute.xlu0 %2341
        %2343 = vrot.lane.b32.xlu0 %v2338, 64
        %v2344 = vpop.permute.xlu0 %2343
        %v2347 = vadd.f32 %v2325, %v2342
        %v2348 = vadd.f32 %v2326, %v2344
        %s2349 = scalar_lea.vmem %s438, 608 [#allocation2]
        %v2350 = vld [vmem:[%s2349] sm:$0xff]
        %v2351 = vld [vmem:[%s2349 + $0x8] sm:$0xff]
        %v2352 = vld [vmem:[%s2349 + $0x10] sm:$0xff]
        %v2353 = vld [vmem:[%s2349 + $0x18] sm:$0xff]
        %v2354 = vpack.c.bf16 %v2348, %v2347
        %v2356 = vsel %vm530, %v2354, 0
        %2358 = vmatprep.subr.bf16.mxu0 %v515
        %2359 = vmatpush1.bf16.msra.mxu0 %v514
        %2360 = vmatprep.subr.bf16.mxu0 %v517
        %2361 = vmatpush1.bf16.msra.mxu0 %v516
        %2362 = vmatprep.subr.bf16.mxu0 %v519
        %2363 = vmatpush1.bf16.msra.mxu0 %v518
        %2364 = vmatprep.subr.bf16.mxu0 %v521
        %2365 = vmatpush1.bf16.msra.mxu0 %v520
        %2366 = vmatprep.subr.bf16.mxu0 0
        %2367 = vmatpush1.bf16.msra.mxu0 0
        %2368 = vmatprep.subr.bf16.mxu0 0
        %2369 = vmatpush1.bf16.msra.mxu0 0
        %2370 = vmatprep.subr.bf16.mxu0 0
        %2371 = vmatpush1.bf16.msra.mxu0 0
        %2372 = vmatprep.subr.bf16.mxu0 0
        %2373 = vmatpush1.bf16.msra.mxu0 0
        %2374 = vmatprep.subr.bf16.mxu0 0
        %2375 = vmatpush1.bf16.msra.mxu0 0
        %2376 = vmatprep.subr.bf16.mxu0 0
        %2377 = vmatpush1.bf16.msra.mxu0 0
        %2378 = vmatprep.subr.bf16.mxu0 0
        %2379 = vmatpush1.bf16.msra.mxu0 0
        %2380 = vmatprep.subr.bf16.mxu0 0
        %2381 = vmatpush1.bf16.msra.mxu0 0
        %2382 = vmatprep.subr.bf16.mxu0 0
        %2383 = vmatpush1.bf16.msra.mxu0 0
        %2384 = vmatprep.subr.bf16.mxu0 0
        %2385 = vmatpush1.bf16.msra.mxu0 0
        %2386 = vmatprep.subr.bf16.mxu0 0
        %2387 = vmatpush1.bf16.msra.mxu0 0
        %2388 = vmatprep.subr.bf16.mxu0 0
        %2389 = vmatpush1.bf16.msra.mxu0 0
        %2390 = vmatprep.mubr.bf16.mxu0 0
        %2391 = vmatmul.mubr.bf16.gmra.mrb[0].mxu0 %v2356
        %v2392 = vpop.f32.mrb[0].mxu0
        %v2393 = vadd.f32 0.0, %v2392
        %v2394 = vpop.f32.mrb[0].mxu0
        %v2395 = vadd.f32 0.0, %v2394
        %v2396 = vpop.f32.mrb[0].mxu0
        %v2397 = vadd.f32 0.0, %v2396
        %v2398 = vpop.f32.mrb[0].mxu0
        %v2399 = vadd.f32 0.0, %v2398
        %2400 = vdwg.mxu0
        %v2401 = vadd.f32 %v2350, %v2393
        %v2402 = vadd.f32 %v2352, %v2397
        %v2403 = vxor.u32 %v2401, 2147483648
        %v2404 = vxor.u32 %v2402, 2147483648
        %v2405 = vmul.f32 %v2403, 1.442695
        %v2406 = vpow.pop %v2405
        %v2407 = vmul.f32 %v2404, 1.442695
        %v2408 = vpow.pop %v2407
        %v2409 = vadd.f32 %v2406, 1.0
        %v2410 = vadd.f32 %v2408, 1.0
        %v2411 = vrcp.pop %v2409
        %v2412 = vmul.f32 1.0, %v2411
        %v2413 = vrcp.pop %v2410
        %v2414 = vmul.f32 1.0, %v2413
        %v2415 = vadd.f32 %v2395, %v484
        %v2416 = vadd.f32 %v2399, %v484
        %v2417 = vmul.f32 %v2412, %v2415
        %v2418 = vmul.f32 %v2414, %v2416
        %v2419 = vadd.f32 %v2351, %v2417
        %v2420 = vadd.f32 %v2353, %v2418
        %v2421 = vtanh.pop %v2419
        %v2422 = vtanh.pop %v2420
        %v2423 = vsub.f32 %v2347, %v2421
        %v2424 = vsub.f32 %v2348, %v2422
        %2427 = vrot.lane.b32.xlu0 %v2423, 64
        %v2428 = vpop.permute.xlu0 %2427
        %2429 = vrot.lane.b32.xlu0 %v2424, 64
        %v2430 = vpop.permute.xlu0 %2429
        %v2433 = vmul.f32 %v2412, %v2428
        %v2434 = vmul.f32 %v2414, %v2430
        %2437 = vrot.lane.b32.xlu0 %v2433, 64
        %v2438 = vpop.permute.xlu0 %2437
        %2439 = vrot.lane.b32.xlu0 %v2434, 64
        %v2440 = vpop.permute.xlu0 %2439
        %v2443 = vadd.f32 %v2421, %v2438
        %v2444 = vadd.f32 %v2422, %v2440
        %s2445 = scalar_lea.vmem %s438, 640 [#allocation2]
        %v2446 = vld [vmem:[%s2445] sm:$0xff]
        %v2447 = vld [vmem:[%s2445 + $0x8] sm:$0xff]
        %v2448 = vld [vmem:[%s2445 + $0x10] sm:$0xff]
        %v2449 = vld [vmem:[%s2445 + $0x18] sm:$0xff]
        %v2450 = vpack.c.bf16 %v2444, %v2443
        %v2452 = vsel %vm530, %v2450, 0
        %2454 = vmatprep.subr.bf16.mxu0 %v515
        %2455 = vmatpush1.bf16.msra.mxu0 %v514
        %2456 = vmatprep.subr.bf16.mxu0 %v517
        %2457 = vmatpush1.bf16.msra.mxu0 %v516
        %2458 = vmatprep.subr.bf16.mxu0 %v519
        %2459 = vmatpush1.bf16.msra.mxu0 %v518
        %2460 = vmatprep.subr.bf16.mxu0 %v521
        %2461 = vmatpush1.bf16.msra.mxu0 %v520
        %2462 = vmatprep.subr.bf16.mxu0 0
        %2463 = vmatpush1.bf16.msra.mxu0 0
        %2464 = vmatprep.subr.bf16.mxu0 0
        %2465 = vmatpush1.bf16.msra.mxu0 0
        %2466 = vmatprep.subr.bf16.mxu0 0
        %2467 = vmatpush1.bf16.msra.mxu0 0
        %2468 = vmatprep.subr.bf16.mxu0 0
        %2469 = vmatpush1.bf16.msra.mxu0 0
        %2470 = vmatprep.subr.bf16.mxu0 0
        %2471 = vmatpush1.bf16.msra.mxu0 0
        %2472 = vmatprep.subr.bf16.mxu0 0
        %2473 = vmatpush1.bf16.msra.mxu0 0
        %2474 = vmatprep.subr.bf16.mxu0 0
        %2475 = vmatpush1.bf16.msra.mxu0 0
        %2476 = vmatprep.subr.bf16.mxu0 0
        %2477 = vmatpush1.bf16.msra.mxu0 0
        %2478 = vmatprep.subr.bf16.mxu0 0
        %2479 = vmatpush1.bf16.msra.mxu0 0
        %2480 = vmatprep.subr.bf16.mxu0 0
        %2481 = vmatpush1.bf16.msra.mxu0 0
        %2482 = vmatprep.subr.bf16.mxu0 0
        %2483 = vmatpush1.bf16.msra.mxu0 0
        %2484 = vmatprep.subr.bf16.mxu0 0
        %2485 = vmatpush1.bf16.msra.mxu0 0
        %2486 = vmatprep.mubr.bf16.mxu0 0
        %2487 = vmatmul.mubr.bf16.gmra.mrb[0].mxu0 %v2452
        %v2488 = vpop.f32.mrb[0].mxu0
        %v2489 = vadd.f32 0.0, %v2488
        %v2490 = vpop.f32.mrb[0].mxu0
        %v2491 = vadd.f32 0.0, %v2490
        %v2492 = vpop.f32.mrb[0].mxu0
        %v2493 = vadd.f32 0.0, %v2492
        %v2494 = vpop.f32.mrb[0].mxu0
        %v2495 = vadd.f32 0.0, %v2494
        %2496 = vdwg.mxu0
        %v2497 = vadd.f32 %v2446, %v2489
        %v2498 = vadd.f32 %v2448, %v2493
        %v2499 = vxor.u32 %v2497, 2147483648
        %v2500 = vxor.u32 %v2498, 2147483648
        %v2501 = vmul.f32 %v2499, 1.442695
        %v2502 = vpow.pop %v2501
        %v2503 = vmul.f32 %v2500, 1.442695
        %v2504 = vpow.pop %v2503
        %v2505 = vadd.f32 %v2502, 1.0
        %v2506 = vadd.f32 %v2504, 1.0
        %v2507 = vrcp.pop %v2505
        %v2508 = vmul.f32 1.0, %v2507
        %v2509 = vrcp.pop %v2506
        %v2510 = vmul.f32 1.0, %v2509
        %v2511 = vadd.f32 %v2491, %v484
        %v2512 = vadd.f32 %v2495, %v484
        %v2513 = vmul.f32 %v2508, %v2511
        %v2514 = vmul.f32 %v2510, %v2512
        %v2515 = vadd.f32 %v2447, %v2513
        %v2516 = vadd.f32 %v2449, %v2514
        %v2517 = vtanh.pop %v2515
        %v2518 = vtanh.pop %v2516
        %v2519 = vsub.f32 %v2443, %v2517
        %v2520 = vsub.f32 %v2444, %v2518
        %2523 = vrot.lane.b32.xlu0 %v2519, 64
        %v2524 = vpop.permute.xlu0 %2523
        %2525 = vrot.lane.b32.xlu0 %v2520, 64
        %v2526 = vpop.permute.xlu0 %2525
        %v2529 = vmul.f32 %v2508, %v2524
        %v2530 = vmul.f32 %v2510, %v2526
        %2533 = vrot.lane.b32.xlu0 %v2529, 64
        %v2534 = vpop.permute.xlu0 %2533
        %2535 = vrot.lane.b32.xlu0 %v2530, 64
        %v2536 = vpop.permute.xlu0 %2535
        %v2539 = vadd.f32 %v2517, %v2534
        %v2540 = vadd.f32 %v2518, %v2536
        %s2541 = scalar_lea.vmem %s438, 672 [#allocation2]
        %v2542 = vld [vmem:[%s2541] sm:$0xff]
        %v2543 = vld [vmem:[%s2541 + $0x8] sm:$0xff]
        %v2544 = vld [vmem:[%s2541 + $0x10] sm:$0xff]
        %v2545 = vld [vmem:[%s2541 + $0x18] sm:$0xff]
        %v2546 = vpack.c.bf16 %v2540, %v2539
        %v2548 = vsel %vm530, %v2546, 0
        %2550 = vmatprep.subr.bf16.mxu0 %v515
        %2551 = vmatpush1.bf16.msra.mxu0 %v514
        %2552 = vmatprep.subr.bf16.mxu0 %v517
        %2553 = vmatpush1.bf16.msra.mxu0 %v516
        %2554 = vmatprep.subr.bf16.mxu0 %v519
        %2555 = vmatpush1.bf16.msra.mxu0 %v518
        %2556 = vmatprep.subr.bf16.mxu0 %v521
        %2557 = vmatpush1.bf16.msra.mxu0 %v520
        %2558 = vmatprep.subr.bf16.mxu0 0
        %2559 = vmatpush1.bf16.msra.mxu0 0
        %2560 = vmatprep.subr.bf16.mxu0 0
        %2561 = vmatpush1.bf16.msra.mxu0 0
        %2562 = vmatprep.subr.bf16.mxu0 0
        %2563 = vmatpush1.bf16.msra.mxu0 0
        %2564 = vmatprep.subr.bf16.mxu0 0
        %2565 = vmatpush1.bf16.msra.mxu0 0
        %2566 = vmatprep.subr.bf16.mxu0 0
        %2567 = vmatpush1.bf16.msra.mxu0 0
        %2568 = vmatprep.subr.bf16.mxu0 0
        %2569 = vmatpush1.bf16.msra.mxu0 0
        %2570 = vmatprep.subr.bf16.mxu0 0
        %2571 = vmatpush1.bf16.msra.mxu0 0
        %2572 = vmatprep.subr.bf16.mxu0 0
        %2573 = vmatpush1.bf16.msra.mxu0 0
        %2574 = vmatprep.subr.bf16.mxu0 0
        %2575 = vmatpush1.bf16.msra.mxu0 0
        %2576 = vmatprep.subr.bf16.mxu0 0
        %2577 = vmatpush1.bf16.msra.mxu0 0
        %2578 = vmatprep.subr.bf16.mxu0 0
        %2579 = vmatpush1.bf16.msra.mxu0 0
        %2580 = vmatprep.subr.bf16.mxu0 0
        %2581 = vmatpush1.bf16.msra.mxu0 0
        %2582 = vmatprep.mubr.bf16.mxu0 0
        %2583 = vmatmul.mubr.bf16.gmra.mrb[0].mxu0 %v2548
        %v2584 = vpop.f32.mrb[0].mxu0
        %v2585 = vadd.f32 0.0, %v2584
        %v2586 = vpop.f32.mrb[0].mxu0
        %v2587 = vadd.f32 0.0, %v2586
        %v2588 = vpop.f32.mrb[0].mxu0
        %v2589 = vadd.f32 0.0, %v2588
        %v2590 = vpop.f32.mrb[0].mxu0
        %v2591 = vadd.f32 0.0, %v2590
        %2592 = vdwg.mxu0
        %v2593 = vadd.f32 %v2542, %v2585
        %v2594 = vadd.f32 %v2544, %v2589
        %v2595 = vxor.u32 %v2593, 2147483648
        %v2596 = vxor.u32 %v2594, 2147483648
        %v2597 = vmul.f32 %v2595, 1.442695
        %v2598 = vpow.pop %v2597
        %v2599 = vmul.f32 %v2596, 1.442695
        %v2600 = vpow.pop %v2599
        %v2601 = vadd.f32 %v2598, 1.0
        %v2602 = vadd.f32 %v2600, 1.0
        %v2603 = vrcp.pop %v2601
        %v2604 = vmul.f32 1.0, %v2603
        %v2605 = vrcp.pop %v2602
        %v2606 = vmul.f32 1.0, %v2605
        %v2607 = vadd.f32 %v2587, %v484
        %v2608 = vadd.f32 %v2591, %v484
        %v2609 = vmul.f32 %v2604, %v2607
        %v2610 = vmul.f32 %v2606, %v2608
        %v2611 = vadd.f32 %v2543, %v2609
        %v2612 = vadd.f32 %v2545, %v2610
        %v2613 = vtanh.pop %v2611
        %v2614 = vtanh.pop %v2612
        %v2615 = vsub.f32 %v2539, %v2613
        %v2616 = vsub.f32 %v2540, %v2614
        %2619 = vrot.lane.b32.xlu0 %v2615, 64
        %v2620 = vpop.permute.xlu0 %2619
        %2621 = vrot.lane.b32.xlu0 %v2616, 64
        %v2622 = vpop.permute.xlu0 %2621
        %v2625 = vmul.f32 %v2604, %v2620
        %v2626 = vmul.f32 %v2606, %v2622
        %2629 = vrot.lane.b32.xlu0 %v2625, 64
        %v2630 = vpop.permute.xlu0 %2629
        %2631 = vrot.lane.b32.xlu0 %v2626, 64
        %v2632 = vpop.permute.xlu0 %2631
        %v2635 = vadd.f32 %v2613, %v2630
        %v2636 = vadd.f32 %v2614, %v2632
        %s2637 = scalar_lea.vmem %s438, 704 [#allocation2]
        %v2638 = vld [vmem:[%s2637] sm:$0xff]
        %v2639 = vld [vmem:[%s2637 + $0x8] sm:$0xff]
        %v2640 = vld [vmem:[%s2637 + $0x10] sm:$0xff]
        %v2641 = vld [vmem:[%s2637 + $0x18] sm:$0xff]
        %v2642 = vpack.c.bf16 %v2636, %v2635
        %v2644 = vsel %vm530, %v2642, 0
        %2646 = vmatprep.subr.bf16.mxu0 %v515
        %2647 = vmatpush1.bf16.msra.mxu0 %v514
        %2648 = vmatprep.subr.bf16.mxu0 %v517
        %2649 = vmatpush1.bf16.msra.mxu0 %v516
        %2650 = vmatprep.subr.bf16.mxu0 %v519
        %2651 = vmatpush1.bf16.msra.mxu0 %v518
        %2652 = vmatprep.subr.bf16.mxu0 %v521
        %2653 = vmatpush1.bf16.msra.mxu0 %v520
        %2654 = vmatprep.subr.bf16.mxu0 0
        %2655 = vmatpush1.bf16.msra.mxu0 0
        %2656 = vmatprep.subr.bf16.mxu0 0
        %2657 = vmatpush1.bf16.msra.mxu0 0
        %2658 = vmatprep.subr.bf16.mxu0 0
        %2659 = vmatpush1.bf16.msra.mxu0 0
        %2660 = vmatprep.subr.bf16.mxu0 0
        %2661 = vmatpush1.bf16.msra.mxu0 0
        %2662 = vmatprep.subr.bf16.mxu0 0
        %2663 = vmatpush1.bf16.msra.mxu0 0
        %2664 = vmatprep.subr.bf16.mxu0 0
        %2665 = vmatpush1.bf16.msra.mxu0 0
        %2666 = vmatprep.subr.bf16.mxu0 0
        %2667 = vmatpush1.bf16.msra.mxu0 0
        %2668 = vmatprep.subr.bf16.mxu0 0
        %2669 = vmatpush1.bf16.msra.mxu0 0
        %2670 = vmatprep.subr.bf16.mxu0 0
        %2671 = vmatpush1.bf16.msra.mxu0 0
        %2672 = vmatprep.subr.bf16.mxu0 0
        %2673 = vmatpush1.bf16.msra.mxu0 0
        %2674 = vmatprep.subr.bf16.mxu0 0
        %2675 = vmatpush1.bf16.msra.mxu0 0
        %2676 = vmatprep.subr.bf16.mxu0 0
        %2677 = vmatpush1.bf16.msra.mxu0 0
        %2678 = vmatprep.mubr.bf16.mxu0 0
        %2679 = vmatmul.mubr.bf16.gmra.mrb[0].mxu0 %v2644
        %v2680 = vpop.f32.mrb[0].mxu0
        %v2681 = vadd.f32 0.0, %v2680
        %v2682 = vpop.f32.mrb[0].mxu0
        %v2683 = vadd.f32 0.0, %v2682
        %v2684 = vpop.f32.mrb[0].mxu0
        %v2685 = vadd.f32 0.0, %v2684
        %v2686 = vpop.f32.mrb[0].mxu0
        %v2687 = vadd.f32 0.0, %v2686
        %2688 = vdwg.mxu0
        %v2689 = vadd.f32 %v2638, %v2681
        %v2690 = vadd.f32 %v2640, %v2685
        %v2691 = vxor.u32 %v2689, 2147483648
        %v2692 = vxor.u32 %v2690, 2147483648
        %v2693 = vmul.f32 %v2691, 1.442695
        %v2694 = vpow.pop %v2693
        %v2695 = vmul.f32 %v2692, 1.442695
        %v2696 = vpow.pop %v2695
        %v2697 = vadd.f32 %v2694, 1.0
        %v2698 = vadd.f32 %v2696, 1.0
        %v2699 = vrcp.pop %v2697
        %v2700 = vmul.f32 1.0, %v2699
        %v2701 = vrcp.pop %v2698
        %v2702 = vmul.f32 1.0, %v2701
        %v2703 = vadd.f32 %v2683, %v484
        %v2704 = vadd.f32 %v2687, %v484
        %v2705 = vmul.f32 %v2700, %v2703
        %v2706 = vmul.f32 %v2702, %v2704
        %v2707 = vadd.f32 %v2639, %v2705
        %v2708 = vadd.f32 %v2641, %v2706
        %v2709 = vtanh.pop %v2707
        %v2710 = vtanh.pop %v2708
        %v2711 = vsub.f32 %v2635, %v2709
        %v2712 = vsub.f32 %v2636, %v2710
        %2715 = vrot.lane.b32.xlu0 %v2711, 64
        %v2716 = vpop.permute.xlu0 %2715
        %2717 = vrot.lane.b32.xlu0 %v2712, 64
        %v2718 = vpop.permute.xlu0 %2717
        %v2721 = vmul.f32 %v2700, %v2716
        %v2722 = vmul.f32 %v2702, %v2718
        %2725 = vrot.lane.b32.xlu0 %v2721, 64
        %v2726 = vpop.permute.xlu0 %2725
        %2727 = vrot.lane.b32.xlu0 %v2722, 64
        %v2728 = vpop.permute.xlu0 %2727
        %v2731 = vadd.f32 %v2709, %v2726
        %v2732 = vadd.f32 %v2710, %v2728
        %s2733 = scalar_lea.vmem %s438, 736 [#allocation2]
        %v2734 = vld [vmem:[%s2733] sm:$0xff]
        %v2735 = vld [vmem:[%s2733 + $0x8] sm:$0xff]
        %v2736 = vld [vmem:[%s2733 + $0x10] sm:$0xff]
        %v2737 = vld [vmem:[%s2733 + $0x18] sm:$0xff]
        %v2738 = vpack.c.bf16 %v2732, %v2731
        %v2740 = vsel %vm530, %v2738, 0
        %2742 = vmatprep.subr.bf16.mxu0 %v515
        %2743 = vmatpush1.bf16.msra.mxu0 %v514
        %2744 = vmatprep.subr.bf16.mxu0 %v517
        %2745 = vmatpush1.bf16.msra.mxu0 %v516
        %2746 = vmatprep.subr.bf16.mxu0 %v519
        %2747 = vmatpush1.bf16.msra.mxu0 %v518
        %2748 = vmatprep.subr.bf16.mxu0 %v521
        %2749 = vmatpush1.bf16.msra.mxu0 %v520
        %2750 = vmatprep.subr.bf16.mxu0 0
        %2751 = vmatpush1.bf16.msra.mxu0 0
        %2752 = vmatprep.subr.bf16.mxu0 0
        %2753 = vmatpush1.bf16.msra.mxu0 0
        %2754 = vmatprep.subr.bf16.mxu0 0
        %2755 = vmatpush1.bf16.msra.mxu0 0
        %2756 = vmatprep.subr.bf16.mxu0 0
        %2757 = vmatpush1.bf16.msra.mxu0 0
        %2758 = vmatprep.subr.bf16.mxu0 0
        %2759 = vmatpush1.bf16.msra.mxu0 0
        %2760 = vmatprep.subr.bf16.mxu0 0
        %2761 = vmatpush1.bf16.msra.mxu0 0
        %2762 = vmatprep.subr.bf16.mxu0 0
        %2763 = vmatpush1.bf16.msra.mxu0 0
        %2764 = vmatprep.subr.bf16.mxu0 0
        %2765 = vmatpush1.bf16.msra.mxu0 0
        %2766 = vmatprep.subr.bf16.mxu0 0
        %2767 = vmatpush1.bf16.msra.mxu0 0
        %2768 = vmatprep.subr.bf16.mxu0 0
        %2769 = vmatpush1.bf16.msra.mxu0 0
        %2770 = vmatprep.subr.bf16.mxu0 0
        %2771 = vmatpush1.bf16.msra.mxu0 0
        %2772 = vmatprep.subr.bf16.mxu0 0
        %2773 = vmatpush1.bf16.msra.mxu0 0
        %2774 = vmatprep.mubr.bf16.mxu0 0
        %2775 = vmatmul.mubr.bf16.gmra.mrb[0].mxu0 %v2740
        %v2776 = vpop.f32.mrb[0].mxu0
        %v2777 = vadd.f32 0.0, %v2776
        %v2778 = vpop.f32.mrb[0].mxu0
        %v2779 = vadd.f32 0.0, %v2778
        %v2780 = vpop.f32.mrb[0].mxu0
        %v2781 = vadd.f32 0.0, %v2780
        %v2782 = vpop.f32.mrb[0].mxu0
        %v2783 = vadd.f32 0.0, %v2782
        %2784 = vdwg.mxu0
        %v2785 = vadd.f32 %v2734, %v2777
        %v2786 = vadd.f32 %v2736, %v2781
        %v2787 = vxor.u32 %v2785, 2147483648
        %v2788 = vxor.u32 %v2786, 2147483648
        %v2789 = vmul.f32 %v2787, 1.442695
        %v2790 = vpow.pop %v2789
        %v2791 = vmul.f32 %v2788, 1.442695
        %v2792 = vpow.pop %v2791
        %v2793 = vadd.f32 %v2790, 1.0
        %v2794 = vadd.f32 %v2792, 1.0
        %v2795 = vrcp.pop %v2793
        %v2796 = vmul.f32 1.0, %v2795
        %v2797 = vrcp.pop %v2794
        %v2798 = vmul.f32 1.0, %v2797
        %v2799 = vadd.f32 %v2779, %v484
        %v2800 = vadd.f32 %v2783, %v484
        %v2801 = vmul.f32 %v2796, %v2799
        %v2802 = vmul.f32 %v2798, %v2800
        %v2803 = vadd.f32 %v2735, %v2801
        %v2804 = vadd.f32 %v2737, %v2802
        %v2805 = vtanh.pop %v2803
        %v2806 = vtanh.pop %v2804
        %v2807 = vsub.f32 %v2731, %v2805
        %v2808 = vsub.f32 %v2732, %v2806
        %2811 = vrot.lane.b32.xlu0 %v2807, 64
        %v2812 = vpop.permute.xlu0 %2811
        %2813 = vrot.lane.b32.xlu0 %v2808, 64
        %v2814 = vpop.permute.xlu0 %2813
        %v2817 = vmul.f32 %v2796, %v2812
        %v2818 = vmul.f32 %v2798, %v2814
        %2821 = vrot.lane.b32.xlu0 %v2817, 64
        %v2822 = vpop.permute.xlu0 %2821
        %2823 = vrot.lane.b32.xlu0 %v2818, 64
        %v2824 = vpop.permute.xlu0 %2823
        %v2827 = vadd.f32 %v2805, %v2822
        %v2828 = vadd.f32 %v2806, %v2824
        %s2829 = scalar_lea.vmem %s438, 768 [#allocation2]
        %v2830 = vld [vmem:[%s2829] sm:$0xff]
        %v2831 = vld [vmem:[%s2829 + $0x8] sm:$0xff]
        %v2832 = vld [vmem:[%s2829 + $0x10] sm:$0xff]
        %v2833 = vld [vmem:[%s2829 + $0x18] sm:$0xff]
        %v2834 = vpack.c.bf16 %v2828, %v2827
        %v2836 = vsel %vm530, %v2834, 0
        %2838 = vmatprep.subr.bf16.mxu0 %v515
        %2839 = vmatpush1.bf16.msra.mxu0 %v514
        %2840 = vmatprep.subr.bf16.mxu0 %v517
        %2841 = vmatpush1.bf16.msra.mxu0 %v516
        %2842 = vmatprep.subr.bf16.mxu0 %v519
        %2843 = vmatpush1.bf16.msra.mxu0 %v518
        %2844 = vmatprep.subr.bf16.mxu0 %v521
        %2845 = vmatpush1.bf16.msra.mxu0 %v520
        %2846 = vmatprep.subr.bf16.mxu0 0
        %2847 = vmatpush1.bf16.msra.mxu0 0
        %2848 = vmatprep.subr.bf16.mxu0 0
        %2849 = vmatpush1.bf16.msra.mxu0 0
        %2850 = vmatprep.subr.bf16.mxu0 0
        %2851 = vmatpush1.bf16.msra.mxu0 0
        %2852 = vmatprep.subr.bf16.mxu0 0
        %2853 = vmatpush1.bf16.msra.mxu0 0
        %2854 = vmatprep.subr.bf16.mxu0 0
        %2855 = vmatpush1.bf16.msra.mxu0 0
        %2856 = vmatprep.subr.bf16.mxu0 0
        %2857 = vmatpush1.bf16.msra.mxu0 0
        %2858 = vmatprep.subr.bf16.mxu0 0
        %2859 = vmatpush1.bf16.msra.mxu0 0
        %2860 = vmatprep.subr.bf16.mxu0 0
        %2861 = vmatpush1.bf16.msra.mxu0 0
        %2862 = vmatprep.subr.bf16.mxu0 0
        %2863 = vmatpush1.bf16.msra.mxu0 0
        %2864 = vmatprep.subr.bf16.mxu0 0
        %2865 = vmatpush1.bf16.msra.mxu0 0
        %2866 = vmatprep.subr.bf16.mxu0 0
        %2867 = vmatpush1.bf16.msra.mxu0 0
        %2868 = vmatprep.subr.bf16.mxu0 0
        %2869 = vmatpush1.bf16.msra.mxu0 0
        %2870 = vmatprep.mubr.bf16.mxu0 0
        %2871 = vmatmul.mubr.bf16.gmra.mrb[0].mxu0 %v2836
        %v2872 = vpop.f32.mrb[0].mxu0
        %v2873 = vadd.f32 0.0, %v2872
        %v2874 = vpop.f32.mrb[0].mxu0
        %v2875 = vadd.f32 0.0, %v2874
        %v2876 = vpop.f32.mrb[0].mxu0
        %v2877 = vadd.f32 0.0, %v2876
        %v2878 = vpop.f32.mrb[0].mxu0
        %v2879 = vadd.f32 0.0, %v2878
        %2880 = vdwg.mxu0
        %v2881 = vadd.f32 %v2830, %v2873
        %v2882 = vadd.f32 %v2832, %v2877
        %v2883 = vxor.u32 %v2881, 2147483648
        %v2884 = vxor.u32 %v2882, 2147483648
        %v2885 = vmul.f32 %v2883, 1.442695
        %v2886 = vpow.pop %v2885
        %v2887 = vmul.f32 %v2884, 1.442695
        %v2888 = vpow.pop %v2887
        %v2889 = vadd.f32 %v2886, 1.0
        %v2890 = vadd.f32 %v2888, 1.0
        %v2891 = vrcp.pop %v2889
        %v2892 = vmul.f32 1.0, %v2891
        %v2893 = vrcp.pop %v2890
        %v2894 = vmul.f32 1.0, %v2893
        %v2895 = vadd.f32 %v2875, %v484
        %v2896 = vadd.f32 %v2879, %v484
        %v2897 = vmul.f32 %v2892, %v2895
        %v2898 = vmul.f32 %v2894, %v2896
        %v2899 = vadd.f32 %v2831, %v2897
        %v2900 = vadd.f32 %v2833, %v2898
        %v2901 = vtanh.pop %v2899
        %v2902 = vtanh.pop %v2900
        %v2903 = vsub.f32 %v2827, %v2901
        %v2904 = vsub.f32 %v2828, %v2902
        %2907 = vrot.lane.b32.xlu0 %v2903, 64
        %v2908 = vpop.permute.xlu0 %2907
        %2909 = vrot.lane.b32.xlu0 %v2904, 64
        %v2910 = vpop.permute.xlu0 %2909
        %v2913 = vmul.f32 %v2892, %v2908
        %v2914 = vmul.f32 %v2894, %v2910
        %2917 = vrot.lane.b32.xlu0 %v2913, 64
        %v2918 = vpop.permute.xlu0 %2917
        %2919 = vrot.lane.b32.xlu0 %v2914, 64
        %v2920 = vpop.permute.xlu0 %2919
        %v2923 = vadd.f32 %v2901, %v2918
        %v2924 = vadd.f32 %v2902, %v2920
        %s2925 = scalar_lea.vmem %s438, 800 [#allocation2]
        %v2926 = vld [vmem:[%s2925] sm:$0xff]
        %v2927 = vld [vmem:[%s2925 + $0x8] sm:$0xff]
        %v2928 = vld [vmem:[%s2925 + $0x10] sm:$0xff]
        %v2929 = vld [vmem:[%s2925 + $0x18] sm:$0xff]
        %v2930 = vpack.c.bf16 %v2924, %v2923
        %v2932 = vsel %vm530, %v2930, 0
        %2934 = vmatprep.subr.bf16.mxu0 %v515
        %2935 = vmatpush1.bf16.msra.mxu0 %v514
        %2936 = vmatprep.subr.bf16.mxu0 %v517
        %2937 = vmatpush1.bf16.msra.mxu0 %v516
        %2938 = vmatprep.subr.bf16.mxu0 %v519
        %2939 = vmatpush1.bf16.msra.mxu0 %v518
        %2940 = vmatprep.subr.bf16.mxu0 %v521
        %2941 = vmatpush1.bf16.msra.mxu0 %v520
        %2942 = vmatprep.subr.bf16.mxu0 0
        %2943 = vmatpush1.bf16.msra.mxu0 0
        %2944 = vmatprep.subr.bf16.mxu0 0
        %2945 = vmatpush1.bf16.msra.mxu0 0
        %2946 = vmatprep.subr.bf16.mxu0 0
        %2947 = vmatpush1.bf16.msra.mxu0 0
        %2948 = vmatprep.subr.bf16.mxu0 0
        %2949 = vmatpush1.bf16.msra.mxu0 0
        %2950 = vmatprep.subr.bf16.mxu0 0
        %2951 = vmatpush1.bf16.msra.mxu0 0
        %2952 = vmatprep.subr.bf16.mxu0 0
        %2953 = vmatpush1.bf16.msra.mxu0 0
        %2954 = vmatprep.subr.bf16.mxu0 0
        %2955 = vmatpush1.bf16.msra.mxu0 0
        %2956 = vmatprep.subr.bf16.mxu0 0
        %2957 = vmatpush1.bf16.msra.mxu0 0
        %2958 = vmatprep.subr.bf16.mxu0 0
        %2959 = vmatpush1.bf16.msra.mxu0 0
        %2960 = vmatprep.subr.bf16.mxu0 0
        %2961 = vmatpush1.bf16.msra.mxu0 0
        %2962 = vmatprep.subr.bf16.mxu0 0
        %2963 = vmatpush1.bf16.msra.mxu0 0
        %2964 = vmatprep.subr.bf16.mxu0 0
        %2965 = vmatpush1.bf16.msra.mxu0 0
        %2966 = vmatprep.mubr.bf16.mxu0 0
        %2967 = vmatmul.mubr.bf16.gmra.mrb[0].mxu0 %v2932
        %v2968 = vpop.f32.mrb[0].mxu0
        %v2969 = vadd.f32 0.0, %v2968
        %v2970 = vpop.f32.mrb[0].mxu0
        %v2971 = vadd.f32 0.0, %v2970
        %v2972 = vpop.f32.mrb[0].mxu0
        %v2973 = vadd.f32 0.0, %v2972
        %v2974 = vpop.f32.mrb[0].mxu0
        %v2975 = vadd.f32 0.0, %v2974
        %2976 = vdwg.mxu0
        %v2977 = vadd.f32 %v2926, %v2969
        %v2978 = vadd.f32 %v2928, %v2973
        %v2979 = vxor.u32 %v2977, 2147483648
        %v2980 = vxor.u32 %v2978, 2147483648
        %v2981 = vmul.f32 %v2979, 1.442695
        %v2982 = vpow.pop %v2981
        %v2983 = vmul.f32 %v2980, 1.442695
        %v2984 = vpow.pop %v2983
        %v2985 = vadd.f32 %v2982, 1.0
        %v2986 = vadd.f32 %v2984, 1.0
        %v2987 = vrcp.pop %v2985
        %v2988 = vmul.f32 1.0, %v2987
        %v2989 = vrcp.pop %v2986
        %v2990 = vmul.f32 1.0, %v2989
        %v2991 = vadd.f32 %v2971, %v484
        %v2992 = vadd.f32 %v2975, %v484
        %v2993 = vmul.f32 %v2988, %v2991
        %v2994 = vmul.f32 %v2990, %v2992
        %v2995 = vadd.f32 %v2927, %v2993
        %v2996 = vadd.f32 %v2929, %v2994
        %v2997 = vtanh.pop %v2995
        %v2998 = vtanh.pop %v2996
        %v2999 = vsub.f32 %v2923, %v2997
        %v3000 = vsub.f32 %v2924, %v2998
        %3003 = vrot.lane.b32.xlu0 %v2999, 64
        %v3004 = vpop.permute.xlu0 %3003
        %3005 = vrot.lane.b32.xlu0 %v3000, 64
        %v3006 = vpop.permute.xlu0 %3005
        %v3009 = vmul.f32 %v2988, %v3004
        %v3010 = vmul.f32 %v2990, %v3006
        %3013 = vrot.lane.b32.xlu0 %v3009, 64
        %v3014 = vpop.permute.xlu0 %3013
        %3015 = vrot.lane.b32.xlu0 %v3010, 64
        %v3016 = vpop.permute.xlu0 %3015
        %v3019 = vadd.f32 %v2997, %v3014
        %v3020 = vadd.f32 %v2998, %v3016
        %s3021 = scalar_lea.vmem %s438, 832 [#allocation2]
        %v3022 = vld [vmem:[%s3021] sm:$0xff]
        %v3023 = vld [vmem:[%s3021 + $0x8] sm:$0xff]
        %v3024 = vld [vmem:[%s3021 + $0x10] sm:$0xff]
        %v3025 = vld [vmem:[%s3021 + $0x18] sm:$0xff]
        %v3026 = vpack.c.bf16 %v3020, %v3019
        %v3028 = vsel %vm530, %v3026, 0
        %3030 = vmatprep.subr.bf16.mxu0 %v515
        %3031 = vmatpush1.bf16.msra.mxu0 %v514
        %3032 = vmatprep.subr.bf16.mxu0 %v517
        %3033 = vmatpush1.bf16.msra.mxu0 %v516
        %3034 = vmatprep.subr.bf16.mxu0 %v519
        %3035 = vmatpush1.bf16.msra.mxu0 %v518
        %3036 = vmatprep.subr.bf16.mxu0 %v521
        %3037 = vmatpush1.bf16.msra.mxu0 %v520
        %3038 = vmatprep.subr.bf16.mxu0 0
        %3039 = vmatpush1.bf16.msra.mxu0 0
        %3040 = vmatprep.subr.bf16.mxu0 0
        %3041 = vmatpush1.bf16.msra.mxu0 0
        %3042 = vmatprep.subr.bf16.mxu0 0
        %3043 = vmatpush1.bf16.msra.mxu0 0
        %3044 = vmatprep.subr.bf16.mxu0 0
        %3045 = vmatpush1.bf16.msra.mxu0 0
        %3046 = vmatprep.subr.bf16.mxu0 0
        %3047 = vmatpush1.bf16.msra.mxu0 0
        %3048 = vmatprep.subr.bf16.mxu0 0
        %3049 = vmatpush1.bf16.msra.mxu0 0
        %3050 = vmatprep.subr.bf16.mxu0 0
        %3051 = vmatpush1.bf16.msra.mxu0 0
        %3052 = vmatprep.subr.bf16.mxu0 0
        %3053 = vmatpush1.bf16.msra.mxu0 0
        %3054 = vmatprep.subr.bf16.mxu0 0
        %3055 = vmatpush1.bf16.msra.mxu0 0
        %3056 = vmatprep.subr.bf16.mxu0 0
        %3057 = vmatpush1.bf16.msra.mxu0 0
        %3058 = vmatprep.subr.bf16.mxu0 0
        %3059 = vmatpush1.bf16.msra.mxu0 0
        %3060 = vmatprep.subr.bf16.mxu0 0
        %3061 = vmatpush1.bf16.msra.mxu0 0
        %3062 = vmatprep.mubr.bf16.mxu0 0
        %3063 = vmatmul.mubr.bf16.gmra.mrb[0].mxu0 %v3028
        %v3064 = vpop.f32.mrb[0].mxu0
        %v3065 = vadd.f32 0.0, %v3064
        %v3066 = vpop.f32.mrb[0].mxu0
        %v3067 = vadd.f32 0.0, %v3066
        %v3068 = vpop.f32.mrb[0].mxu0
        %v3069 = vadd.f32 0.0, %v3068
        %v3070 = vpop.f32.mrb[0].mxu0
        %v3071 = vadd.f32 0.0, %v3070
        %3072 = vdwg.mxu0
        %v3073 = vadd.f32 %v3022, %v3065
        %v3074 = vadd.f32 %v3024, %v3069
        %v3075 = vxor.u32 %v3073, 2147483648
        %v3076 = vxor.u32 %v3074, 2147483648
        %v3077 = vmul.f32 %v3075, 1.442695
        %v3078 = vpow.pop %v3077
        %v3079 = vmul.f32 %v3076, 1.442695
        %v3080 = vpow.pop %v3079
        %v3081 = vadd.f32 %v3078, 1.0
        %v3082 = vadd.f32 %v3080, 1.0
        %v3083 = vrcp.pop %v3081
        %v3084 = vmul.f32 1.0, %v3083
        %v3085 = vrcp.pop %v3082
        %v3086 = vmul.f32 1.0, %v3085
        %v3087 = vadd.f32 %v3067, %v484
        %v3088 = vadd.f32 %v3071, %v484
        %v3089 = vmul.f32 %v3084, %v3087
        %v3090 = vmul.f32 %v3086, %v3088
        %v3091 = vadd.f32 %v3023, %v3089
        %v3092 = vadd.f32 %v3025, %v3090
        %v3093 = vtanh.pop %v3091
        %v3094 = vtanh.pop %v3092
        %v3095 = vsub.f32 %v3019, %v3093
        %v3096 = vsub.f32 %v3020, %v3094
        %3099 = vrot.lane.b32.xlu0 %v3095, 64
        %v3100 = vpop.permute.xlu0 %3099
        %3101 = vrot.lane.b32.xlu0 %v3096, 64
        %v3102 = vpop.permute.xlu0 %3101
        %v3105 = vmul.f32 %v3084, %v3100
        %v3106 = vmul.f32 %v3086, %v3102
        %3109 = vrot.lane.b32.xlu0 %v3105, 64
        %v3110 = vpop.permute.xlu0 %3109
        %3111 = vrot.lane.b32.xlu0 %v3106, 64
        %v3112 = vpop.permute.xlu0 %3111
        %v3115 = vadd.f32 %v3093, %v3110
        %v3116 = vadd.f32 %v3094, %v3112
        %s3117 = scalar_lea.vmem %s438, 864 [#allocation2]
        %v3118 = vld [vmem:[%s3117] sm:$0xff]
        %v3119 = vld [vmem:[%s3117 + $0x8] sm:$0xff]
        %v3120 = vld [vmem:[%s3117 + $0x10] sm:$0xff]
        %v3121 = vld [vmem:[%s3117 + $0x18] sm:$0xff]
        %v3122 = vpack.c.bf16 %v3116, %v3115
        %v3124 = vsel %vm530, %v3122, 0
        %3126 = vmatprep.subr.bf16.mxu0 %v515
        %3127 = vmatpush1.bf16.msra.mxu0 %v514
        %3128 = vmatprep.subr.bf16.mxu0 %v517
        %3129 = vmatpush1.bf16.msra.mxu0 %v516
        %3130 = vmatprep.subr.bf16.mxu0 %v519
        %3131 = vmatpush1.bf16.msra.mxu0 %v518
        %3132 = vmatprep.subr.bf16.mxu0 %v521
        %3133 = vmatpush1.bf16.msra.mxu0 %v520
        %3134 = vmatprep.subr.bf16.mxu0 0
        %3135 = vmatpush1.bf16.msra.mxu0 0
        %3136 = vmatprep.subr.bf16.mxu0 0
        %3137 = vmatpush1.bf16.msra.mxu0 0
        %3138 = vmatprep.subr.bf16.mxu0 0
        %3139 = vmatpush1.bf16.msra.mxu0 0
        %3140 = vmatprep.subr.bf16.mxu0 0
        %3141 = vmatpush1.bf16.msra.mxu0 0
        %3142 = vmatprep.subr.bf16.mxu0 0
        %3143 = vmatpush1.bf16.msra.mxu0 0
        %3144 = vmatprep.subr.bf16.mxu0 0
        %3145 = vmatpush1.bf16.msra.mxu0 0
        %3146 = vmatprep.subr.bf16.mxu0 0
        %3147 = vmatpush1.bf16.msra.mxu0 0
        %3148 = vmatprep.subr.bf16.mxu0 0
        %3149 = vmatpush1.bf16.msra.mxu0 0
        %3150 = vmatprep.subr.bf16.mxu0 0
        %3151 = vmatpush1.bf16.msra.mxu0 0
        %3152 = vmatprep.subr.bf16.mxu0 0
        %3153 = vmatpush1.bf16.msra.mxu0 0
        %3154 = vmatprep.subr.bf16.mxu0 0
        %3155 = vmatpush1.bf16.msra.mxu0 0
        %3156 = vmatprep.subr.bf16.mxu0 0
        %3157 = vmatpush1.bf16.msra.mxu0 0
        %3158 = vmatprep.mubr.bf16.mxu0 0
        %3159 = vmatmul.mubr.bf16.gmra.mrb[0].mxu0 %v3124
        %v3160 = vpop.f32.mrb[0].mxu0
        %v3161 = vadd.f32 0.0, %v3160
        %v3162 = vpop.f32.mrb[0].mxu0
        %v3163 = vadd.f32 0.0, %v3162
        %v3164 = vpop.f32.mrb[0].mxu0
        %v3165 = vadd.f32 0.0, %v3164
        %v3166 = vpop.f32.mrb[0].mxu0
        %v3167 = vadd.f32 0.0, %v3166
        %3168 = vdwg.mxu0
        %v3169 = vadd.f32 %v3118, %v3161
        %v3170 = vadd.f32 %v3120, %v3165
        %v3171 = vxor.u32 %v3169, 2147483648
        %v3172 = vxor.u32 %v3170, 2147483648
        %v3173 = vmul.f32 %v3171, 1.442695
        %v3174 = vpow.pop %v3173
        %v3175 = vmul.f32 %v3172, 1.442695
        %v3176 = vpow.pop %v3175
        %v3177 = vadd.f32 %v3174, 1.0
        %v3178 = vadd.f32 %v3176, 1.0
        %v3179 = vrcp.pop %v3177
        %v3180 = vmul.f32 1.0, %v3179
        %v3181 = vrcp.pop %v3178
        %v3182 = vmul.f32 1.0, %v3181
        %v3183 = vadd.f32 %v3163, %v484
        %v3184 = vadd.f32 %v3167, %v484
        %v3185 = vmul.f32 %v3180, %v3183
        %v3186 = vmul.f32 %v3182, %v3184
        %v3187 = vadd.f32 %v3119, %v3185
        %v3188 = vadd.f32 %v3121, %v3186
        %v3189 = vtanh.pop %v3187
        %v3190 = vtanh.pop %v3188
        %v3191 = vsub.f32 %v3115, %v3189
        %v3192 = vsub.f32 %v3116, %v3190
        %3195 = vrot.lane.b32.xlu0 %v3191, 64
        %v3196 = vpop.permute.xlu0 %3195
        %3197 = vrot.lane.b32.xlu0 %v3192, 64
        %v3198 = vpop.permute.xlu0 %3197
        %v3201 = vmul.f32 %v3180, %v3196
        %v3202 = vmul.f32 %v3182, %v3198
        %3205 = vrot.lane.b32.xlu0 %v3201, 64
        %v3206 = vpop.permute.xlu0 %3205
        %3207 = vrot.lane.b32.xlu0 %v3202, 64
        %v3208 = vpop.permute.xlu0 %3207
        %v3211 = vadd.f32 %v3189, %v3206
        %v3212 = vadd.f32 %v3190, %v3208
        %v3213 = vpack.c.bf16 %v3212, %v3211
        %v3214 = vld [vmem:[%s3] sm:$0xf]
        %v3215 = vld [vmem:[%s3 + $0x4] sm:$0xf]
        %v3216 = vld [vmem:[%s3 + $0x8] sm:$0xf]
        %v3217 = vld [vmem:[%s3 + $0xc] sm:$0xf]
        %v3218 = vld [vmem:[%s3 + $0x10] sm:$0xf]
        %v3219 = vld [vmem:[%s3 + $0x14] sm:$0xf]
        %v3220 = vld [vmem:[%s3 + $0x18] sm:$0xf]
        %v3221 = vld [vmem:[%s3 + $0x1c] sm:$0xf]
        %v3222 = vld [vmem:[%s4] sm:$0x1]
        %v3224 = vlaneseq
        %v3225 = vshrl.u32 %v3224, 7
        %v3226 = vsub.s32 0, %v3225
        %v3227 = vrot.slane %v3222, %v3226
        %v3237 = vunpack.c.l.b16 %v3214
        %v3238 = vunpack.c.l.b16 %v3215
        %v3239 = vunpack.c.l.b16 %v3216
        %v3240 = vunpack.c.l.b16 %v3217
        %v3241 = vunpack.c.l.b16 %v3218
        %v3242 = vunpack.c.l.b16 %v3219
        %v3243 = vunpack.c.l.b16 %v3220
        %v3244 = vunpack.c.l.b16 %v3221
        %v3245 = vpack.c.b16 %v3238, %v3237
        %v3246 = vpack.c.b16 %v3240, %v3239
        %v3247 = vpack.c.b16 %v3242, %v3241
        %v3248 = vpack.c.b16 %v3244, %v3243
        %v3254 = vsel %vm530, %v3213, 0
        %3256 = vmatprep.subr.bf16.mxu0 0
        %3257 = vmatpush1.bf16.msra.mxu0 %v3245
        %3258 = vmatprep.subr.bf16.mxu0 0
        %3259 = vmatpush1.bf16.msra.mxu0 %v3246
        %3260 = vmatprep.subr.bf16.mxu0 0
        %3261 = vmatpush1.bf16.msra.mxu0 %v3247
        %3262 = vmatprep.subr.bf16.mxu0 0
        %3263 = vmatpush1.bf16.msra.mxu0 %v3248
        %3264 = vmatprep.subr.bf16.mxu0 0
        %3265 = vmatpush1.bf16.msra.mxu0 0
        %3266 = vmatprep.subr.bf16.mxu0 0
        %3267 = vmatpush1.bf16.msra.mxu0 0
        %3268 = vmatprep.subr.bf16.mxu0 0
        %3269 = vmatpush1.bf16.msra.mxu0 0
        %3270 = vmatprep.subr.bf16.mxu0 0
        %3271 = vmatpush1.bf16.msra.mxu0 0
        %3272 = vmatprep.subr.bf16.mxu0 0
        %3273 = vmatpush1.bf16.msra.mxu0 0
        %3274 = vmatprep.subr.bf16.mxu0 0
        %3275 = vmatpush1.bf16.msra.mxu0 0
        %3276 = vmatprep.subr.bf16.mxu0 0
        %3277 = vmatpush1.bf16.msra.mxu0 0
        %3278 = vmatprep.subr.bf16.mxu0 0
        %3279 = vmatpush1.bf16.msra.mxu0 0
        %3280 = vmatprep.subr.bf16.mxu0 0
        %3281 = vmatpush1.bf16.msra.mxu0 0
        %3282 = vmatprep.subr.bf16.mxu0 0
        %3283 = vmatpush1.bf16.msra.mxu0 0
        %3284 = vmatprep.subr.bf16.mxu0 0
        %3285 = vmatpush1.bf16.msra.mxu0 0
        %3286 = vmatprep.subr.bf16.mxu0 0
        %3287 = vmatpush1.bf16.msra.mxu0 0
        %3288 = vmatprep.mubr.bf16.mxu0 0
        %3289 = vmatmul.mubr.bf16.gmra.mrb[0].mxu0 %v3254
        %v3290 = vpop.f32.mrb[0].mxu0
        %v3291 = vadd.f32 %v3227, %v3290
        %v3292 = vpop.f32.mrb[0].mxu0
        %v3293 = vpop.f32.mrb[0].mxu0
        %v3294 = vadd.f32 %v3227, %v3293
        %v3295 = vpop.f32.mrb[0].mxu0
        %3296 = vdwg.mxu0
        %vm3297 = vcmask 80896
        %3298 = vst.msk [vmem:[%s468] sm:$0xff] %vm3297, %v3291
        %3299 = vst.msk [vmem:[%s468 + $0x8] sm:$0xff] %vm3297, %v3294
        %s3300 = smul.u32 2, %s16
        %p3301 = scmp.lt.s32.totalorder %s3300, 5
        %s3302 = scalar_select %p3301, %s3300, 5
        %s3303 = smul.addr %s3302, 8
        %s3304 = scalar_lea.vmem %s5, %s3303
        // Predicated region
        $region64: #{_lambda_.1} parent=58 // pred_check
          %p3305 = pneg %p144
        $region65: #{_lambda_.1} parent=58 // pred_check_branch
          %3307 = sbr.rel (%p3305) target = $region67
        $region66: #{_lambda_.1} parent=58 // pred_region
          %s3308 = smul.u32 2, %s16
        $region67: #{_lambda_.1} parent=58 // pred_fallthru
          _
      $region59: #{_lambda_.1} parent=5 // pred_fallthru
        _
      %p3309 = scmp.le.s32.totalorder 2, %s11
      // Predicated region
      $region68: #{_lambda_.1} parent=5 // pred_check
        %p3310 = pneg %p3309
      $region69: #{_lambda_.1} parent=5 // pred_check_branch
        %3312 = sbr.rel (%p3310) target = $region71
      $region70: #{_lambda_.1} parent=5 // pred_region
        %s3313 = ssub.s32 %s11, 2
        // Predicated region
        $region72: #{_lambda_.1} parent=70 // pred_check
          %p3314 = pneg %p150
        $region73: #{_lambda_.1} parent=70 // pred_check_branch
          %3316 = sbr.rel (%p3314) target = $region75
        $region74: #{_lambda_.1} parent=70 // pred_region
          %s3317 = smul.u32 2, %s17
          %p3318 = scmp.lt.s32.totalorder %s3317, 5
          %s3319 = scalar_select %p3318, %s3317, 5
          %s3320 = smul.addr %s3319, 8
          %s3321 = scalar_lea.vmem %s5, %s3320
        $region75: #{_lambda_.1} parent=70 // pred_fallthru
          _
      $region71: #{_lambda_.1} parent=5 // pred_fallthru
        _
    $region6: #{_lambda_.1} parent=1 // loop_footer
      %s15 = sadd.s32 1, %s11
    $region7: #{_lambda_.1} parent=1 // loop_footer_branch
      %10 = sbr.rel target = $region3
    $region8: #{_lambda_.1} parent=1 // loop_exit
      _

</llo_original>
